<compile_context>
chip_gen: v7x
topology: tpu7x:2x2x1
jax: 0.10.0
libtpu: 0.0.40
codegen_flags: <defaults>
</compile_context>

<pallas_src>
import functools

import numpy as np

import jax
import jax.numpy as jnp
from jax.experimental import pallas as pl
from jax.experimental.pallas import tpu as pltpu


# ResNet152 stage channel counts / strides used by conv2/conv3/conv4 in the module.
STAGE_SPECS = ((2048, 32), (1024, 16), (512, 8))  # (in_channels, stride)


# ----------------------------------------------------------------------------
# Pallas kernel: fused (1x1 conv -> ReLU -> GAP) + channel-mean for 3 stages
# ----------------------------------------------------------------------------
def _fused_transfer_kernel(x2_ref, w2_ref, wm2_ref, p2_ref,
                           x3_ref, w3_ref, wm3_ref, p3_ref,
                           x4_ref, w4_ref, wm4_ref, p4_ref,
                           v2_ref, v3_ref, v4_ref,
                           im2_ref, im3_ref, im4_ref,
                           *, hws):
    # x*_ref : (N*HW_k, Cin_k)  f32   batch-packed, spatially-flattened features
    # w*_ref : (Cin_k, Cout)    bf16  1x1-conv weight (no bias), cast once at init
    # wm*_ref: (1, Cin_k)       bf16  mean(w, axis=1) row  (inter.mean(channel) identity)
    # p*_ref : (N, N*HW_k)      bf16  block-diagonal ones pooling matrix (constant input)
    # v*_ref : (N, Cout)        f32   GAP(ReLU(inter_k))            -> v_k
    # im*_ref: (1, N*HW_k)      f32   inter_k.mean(channel), lane-dense (reshaped outside)

    def stage(x_ref, w_ref, wm_ref, p_ref, v_ref, im_ref, hw):
        # Single-pass cast of the f32 feature stream to bf16 in VMEM (MXU input dtype).
        x = x_ref[...].astype(jnp.bfloat16)                                   # (M, Cin)
        inter = jnp.dot(x, w_ref[...], preferred_element_type=jnp.float32)    # (M, Cout) f32

        # Per-batch global average pool on the MXU: bf16 ones block-diagonal pool matrix
        # (precomputed constant), f32 accumulate, exact 1/HW scale applied in f32.
        relu_bf16 = jnp.maximum(inter, 0.0).astype(jnp.bfloat16)
        v_ref[...] = jnp.dot(p_ref[...], relu_bf16,
                             preferred_element_type=jnp.float32) * (1.0 / hw)  # (N, Cout)

        # Channel mean of the pre-ReLU conv output: inter.mean(ch) == x @ mean(w, axis=1).
        # trans_b dot gives a rows-in-lanes (1, M) lane-dense output (no width-1 stores).
        im_ref[...] = jax.lax.dot_general(
            wm_ref[...], x,
            dimension_numbers=(((1,), (1,)), ((), ())),
            preferred_element_type=jnp.float32)                                # (1, M)

    stage(x2_ref, w2_ref, wm2_ref, p2_ref, v2_ref, im2_ref, hws[0])
    stage(x3_ref, w3_ref, wm3_ref, p3_ref, v3_ref, im3_ref, hws[1])
    stage(x4_ref, w4_ref, wm4_ref, p4_ref, v4_ref, im4_ref, hws[2])


def transfer_stages(feats_nhwc, weights_bf16, wmean_rows_bf16):
    """Fused Transfer stages: conv_k + relu + gap_k and inter_k.mean(1) for k in {2,3,4}.

    feats_nhwc      : sequence of 3 arrays (N, H_k, W_k, Cin_k) float32
    weights_bf16    : sequence of 3 arrays (Cin_k, Cout)        bfloat16 (cast once at init)
    wmean_rows_bf16 : sequence of 3 arrays (1, Cin_k)           bfloat16 (mean over Cout)
    returns (v_2, v_3, v_4, [im_2, im_3, im_4])
    """
    N = feats_nhwc[0].shape[0]
    Cout = weights_bf16[0].shape[1]

    xs, pools, hws, spatial = [], [], [], []
    for f in feats_nhwc:
        n, h, w, c = f.shape
        hw = h * w
        hws.append(hw)
        spatial.append((h, w))
        xs.append(f.reshape(n * hw, c))  # stays f32; bf16 cast happens inside the kernel
        # Block-diagonal ones pooling matrix: compile-time constant, exact in bf16.
        pools.append(jnp.asarray(
            np.kron(np.eye(n, dtype=np.float32), np.ones((1, hw), np.float32)),
            dtype=jnp.bfloat16))

    kernel = functools.partial(_fused_transfer_kernel, hws=tuple(hws))

    out_shape = tuple(
        [jax.ShapeDtypeStruct((N, Cout), jnp.float32) for _ in range(3)]
        + [jax.ShapeDtypeStruct((1, N * hw), jnp.float32) for hw in hws]
    )

    args = []
    for x, wt, wm, p in zip(xs, weights_bf16, wmean_rows_bf16, pools):
        args.extend((x, wt, wm, p))

    # No grid: every ref is the full array resident in VMEM (~3 MiB total), so weights are
    # not double-buffered and a single kernel invocation covers all three stages.
    outs = pl.pallas_call(
        kernel,
        out_shape=out_shape,
        compiler_params=pltpu.CompilerParams(
            vmem_limit_bytes=32 * 1024 * 1024,   # explicit headroom (v5e default is 16 MiB)
        ),
    )(*args)

    v2, v3, v4 = outs[0], outs[1], outs[2]
    ims = [im.reshape(N, h, w) for im, (h, w) in zip(outs[3:], spatial)]
    return v2, v3, v4, ims


# ----------------------------------------------------------------------------
# Deterministic stand-in for ResNet152 backbone stages (plain-JAX glue).
# ----------------------------------------------------------------------------
def _standin_backbone_stage(img_nchw, out_ch, out_hw, key):
    """Avg-pools the NCHW image to (out_hw, out_hw) and projects 3 channels -> out_ch.

    Returns NHWC features (N, out_hw, out_hw, out_ch)."""
    N, C, H, W = img_nchw.shape
    f = H // out_hw
    pooled = img_nchw.reshape(N, C, out_hw, f, out_hw, f).mean(axis=(3, 5))  # (N, C, oh, ow)
    proj = jax.random.normal(key, (C, out_ch), jnp.float32) * 0.1
    return jnp.einsum("nchw,cd->nhwd", pooled, proj)                         # NHWC


def backbone_features(img_nchw):
    N, _, H, _ = img_nchw.shape
    keys = jax.random.split(jax.random.PRNGKey(1), len(STAGE_SPECS))
    return [
        _standin_backbone_stage(img_nchw, cin, H // stride, k)
        for (cin, stride), k in zip(STAGE_SPECS, keys)
    ]


@jax.jit
def _forward_impl(img, weights_bf16, wmean_rows_bf16):
    feats = backbone_features(img)
    return transfer_stages(feats, weights_bf16, wmean_rows_bf16)


# ----------------------------------------------------------------------------
# Transfer module (num_vis == 3 branch)
# ----------------------------------------------------------------------------
class TransferPallas:
    def __init__(self, hidden_size, key):
        self.hidden_size = hidden_size
        keys = jax.random.split(key, len(STAGE_SPECS))
        # conv_k weights: PyTorch (hidden, Cin, 1, 1) -> stored as (Cin, hidden)
        w_f32 = tuple(
            jax.random.normal(k, (cin, hidden_size), jnp.float32) * (2.0 / cin) ** 0.5
            for (cin, _), k in zip(STAGE_SPECS, keys)
        )
        # Cast to bf16 ONCE at init: weights dominate the kernel's HBM stream and a per-call
        # astype would roughly quadruple the necessary weight traffic.
        self.weights = tuple(w.astype(jnp.bfloat16) for w in w_f32)
        # inter.mean(channel) == x @ mean(w, axis=1): precompute the (1, Cin) mean row once.
        self.wmean_rows = tuple(
            jnp.mean(w, axis=1, keepdims=True).T.astype(jnp.bfloat16) for w in w_f32
        )

    def forward(self, img):
        # img: (N, 3, H, W) NCHW, matching the PyTorch module's input convention.
        return _forward_impl(img, self.weights, self.wmean_rows)


# ----------------------------------------------------------------------------
# Plain-JAX f32 reference for correctness checking
# ----------------------------------------------------------------------------
def _reference(feats_nhwc, weights_bf16):
    vs, ims = [], []
    for f, wt in zip(feats_nhwc, weights_bf16):
        n, h, w, c = f.shape
        x = f.reshape(n, h * w, c)
        inter = jnp.einsum("nmc,cd->nmd", x, wt.astype(jnp.float32),
                           precision=jax.lax.Precision.HIGHEST)
        vs.append(jnp.mean(jnp.maximum(inter, 0.0), axis=1))       # v_k
        ims.append(jnp.mean(inter, axis=2).reshape(n, h, w))       # inter_k.mean(channel)
    return vs, ims


if __name__ == "__main__":
    key = jax.random.PRNGKey(0)
    k_img, k_params = jax.random.split(key)

    batch = 2
    hidden_size = 256
    img = jax.random.normal(k_img, (batch, 3, 64, 64), jnp.float32)  # NCHW like PyTorch

    model = TransferPallas(hidden_size, k_params)
    v_2, v_3, v_4, inters = model.forward(img)
    jax.block_until_ready((v_2, v_3, v_4, inters))

    assert v_2.shape == (batch, hidden_size)
    assert v_3.shape == (batch, hidden_size)
    assert v_4.shape == (batch, hidden_size)
    assert inters[0].shape == (batch, 2, 2)    # stage of 2048 ch @ stride 32
    assert inters[1].shape == (batch, 4, 4)    # stage of 1024 ch @ stride 16
    assert inters[2].shape == (batch, 8, 8)    # stage of  512 ch @ stride  8

    # Correctness vs. plain-JAX f32 reference (bf16 kernel inputs -> ~1e-3 relative error).
    feats = backbone_features(img)
    ref_vs, ref_ims = _reference(feats, model.weights)
    for got, ref in zip((v_2, v_3, v_4, *inters), (*ref_vs, *ref_ims)):
        rel_err = jnp.max(jnp.abs(got - ref)) / (jnp.max(jnp.abs(ref)) + 1e-6)
        assert float(rel_err) < 5e-2, f"mismatch: relative error {float(rel_err)}"

    print("KERNEL_OK")
</pallas_src>

<mosaic_0001>
module attributes {stable_mosaic.version = 11 : i64} {
  func.func @_fused_transfer_kernel(%arg0: memref<8x2048xf32, #tpu.memory_space<vmem>>, %arg1: memref<2048x256xbf16, #tpu.memory_space<vmem>>, %arg2: memref<1x2048xbf16, #tpu.memory_space<vmem>>, %arg3: memref<2x8xbf16, #tpu.memory_space<vmem>>, %arg4: memref<32x1024xf32, #tpu.memory_space<vmem>>, %arg5: memref<1024x256xbf16, #tpu.memory_space<vmem>>, %arg6: memref<1x1024xbf16, #tpu.memory_space<vmem>>, %arg7: memref<2x32xbf16, #tpu.memory_space<vmem>>, %arg8: memref<128x512xf32, #tpu.memory_space<vmem>>, %arg9: memref<512x256xbf16, #tpu.memory_space<vmem>>, %arg10: memref<1x512xbf16, #tpu.memory_space<vmem>>, %arg11: memref<2x128xbf16, #tpu.memory_space<vmem>>, %arg12: memref<2x256xf32, #tpu.memory_space<vmem>>, %arg13: memref<2x256xf32, #tpu.memory_space<vmem>>, %arg14: memref<2x256xf32, #tpu.memory_space<vmem>>, %arg15: memref<1x8xf32, #tpu.memory_space<vmem>>, %arg16: memref<1x32xf32, #tpu.memory_space<vmem>>, %arg17: memref<1x128xf32, #tpu.memory_space<vmem>>) attributes {dimension_semantics = [], scalar_prefetch = 0 : i64, scratch_operands = 0 : i64, tpu.core_type = #tpu.core_type<tc>} {
    %c0 = arith.constant 0 : index
    %c0_0 = arith.constant 0 : index
    %0 = vector.load %arg0[%c0, %c0_0] : memref<8x2048xf32, #tpu.memory_space<vmem>>, vector<8x2048xf32>
    %1 = arith.truncf %0 : vector<8x2048xf32> to vector<8x2048xbf16>
    %c0_1 = arith.constant 0 : index
    %c0_2 = arith.constant 0 : index
    %2 = vector.load %arg1[%c0_1, %c0_2] : memref<2048x256xbf16, #tpu.memory_space<vmem>>, vector<2048x256xbf16>
    %cst = arith.constant dense<0.000000e+00> : vector<8x256xf32>
    %3 = tpu.matmul %1, %2, %cst {dimension_numbers = #tpu.dot_dimension_numbers<[1], [0], [0], [1], [0, 0, 1, 1], [], []>} : vector<8x2048xbf16>, vector<2048x256xbf16>, vector<8x256xf32> -> vector<8x256xf32>
    %cst_3 = arith.constant 0.000000e+00 : f32
    %4 = vector.broadcast %cst_3 : f32 to vector<8x256xf32>
    %5 = arith.maximumf %3, %4 : vector<8x256xf32>
    %6 = arith.truncf %5 : vector<8x256xf32> to vector<8x256xbf16>
    %c0_4 = arith.constant 0 : index
    %c0_5 = arith.constant 0 : index
    %7 = vector.load %arg3[%c0_4, %c0_5] : memref<2x8xbf16, #tpu.memory_space<vmem>>, vector<2x8xbf16>
    %cst_6 = arith.constant dense<0.000000e+00> : vector<2x256xf32>
    %8 = tpu.matmul %7, %6, %cst_6 {dimension_numbers = #tpu.dot_dimension_numbers<[1], [0], [0], [1], [0, 0, 1, 1], [], []>} : vector<2x8xbf16>, vector<8x256xbf16>, vector<2x256xf32> -> vector<2x256xf32>
    %cst_7 = arith.constant 2.500000e-01 : f32
    %9 = vector.broadcast %cst_7 : f32 to vector<2x256xf32>
    %10 = arith.mulf %8, %9 : vector<2x256xf32>
    %c0_8 = arith.constant 0 : index
    %c0_9 = arith.constant 0 : index
    %11 = vector.load %arg12[%c0_8, %c0_9] : memref<2x256xf32, #tpu.memory_space<vmem>>, vector<2x256xf32>
    tpu.vector_store %arg12[%c0_8, %c0_9], %10 {strides = array<i32>} : memref<2x256xf32, #tpu.memory_space<vmem>>, vector<2x256xf32>,
    %c0_10 = arith.constant 0 : index
    %c0_11 = arith.constant 0 : index
    %12 = vector.load %arg2[%c0_10, %c0_11] : memref<1x2048xbf16, #tpu.memory_space<vmem>>, vector<1x2048xbf16>
    %cst_12 = arith.constant dense<0.000000e+00> : vector<1x8xf32>
    %13 = tpu.matmul %12, %1, %cst_12 {dimension_numbers = #tpu.dot_dimension_numbers<[1], [1], [0], [0], [0, 0, 1, 0], [], []>} : vector<1x2048xbf16>, vector<8x2048xbf16>, vector<1x8xf32> -> vector<1x8xf32>
    %c0_13 = arith.constant 0 : index
    %c0_14 = arith.constant 0 : index
    %14 = vector.load %arg15[%c0_13, %c0_14] : memref<1x8xf32, #tpu.memory_space<vmem>>, vector<1x8xf32>
    tpu.vector_store %arg15[%c0_13, %c0_14], %13 {strides = array<i32>} : memref<1x8xf32, #tpu.memory_space<vmem>>, vector<1x8xf32>,
    %c0_15 = arith.constant 0 : index
    %c0_16 = arith.constant 0 : index
    %15 = vector.load %arg4[%c0_15, %c0_16] : memref<32x1024xf32, #tpu.memory_space<vmem>>, vector<32x1024xf32>
    %16 = arith.truncf %15 : vector<32x1024xf32> to vector<32x1024xbf16>
    %c0_17 = arith.constant 0 : index
    %c0_18 = arith.constant 0 : index
    %17 = vector.load %arg5[%c0_17, %c0_18] : memref<1024x256xbf16, #tpu.memory_space<vmem>>, vector<1024x256xbf16>
    %cst_19 = arith.constant dense<0.000000e+00> : vector<32x256xf32>
    %18 = tpu.matmul %16, %17, %cst_19 {dimension_numbers = #tpu.dot_dimension_numbers<[1], [0], [0], [1], [0, 0, 1, 1], [], []>} : vector<32x1024xbf16>, vector<1024x256xbf16>, vector<32x256xf32> -> vector<32x256xf32>
    %cst_20 = arith.constant 0.000000e+00 : f32
    %19 = vector.broadcast %cst_20 : f32 to vector<32x256xf32>
    %20 = arith.maximumf %18, %19 : vector<32x256xf32>
    %21 = arith.truncf %20 : vector<32x256xf32> to vector<32x256xbf16>
    %c0_21 = arith.constant 0 : index
    %c0_22 = arith.constant 0 : index
    %22 = vector.load %arg7[%c0_21, %c0_22] : memref<2x32xbf16, #tpu.memory_space<vmem>>, vector<2x32xbf16>
    %cst_23 = arith.constant dense<0.000000e+00> : vector<2x256xf32>
    %23 = tpu.matmul %22, %21, %cst_23 {dimension_numbers = #tpu.dot_dimension_numbers<[1], [0], [0], [1], [0, 0, 1, 1], [], []>} : vector<2x32xbf16>, vector<32x256xbf16>, vector<2x256xf32> -> vector<2x256xf32>
    %cst_24 = arith.constant 6.250000e-02 : f32
    %24 = vector.broadcast %cst_24 : f32 to vector<2x256xf32>
    %25 = arith.mulf %23, %24 : vector<2x256xf32>
    %c0_25 = arith.constant 0 : index
    %c0_26 = arith.constant 0 : index
    %26 = vector.load %arg13[%c0_25, %c0_26] : memref<2x256xf32, #tpu.memory_space<vmem>>, vector<2x256xf32>
    tpu.vector_store %arg13[%c0_25, %c0_26], %25 {strides = array<i32>} : memref<2x256xf32, #tpu.memory_space<vmem>>, vector<2x256xf32>,
    %c0_27 = arith.constant 0 : index
    %c0_28 = arith.constant 0 : index
    %27 = vector.load %arg6[%c0_27, %c0_28] : memref<1x1024xbf16, #tpu.memory_space<vmem>>, vector<1x1024xbf16>
    %cst_29 = arith.constant dense<0.000000e+00> : vector<1x32xf32>
    %28 = tpu.matmul %27, %16, %cst_29 {dimension_numbers = #tpu.dot_dimension_numbers<[1], [1], [0], [0], [0, 0, 1, 0], [], []>} : vector<1x1024xbf16>, vector<32x1024xbf16>, vector<1x32xf32> -> vector<1x32xf32>
    %c0_30 = arith.constant 0 : index
    %c0_31 = arith.constant 0 : index
    %29 = vector.load %arg16[%c0_30, %c0_31] : memref<1x32xf32, #tpu.memory_space<vmem>>, vector<1x32xf32>
    tpu.vector_store %arg16[%c0_30, %c0_31], %28 {strides = array<i32>} : memref<1x32xf32, #tpu.memory_space<vmem>>, vector<1x32xf32>,
    %c0_32 = arith.constant 0 : index
    %c0_33 = arith.constant 0 : index
    %30 = vector.load %arg8[%c0_32, %c0_33] : memref<128x512xf32, #tpu.memory_space<vmem>>, vector<128x512xf32>
    %31 = arith.truncf %30 : vector<128x512xf32> to vector<128x512xbf16>
    %c0_34 = arith.constant 0 : index
    %c0_35 = arith.constant 0 : index
    %32 = vector.load %arg9[%c0_34, %c0_35] : memref<512x256xbf16, #tpu.memory_space<vmem>>, vector<512x256xbf16>
    %cst_36 = arith.constant dense<0.000000e+00> : vector<128x256xf32>
    %33 = tpu.matmul %31, %32, %cst_36 {dimension_numbers = #tpu.dot_dimension_numbers<[1], [0], [0], [1], [0, 0, 1, 1], [], []>} : vector<128x512xbf16>, vector<512x256xbf16>, vector<128x256xf32> -> vector<128x256xf32>
    %cst_37 = arith.constant 0.000000e+00 : f32
    %34 = vector.broadcast %cst_37 : f32 to vector<128x256xf32>
    %35 = arith.maximumf %33, %34 : vector<128x256xf32>
    %36 = arith.truncf %35 : vector<128x256xf32> to vector<128x256xbf16>
    %c0_38 = arith.constant 0 : index
    %c0_39 = arith.constant 0 : index
    %37 = vector.load %arg11[%c0_38, %c0_39] : memref<2x128xbf16, #tpu.memory_space<vmem>>, vector<2x128xbf16>
    %cst_40 = arith.constant dense<0.000000e+00> : vector<2x256xf32>
    %38 = tpu.matmul %37, %36, %cst_40 {dimension_numbers = #tpu.dot_dimension_numbers<[1], [0], [0], [1], [0, 0, 1, 1], [], []>} : vector<2x128xbf16>, vector<128x256xbf16>, vector<2x256xf32> -> vector<2x256xf32>
    %cst_41 = arith.constant 1.562500e-02 : f32
    %39 = vector.broadcast %cst_41 : f32 to vector<2x256xf32>
    %40 = arith.mulf %38, %39 : vector<2x256xf32>
    %c0_42 = arith.constant 0 : index
    %c0_43 = arith.constant 0 : index
    %41 = vector.load %arg14[%c0_42, %c0_43] : memref<2x256xf32, #tpu.memory_space<vmem>>, vector<2x256xf32>
    tpu.vector_store %arg14[%c0_42, %c0_43], %40 {strides = array<i32>} : memref<2x256xf32, #tpu.memory_space<vmem>>, vector<2x256xf32>,
    %c0_44 = arith.constant 0 : index
    %c0_45 = arith.constant 0 : index
    %42 = vector.load %arg10[%c0_44, %c0_45] : memref<1x512xbf16, #tpu.memory_space<vmem>>, vector<1x512xbf16>
    %cst_46 = arith.constant dense<0.000000e+00> : vector<1x128xf32>
    %43 = tpu.matmul %42, %31, %cst_46 {dimension_numbers = #tpu.dot_dimension_numbers<[1], [1], [0], [0], [0, 0, 1, 0], [], []>} : vector<1x512xbf16>, vector<128x512xbf16>, vector<1x128xf32> -> vector<1x128xf32>
    %c0_47 = arith.constant 0 : index
    %c0_48 = arith.constant 0 : index
    %44 = vector.load %arg17[%c0_47, %c0_48] : memref<1x128xf32, #tpu.memory_space<vmem>>, vector<1x128xf32>
    tpu.vector_store %arg17[%c0_47, %c0_48], %43 {strides = array<i32>} : memref<1x128xf32, #tpu.memory_space<vmem>>, vector<1x128xf32>,
    return
  }
}

</mosaic_0001>

<llo_original>
// kernel: _forward_impl.1
$region0: #{_forward_impl.1}
  #allocation0 [shape = 'u32[]', space=smem, size = 0x4, offset = 0x4, fixed_abs, tag = 'smem constant byte address 0x4 - core index']
  #allocation1 [shape = 'u32[144,128]{1,0:T(1,128)}', space=vmem, size = 0x12000, scoped, tag = 'internal scratch']
  %s0 = inlined_call_operand.vmem [shape: f32[8,2048], index: 0, kind: input, shape index: {}]
  %s1 = inlined_call_operand.vmem [shape: bf16[2048,256], index: 1, kind: input, shape index: {}]
  %s2 = inlined_call_operand.vmem [shape: bf16[1,2048], index: 2, kind: input, shape index: {}]
  %s3 = inlined_call_operand.vmem [shape: bf16[2,8], index: 3, kind: input, shape index: {}]
  %s4 = inlined_call_operand.vmem [shape: f32[32,1024], index: 4, kind: input, shape index: {}]
  %s5 = inlined_call_operand.vmem [shape: bf16[1024,256], index: 5, kind: input, shape index: {}]
  %s6 = inlined_call_operand.vmem [shape: bf16[1,1024], index: 6, kind: input, shape index: {}]
  %s7 = inlined_call_operand.vmem [shape: bf16[2,32], index: 7, kind: input, shape index: {}]
  %s8 = inlined_call_operand.vmem [shape: f32[128,512], index: 8, kind: input, shape index: {}]
  %s9 = inlined_call_operand.vmem [shape: bf16[512,256], index: 9, kind: input, shape index: {}]
  %s10 = inlined_call_operand.vmem [shape: bf16[1,512], index: 10, kind: input, shape index: {}]
  %s11 = inlined_call_operand.vmem [shape: bf16[2,128], index: 11, kind: input, shape index: {}]
  %s12 = inlined_call_operand.hbm [shape: f32[2,256], index: 12, kind: output, shape index: {0}]
  %s13 = inlined_call_operand.hbm [shape: f32[2,256], index: 13, kind: output, shape index: {1}]
  %s14 = inlined_call_operand.hbm [shape: f32[2,256], index: 14, kind: output, shape index: {2}]
  %s15 = inlined_call_operand.vmem [shape: f32[1,8], index: 15, kind: output, shape index: {3}]
  %s16 = inlined_call_operand.vmem [shape: f32[1,32], index: 16, kind: output, shape index: {4}]
  %s17 = inlined_call_operand.vmem [shape: f32[1,128], index: 17, kind: output, shape index: {5}]
  %18 = xla_tuple %s12, %s13, %s14, %s15, %s16, %s17
  %s19 = sld [smem:[#allocation0]]
  $region98: #{_forward_impl.1} parent=0
    _
  %s21 = ssub.s32 1, %s19
  %s22 = scalar_select 0, %s21, %s19
  $region1: #{_forward_impl.1} parent=0
    #allocation2 [shape = 'u8[2048]{0}', space=vmem, size = 0x800, scoped, tag = 'output window, operand 0, single buffered']
    #allocation3 [shape = 's32[1]{0}', space=sflag, size = 0x4, scoped, tag = 'scoped memory for _forward_impl.1']
    #allocation4 [shape = 'u8[2048]{0}', space=vmem, size = 0x800, scoped, tag = 'output window, operand 1, single buffered']
    #allocation5 [shape = 's32[1]{0}', space=sflag, size = 0x4, scoped, tag = 'scoped memory for _forward_impl.1']
    #allocation6 [shape = 'u8[2048]{0}', space=vmem, size = 0x800, scoped, tag = 'output window, operand 2, single buffered']
    %23 = vsyncpa [#allocation3], 0
    %24 = vsyncpa [#allocation5], 0
    // Predicated region
    $region2: #{_forward_impl.1} parent=1 // pred_check
      _
    $region3: #{_forward_impl.1} parent=1 // pred_check_branch
      %26 = sbr.rel (0) target = $region5
    $region4: #{_forward_impl.1} parent=1 // pred_region
      _
    $region5: #{_forward_impl.1} parent=1 // pred_fallthru
      _
    // Predicated region
    $region6: #{_forward_impl.1} parent=1 // pred_check
      _
    $region7: #{_forward_impl.1} parent=1 // pred_check_branch
      %28 = sbr.rel (0) target = $region9
    $region8: #{_forward_impl.1} parent=1 // pred_region
      _
    $region9: #{_forward_impl.1} parent=1 // pred_fallthru
      _
    // Predicated region
    $region10: #{_forward_impl.1} parent=1 // pred_check
      _
    $region11: #{_forward_impl.1} parent=1 // pred_check_branch
      %30 = sbr.rel (0) target = $region13
    $region12: #{_forward_impl.1} parent=1 // pred_region
      _
    $region13: #{_forward_impl.1} parent=1 // pred_fallthru
      _
    // Predicated region
    $region14: #{_forward_impl.1} parent=1 // pred_check
      _
    $region15: #{_forward_impl.1} parent=1 // pred_check_branch
      %32 = sbr.rel (0) target = $region17
    $region16: #{_forward_impl.1} parent=1 // pred_region
      _
    $region17: #{_forward_impl.1} parent=1 // pred_fallthru
      _
    // Predicated region
    $region18: #{_forward_impl.1} parent=1 // pred_check
      _
    $region19: #{_forward_impl.1} parent=1 // pred_check_branch
      %34 = sbr.rel (0) target = $region21
    $region20: #{_forward_impl.1} parent=1 // pred_region
      _
    $region21: #{_forward_impl.1} parent=1 // pred_fallthru
      _
    // Predicated region
    $region22: #{_forward_impl.1} parent=1 // pred_check
      _
    $region23: #{_forward_impl.1} parent=1 // pred_check_branch
      %36 = sbr.rel (0) target = $region25
    $region24: #{_forward_impl.1} parent=1 // pred_region
      _
    $region25: #{_forward_impl.1} parent=1 // pred_fallthru
      _
    // Predicated region
    $region26: #{_forward_impl.1} parent=1 // pred_check
      _
    $region27: #{_forward_impl.1} parent=1 // pred_check_branch
      %38 = sbr.rel (0) target = $region29
    $region28: #{_forward_impl.1} parent=1 // pred_region
      _
    $region29: #{_forward_impl.1} parent=1 // pred_fallthru
      _
    // Predicated region
    $region30: #{_forward_impl.1} parent=1 // pred_check
      _
    $region31: #{_forward_impl.1} parent=1 // pred_check_branch
      %40 = sbr.rel (0) target = $region33
    $region32: #{_forward_impl.1} parent=1 // pred_region
      _
    $region33: #{_forward_impl.1} parent=1 // pred_fallthru
      _
    // Predicated region
    $region34: #{_forward_impl.1} parent=1 // pred_check
      _
    $region35: #{_forward_impl.1} parent=1 // pred_check_branch
      %42 = sbr.rel (0) target = $region37
    $region36: #{_forward_impl.1} parent=1 // pred_region
      _
    $region37: #{_forward_impl.1} parent=1 // pred_fallthru
      _
    // Predicated region
    $region38: #{_forward_impl.1} parent=1 // pred_check
      _
    $region39: #{_forward_impl.1} parent=1 // pred_check_branch
      %44 = sbr.rel (0) target = $region41
    $region40: #{_forward_impl.1} parent=1 // pred_region
      _
    $region41: #{_forward_impl.1} parent=1 // pred_fallthru
      _
    // Predicated region
    $region42: #{_forward_impl.1} parent=1 // pred_check
      _
    $region43: #{_forward_impl.1} parent=1 // pred_check_branch
      %46 = sbr.rel (0) target = $region45
    $region44: #{_forward_impl.1} parent=1 // pred_region
      _
    $region45: #{_forward_impl.1} parent=1 // pred_fallthru
      _
    // Predicated region
    $region46: #{_forward_impl.1} parent=1 // pred_check
      _
    $region47: #{_forward_impl.1} parent=1 // pred_check_branch
      %48 = sbr.rel (0) target = $region49
    $region48: #{_forward_impl.1} parent=1 // pred_region
      _
    $region49: #{_forward_impl.1} parent=1 // pred_fallthru
      _
    %v50 = vld [vmem:[%s0] sm:$0xff]
    %v51 = vld [vmem:[%s0 + $0x8] sm:$0xff]
    %v52 = vld [vmem:[%s0 + $0x10] sm:$0xff]
    %v53 = vld [vmem:[%s0 + $0x18] sm:$0xff]
    %v54 = vld [vmem:[%s0 + $0x20] sm:$0xff]
    %v55 = vld [vmem:[%s0 + $0x28] sm:$0xff]
    %v56 = vld [vmem:[%s0 + $0x30] sm:$0xff]
    %v57 = vld [vmem:[%s0 + $0x38] sm:$0xff]
    %v58 = vld [vmem:[%s0 + $0x40] sm:$0xff]
    %v59 = vld [vmem:[%s0 + $0x48] sm:$0xff]
    %v60 = vld [vmem:[%s0 + $0x50] sm:$0xff]
    %v61 = vld [vmem:[%s0 + $0x58] sm:$0xff]
    %v62 = vld [vmem:[%s0 + $0x60] sm:$0xff]
    %v63 = vld [vmem:[%s0 + $0x68] sm:$0xff]
    %v64 = vld [vmem:[%s0 + $0x70] sm:$0xff]
    %v65 = vld [vmem:[%s0 + $0x78] sm:$0xff]
    %v66 = vpack.c.bf16 %v50, %v50
    %v67 = vpack.c.bf16 %v51, %v51
    %v68 = vpack.c.bf16 %v52, %v52
    %v69 = vpack.c.bf16 %v53, %v53
    %v70 = vpack.c.bf16 %v54, %v54
    %v71 = vpack.c.bf16 %v55, %v55
    %v72 = vpack.c.bf16 %v56, %v56
    %v73 = vpack.c.bf16 %v57, %v57
    %v74 = vpack.c.bf16 %v58, %v58
    %v75 = vpack.c.bf16 %v59, %v59
    %v76 = vpack.c.bf16 %v60, %v60
    %v77 = vpack.c.bf16 %v61, %v61
    %v78 = vpack.c.bf16 %v62, %v62
    %v79 = vpack.c.bf16 %v63, %v63
    %v80 = vpack.c.bf16 %v64, %v64
    %v81 = vpack.c.bf16 %v65, %v65
    %v82 = vld [vmem:[%s1] sm:$0xff]
    %v83 = vld [vmem:[%s1 + $0x8] sm:$0xff]
    %v84 = vld [vmem:[%s1 + $0x10] sm:$0xff]
    %v85 = vld [vmem:[%s1 + $0x18] sm:$0xff]
    %v86 = vld [vmem:[%s1 + $0x20] sm:$0xff]
    %v87 = vld [vmem:[%s1 + $0x28] sm:$0xff]
    %v88 = vld [vmem:[%s1 + $0x30] sm:$0xff]
    %v89 = vld [vmem:[%s1 + $0x38] sm:$0xff]
    %v90 = vld [vmem:[%s1 + $0x40] sm:$0xff]
    %v91 = vld [vmem:[%s1 + $0x48] sm:$0xff]
    %v92 = vld [vmem:[%s1 + $0x50] sm:$0xff]
    %v93 = vld [vmem:[%s1 + $0x58] sm:$0xff]
    %v94 = vld [vmem:[%s1 + $0x60] sm:$0xff]
    %v95 = vld [vmem:[%s1 + $0x68] sm:$0xff]
    %v96 = vld [vmem:[%s1 + $0x70] sm:$0xff]
    %v97 = vld [vmem:[%s1 + $0x78] sm:$0xff]
    %v98 = vld [vmem:[%s1 + $0x80] sm:$0xff]
    %v99 = vld [vmem:[%s1 + $0x88] sm:$0xff]
    %v100 = vld [vmem:[%s1 + $0x90] sm:$0xff]
    %v101 = vld [vmem:[%s1 + $0x98] sm:$0xff]
    %v102 = vld [vmem:[%s1 + $0xa0] sm:$0xff]
    %v103 = vld [vmem:[%s1 + $0xa8] sm:$0xff]
    %v104 = vld [vmem:[%s1 + $0xb0] sm:$0xff]
    %v105 = vld [vmem:[%s1 + $0xb8] sm:$0xff]
    %v106 = vld [vmem:[%s1 + $0xc0] sm:$0xff]
    %v107 = vld [vmem:[%s1 + $0xc8] sm:$0xff]
    %v108 = vld [vmem:[%s1 + $0xd0] sm:$0xff]
    %v109 = vld [vmem:[%s1 + $0xd8] sm:$0xff]
    %v110 = vld [vmem:[%s1 + $0xe0] sm:$0xff]
    %v111 = vld [vmem:[%s1 + $0xe8] sm:$0xff]
    %v112 = vld [vmem:[%s1 + $0xf0] sm:$0xff]
    %v113 = vld [vmem:[%s1 + $0xf8] sm:$0xff]
    %v114 = vld [vmem:[%s1 + $0x100] sm:$0xff]
    %v115 = vld [vmem:[%s1 + $0x108] sm:$0xff]
    %v116 = vld [vmem:[%s1 + $0x110] sm:$0xff]
    %v117 = vld [vmem:[%s1 + $0x118] sm:$0xff]
    %v118 = vld [vmem:[%s1 + $0x120] sm:$0xff]
    %v119 = vld [vmem:[%s1 + $0x128] sm:$0xff]
    %v120 = vld [vmem:[%s1 + $0x130] sm:$0xff]
    %v121 = vld [vmem:[%s1 + $0x138] sm:$0xff]
    %v122 = vld [vmem:[%s1 + $0x140] sm:$0xff]
    %v123 = vld [vmem:[%s1 + $0x148] sm:$0xff]
    %v124 = vld [vmem:[%s1 + $0x150] sm:$0xff]
    %v125 = vld [vmem:[%s1 + $0x158] sm:$0xff]
    %v126 = vld [vmem:[%s1 + $0x160] sm:$0xff]
    %v127 = vld [vmem:[%s1 + $0x168] sm:$0xff]
    %v128 = vld [vmem:[%s1 + $0x170] sm:$0xff]
    %v129 = vld [vmem:[%s1 + $0x178] sm:$0xff]
    %v130 = vld [vmem:[%s1 + $0x180] sm:$0xff]
    %v131 = vld [vmem:[%s1 + $0x188] sm:$0xff]
    %v132 = vld [vmem:[%s1 + $0x190] sm:$0xff]
    %v133 = vld [vmem:[%s1 + $0x198] sm:$0xff]
    %v134 = vld [vmem:[%s1 + $0x1a0] sm:$0xff]
    %v135 = vld [vmem:[%s1 + $0x1a8] sm:$0xff]
    %v136 = vld [vmem:[%s1 + $0x1b0] sm:$0xff]
    %v137 = vld [vmem:[%s1 + $0x1b8] sm:$0xff]
    %v138 = vld [vmem:[%s1 + $0x1c0] sm:$0xff]
    %v139 = vld [vmem:[%s1 + $0x1c8] sm:$0xff]
    %v140 = vld [vmem:[%s1 + $0x1d0] sm:$0xff]
    %v141 = vld [vmem:[%s1 + $0x1d8] sm:$0xff]
    %v142 = vld [vmem:[%s1 + $0x1e0] sm:$0xff]
    %v143 = vld [vmem:[%s1 + $0x1e8] sm:$0xff]
    %v144 = vld [vmem:[%s1 + $0x1f0] sm:$0xff]
    %v145 = vld [vmem:[%s1 + $0x1f8] sm:$0xff]
    %v146 = vld [vmem:[%s1 + $0x200] sm:$0xff]
    %v147 = vld [vmem:[%s1 + $0x208] sm:$0xff]
    %v148 = vld [vmem:[%s1 + $0x210] sm:$0xff]
    %v149 = vld [vmem:[%s1 + $0x218] sm:$0xff]
    %v150 = vld [vmem:[%s1 + $0x220] sm:$0xff]
    %v151 = vld [vmem:[%s1 + $0x228] sm:$0xff]
    %v152 = vld [vmem:[%s1 + $0x230] sm:$0xff]
    %v153 = vld [vmem:[%s1 + $0x238] sm:$0xff]
    %v154 = vld [vmem:[%s1 + $0x240] sm:$0xff]
    %v155 = vld [vmem:[%s1 + $0x248] sm:$0xff]
    %v156 = vld [vmem:[%s1 + $0x250] sm:$0xff]
    %v157 = vld [vmem:[%s1 + $0x258] sm:$0xff]
    %v158 = vld [vmem:[%s1 + $0x260] sm:$0xff]
    %v159 = vld [vmem:[%s1 + $0x268] sm:$0xff]
    %v160 = vld [vmem:[%s1 + $0x270] sm:$0xff]
    %v161 = vld [vmem:[%s1 + $0x278] sm:$0xff]
    %v162 = vld [vmem:[%s1 + $0x280] sm:$0xff]
    %v163 = vld [vmem:[%s1 + $0x288] sm:$0xff]
    %v164 = vld [vmem:[%s1 + $0x290] sm:$0xff]
    %v165 = vld [vmem:[%s1 + $0x298] sm:$0xff]
    %v166 = vld [vmem:[%s1 + $0x2a0] sm:$0xff]
    %v167 = vld [vmem:[%s1 + $0x2a8] sm:$0xff]
    %v168 = vld [vmem:[%s1 + $0x2b0] sm:$0xff]
    %v169 = vld [vmem:[%s1 + $0x2b8] sm:$0xff]
    %v170 = vld [vmem:[%s1 + $0x2c0] sm:$0xff]
    %v171 = vld [vmem:[%s1 + $0x2c8] sm:$0xff]
    %v172 = vld [vmem:[%s1 + $0x2d0] sm:$0xff]
    %v173 = vld [vmem:[%s1 + $0x2d8] sm:$0xff]
    %v174 = vld [vmem:[%s1 + $0x2e0] sm:$0xff]
    %v175 = vld [vmem:[%s1 + $0x2e8] sm:$0xff]
    %v176 = vld [vmem:[%s1 + $0x2f0] sm:$0xff]
    %v177 = vld [vmem:[%s1 + $0x2f8] sm:$0xff]
    %v178 = vld [vmem:[%s1 + $0x300] sm:$0xff]
    %v179 = vld [vmem:[%s1 + $0x308] sm:$0xff]
    %v180 = vld [vmem:[%s1 + $0x310] sm:$0xff]
    %v181 = vld [vmem:[%s1 + $0x318] sm:$0xff]
    %v182 = vld [vmem:[%s1 + $0x320] sm:$0xff]
    %v183 = vld [vmem:[%s1 + $0x328] sm:$0xff]
    %v184 = vld [vmem:[%s1 + $0x330] sm:$0xff]
    %v185 = vld [vmem:[%s1 + $0x338] sm:$0xff]
    %v186 = vld [vmem:[%s1 + $0x340] sm:$0xff]
    %v187 = vld [vmem:[%s1 + $0x348] sm:$0xff]
    %v188 = vld [vmem:[%s1 + $0x350] sm:$0xff]
    %v189 = vld [vmem:[%s1 + $0x358] sm:$0xff]
    %v190 = vld [vmem:[%s1 + $0x360] sm:$0xff]
    %v191 = vld [vmem:[%s1 + $0x368] sm:$0xff]
    %v192 = vld [vmem:[%s1 + $0x370] sm:$0xff]
    %v193 = vld [vmem:[%s1 + $0x378] sm:$0xff]
    %v194 = vld [vmem:[%s1 + $0x380] sm:$0xff]
    %v195 = vld [vmem:[%s1 + $0x388] sm:$0xff]
    %v196 = vld [vmem:[%s1 + $0x390] sm:$0xff]
    %v197 = vld [vmem:[%s1 + $0x398] sm:$0xff]
    %v198 = vld [vmem:[%s1 + $0x3a0] sm:$0xff]
    %v199 = vld [vmem:[%s1 + $0x3a8] sm:$0xff]
    %v200 = vld [vmem:[%s1 + $0x3b0] sm:$0xff]
    %v201 = vld [vmem:[%s1 + $0x3b8] sm:$0xff]
    %v202 = vld [vmem:[%s1 + $0x3c0] sm:$0xff]
    %v203 = vld [vmem:[%s1 + $0x3c8] sm:$0xff]
    %v204 = vld [vmem:[%s1 + $0x3d0] sm:$0xff]
    %v205 = vld [vmem:[%s1 + $0x3d8] sm:$0xff]
    %v206 = vld [vmem:[%s1 + $0x3e0] sm:$0xff]
    %v207 = vld [vmem:[%s1 + $0x3e8] sm:$0xff]
    %v208 = vld [vmem:[%s1 + $0x3f0] sm:$0xff]
    %v209 = vld [vmem:[%s1 + $0x3f8] sm:$0xff]
    %v210 = vld [vmem:[%s1 + $0x400] sm:$0xff]
    %v211 = vld [vmem:[%s1 + $0x408] sm:$0xff]
    %v212 = vld [vmem:[%s1 + $0x410] sm:$0xff]
    %v213 = vld [vmem:[%s1 + $0x418] sm:$0xff]
    %v214 = vld [vmem:[%s1 + $0x420] sm:$0xff]
    %v215 = vld [vmem:[%s1 + $0x428] sm:$0xff]
    %v216 = vld [vmem:[%s1 + $0x430] sm:$0xff]
    %v217 = vld [vmem:[%s1 + $0x438] sm:$0xff]
    %v218 = vld [vmem:[%s1 + $0x440] sm:$0xff]
    %v219 = vld [vmem:[%s1 + $0x448] sm:$0xff]
    %v220 = vld [vmem:[%s1 + $0x450] sm:$0xff]
    %v221 = vld [vmem:[%s1 + $0x458] sm:$0xff]
    %v222 = vld [vmem:[%s1 + $0x460] sm:$0xff]
    %v223 = vld [vmem:[%s1 + $0x468] sm:$0xff]
    %v224 = vld [vmem:[%s1 + $0x470] sm:$0xff]
    %v225 = vld [vmem:[%s1 + $0x478] sm:$0xff]
    %v226 = vld [vmem:[%s1 + $0x480] sm:$0xff]
    %v227 = vld [vmem:[%s1 + $0x488] sm:$0xff]
    %v228 = vld [vmem:[%s1 + $0x490] sm:$0xff]
    %v229 = vld [vmem:[%s1 + $0x498] sm:$0xff]
    %v230 = vld [vmem:[%s1 + $0x4a0] sm:$0xff]
    %v231 = vld [vmem:[%s1 + $0x4a8] sm:$0xff]
    %v232 = vld [vmem:[%s1 + $0x4b0] sm:$0xff]
    %v233 = vld [vmem:[%s1 + $0x4b8] sm:$0xff]
    %v234 = vld [vmem:[%s1 + $0x4c0] sm:$0xff]
    %v235 = vld [vmem:[%s1 + $0x4c8] sm:$0xff]
    %v236 = vld [vmem:[%s1 + $0x4d0] sm:$0xff]
    %v237 = vld [vmem:[%s1 + $0x4d8] sm:$0xff]
    %v238 = vld [vmem:[%s1 + $0x4e0] sm:$0xff]
    %v239 = vld [vmem:[%s1 + $0x4e8] sm:$0xff]
    %v240 = vld [vmem:[%s1 + $0x4f0] sm:$0xff]
    %v241 = vld [vmem:[%s1 + $0x4f8] sm:$0xff]
    %v242 = vld [vmem:[%s1 + $0x500] sm:$0xff]
    %v243 = vld [vmem:[%s1 + $0x508] sm:$0xff]
    %v244 = vld [vmem:[%s1 + $0x510] sm:$0xff]
    %v245 = vld [vmem:[%s1 + $0x518] sm:$0xff]
    %v246 = vld [vmem:[%s1 + $0x520] sm:$0xff]
    %v247 = vld [vmem:[%s1 + $0x528] sm:$0xff]
    %v248 = vld [vmem:[%s1 + $0x530] sm:$0xff]
    %v249 = vld [vmem:[%s1 + $0x538] sm:$0xff]
    %v250 = vld [vmem:[%s1 + $0x540] sm:$0xff]
    %v251 = vld [vmem:[%s1 + $0x548] sm:$0xff]
    %v252 = vld [vmem:[%s1 + $0x550] sm:$0xff]
    %v253 = vld [vmem:[%s1 + $0x558] sm:$0xff]
    %v254 = vld [vmem:[%s1 + $0x560] sm:$0xff]
    %v255 = vld [vmem:[%s1 + $0x568] sm:$0xff]
    %v256 = vld [vmem:[%s1 + $0x570] sm:$0xff]
    %v257 = vld [vmem:[%s1 + $0x578] sm:$0xff]
    %v258 = vld [vmem:[%s1 + $0x580] sm:$0xff]
    %v259 = vld [vmem:[%s1 + $0x588] sm:$0xff]
    %v260 = vld [vmem:[%s1 + $0x590] sm:$0xff]
    %v261 = vld [vmem:[%s1 + $0x598] sm:$0xff]
    %v262 = vld [vmem:[%s1 + $0x5a0] sm:$0xff]
    %v263 = vld [vmem:[%s1 + $0x5a8] sm:$0xff]
    %v264 = vld [vmem:[%s1 + $0x5b0] sm:$0xff]
    %v265 = vld [vmem:[%s1 + $0x5b8] sm:$0xff]
    %v266 = vld [vmem:[%s1 + $0x5c0] sm:$0xff]
    %v267 = vld [vmem:[%s1 + $0x5c8] sm:$0xff]
    %v268 = vld [vmem:[%s1 + $0x5d0] sm:$0xff]
    %v269 = vld [vmem:[%s1 + $0x5d8] sm:$0xff]
    %v270 = vld [vmem:[%s1 + $0x5e0] sm:$0xff]
    %v271 = vld [vmem:[%s1 + $0x5e8] sm:$0xff]
    %v272 = vld [vmem:[%s1 + $0x5f0] sm:$0xff]
    %v273 = vld [vmem:[%s1 + $0x5f8] sm:$0xff]
    %v274 = vld [vmem:[%s1 + $0x600] sm:$0xff]
    %v275 = vld [vmem:[%s1 + $0x608] sm:$0xff]
    %v276 = vld [vmem:[%s1 + $0x610] sm:$0xff]
    %v277 = vld [vmem:[%s1 + $0x618] sm:$0xff]
    %v278 = vld [vmem:[%s1 + $0x620] sm:$0xff]
    %v279 = vld [vmem:[%s1 + $0x628] sm:$0xff]
    %v280 = vld [vmem:[%s1 + $0x630] sm:$0xff]
    %v281 = vld [vmem:[%s1 + $0x638] sm:$0xff]
    %v282 = vld [vmem:[%s1 + $0x640] sm:$0xff]
    %v283 = vld [vmem:[%s1 + $0x648] sm:$0xff]
    %v284 = vld [vmem:[%s1 + $0x650] sm:$0xff]
    %v285 = vld [vmem:[%s1 + $0x658] sm:$0xff]
    %v286 = vld [vmem:[%s1 + $0x660] sm:$0xff]
    %v287 = vld [vmem:[%s1 + $0x668] sm:$0xff]
    %v288 = vld [vmem:[%s1 + $0x670] sm:$0xff]
    %v289 = vld [vmem:[%s1 + $0x678] sm:$0xff]
    %v290 = vld [vmem:[%s1 + $0x680] sm:$0xff]
    %v291 = vld [vmem:[%s1 + $0x688] sm:$0xff]
    %v292 = vld [vmem:[%s1 + $0x690] sm:$0xff]
    %v293 = vld [vmem:[%s1 + $0x698] sm:$0xff]
    %v294 = vld [vmem:[%s1 + $0x6a0] sm:$0xff]
    %v295 = vld [vmem:[%s1 + $0x6a8] sm:$0xff]
    %v296 = vld [vmem:[%s1 + $0x6b0] sm:$0xff]
    %v297 = vld [vmem:[%s1 + $0x6b8] sm:$0xff]
    %v298 = vld [vmem:[%s1 + $0x6c0] sm:$0xff]
    %v299 = vld [vmem:[%s1 + $0x6c8] sm:$0xff]
    %v300 = vld [vmem:[%s1 + $0x6d0] sm:$0xff]
    %v301 = vld [vmem:[%s1 + $0x6d8] sm:$0xff]
    %v302 = vld [vmem:[%s1 + $0x6e0] sm:$0xff]
    %v303 = vld [vmem:[%s1 + $0x6e8] sm:$0xff]
    %v304 = vld [vmem:[%s1 + $0x6f0] sm:$0xff]
    %v305 = vld [vmem:[%s1 + $0x6f8] sm:$0xff]
    %v306 = vld [vmem:[%s1 + $0x700] sm:$0xff]
    %v307 = vld [vmem:[%s1 + $0x708] sm:$0xff]
    %v308 = vld [vmem:[%s1 + $0x710] sm:$0xff]
    %v309 = vld [vmem:[%s1 + $0x718] sm:$0xff]
    %v310 = vld [vmem:[%s1 + $0x720] sm:$0xff]
    %v311 = vld [vmem:[%s1 + $0x728] sm:$0xff]
    %v312 = vld [vmem:[%s1 + $0x730] sm:$0xff]
    %v313 = vld [vmem:[%s1 + $0x738] sm:$0xff]
    %v314 = vld [vmem:[%s1 + $0x740] sm:$0xff]
    %v315 = vld [vmem:[%s1 + $0x748] sm:$0xff]
    %v316 = vld [vmem:[%s1 + $0x750] sm:$0xff]
    %v317 = vld [vmem:[%s1 + $0x758] sm:$0xff]
    %v318 = vld [vmem:[%s1 + $0x760] sm:$0xff]
    %v319 = vld [vmem:[%s1 + $0x768] sm:$0xff]
    %v320 = vld [vmem:[%s1 + $0x770] sm:$0xff]
    %v321 = vld [vmem:[%s1 + $0x778] sm:$0xff]
    %v322 = vld [vmem:[%s1 + $0x780] sm:$0xff]
    %v323 = vld [vmem:[%s1 + $0x788] sm:$0xff]
    %v324 = vld [vmem:[%s1 + $0x790] sm:$0xff]
    %v325 = vld [vmem:[%s1 + $0x798] sm:$0xff]
    %v326 = vld [vmem:[%s1 + $0x7a0] sm:$0xff]
    %v327 = vld [vmem:[%s1 + $0x7a8] sm:$0xff]
    %v328 = vld [vmem:[%s1 + $0x7b0] sm:$0xff]
    %v329 = vld [vmem:[%s1 + $0x7b8] sm:$0xff]
    %v330 = vld [vmem:[%s1 + $0x7c0] sm:$0xff]
    %v331 = vld [vmem:[%s1 + $0x7c8] sm:$0xff]
    %v332 = vld [vmem:[%s1 + $0x7d0] sm:$0xff]
    %v333 = vld [vmem:[%s1 + $0x7d8] sm:$0xff]
    %v334 = vld [vmem:[%s1 + $0x7e0] sm:$0xff]
    %v335 = vld [vmem:[%s1 + $0x7e8] sm:$0xff]
    %v336 = vld [vmem:[%s1 + $0x7f0] sm:$0xff]
    %v337 = vld [vmem:[%s1 + $0x7f8] sm:$0xff]
    %v594 = vunpack.c.l.b16 %v82
    %v595 = vunpack.c.h.b16 %v82
    %v596 = vunpack.c.l.b16 %v83
    %v597 = vunpack.c.h.b16 %v83
    %v598 = vunpack.c.l.b16 %v84
    %v599 = vunpack.c.h.b16 %v84
    %v600 = vunpack.c.l.b16 %v85
    %v601 = vunpack.c.h.b16 %v85
    %v602 = vunpack.c.l.b16 %v86
    %v603 = vunpack.c.h.b16 %v86
    %v604 = vunpack.c.l.b16 %v87
    %v605 = vunpack.c.h.b16 %v87
    %v606 = vunpack.c.l.b16 %v88
    %v607 = vunpack.c.h.b16 %v88
    %v608 = vunpack.c.l.b16 %v89
    %v609 = vunpack.c.h.b16 %v89
    %v610 = vunpack.c.l.b16 %v90
    %v611 = vunpack.c.h.b16 %v90
    %v612 = vunpack.c.l.b16 %v91
    %v613 = vunpack.c.h.b16 %v91
    %v614 = vunpack.c.l.b16 %v92
    %v615 = vunpack.c.h.b16 %v92
    %v616 = vunpack.c.l.b16 %v93
    %v617 = vunpack.c.h.b16 %v93
    %v618 = vunpack.c.l.b16 %v94
    %v619 = vunpack.c.h.b16 %v94
    %v620 = vunpack.c.l.b16 %v95
    %v621 = vunpack.c.h.b16 %v95
    %v622 = vunpack.c.l.b16 %v96
    %v623 = vunpack.c.h.b16 %v96
    %v624 = vunpack.c.l.b16 %v97
    %v625 = vunpack.c.h.b16 %v97
    %v626 = vunpack.c.l.b16 %v98
    %v627 = vunpack.c.h.b16 %v98
    %v628 = vunpack.c.l.b16 %v99
    %v629 = vunpack.c.h.b16 %v99
    %v630 = vunpack.c.l.b16 %v100
    %v631 = vunpack.c.h.b16 %v100
    %v632 = vunpack.c.l.b16 %v101
    %v633 = vunpack.c.h.b16 %v101
    %v634 = vunpack.c.l.b16 %v102
    %v635 = vunpack.c.h.b16 %v102
    %v636 = vunpack.c.l.b16 %v103
    %v637 = vunpack.c.h.b16 %v103
    %v638 = vunpack.c.l.b16 %v104
    %v639 = vunpack.c.h.b16 %v104
    %v640 = vunpack.c.l.b16 %v105
    %v641 = vunpack.c.h.b16 %v105
    %v642 = vunpack.c.l.b16 %v106
    %v643 = vunpack.c.h.b16 %v106
    %v644 = vunpack.c.l.b16 %v107
    %v645 = vunpack.c.h.b16 %v107
    %v646 = vunpack.c.l.b16 %v108
    %v647 = vunpack.c.h.b16 %v108
    %v648 = vunpack.c.l.b16 %v109
    %v649 = vunpack.c.h.b16 %v109
    %v650 = vunpack.c.l.b16 %v110
    %v651 = vunpack.c.h.b16 %v110
    %v652 = vunpack.c.l.b16 %v111
    %v653 = vunpack.c.h.b16 %v111
    %v654 = vunpack.c.l.b16 %v112
    %v655 = vunpack.c.h.b16 %v112
    %v656 = vunpack.c.l.b16 %v113
    %v657 = vunpack.c.h.b16 %v113
    %v658 = vunpack.c.l.b16 %v114
    %v659 = vunpack.c.h.b16 %v114
    %v660 = vunpack.c.l.b16 %v115
    %v661 = vunpack.c.h.b16 %v115
    %v662 = vunpack.c.l.b16 %v116
    %v663 = vunpack.c.h.b16 %v116
    %v664 = vunpack.c.l.b16 %v117
    %v665 = vunpack.c.h.b16 %v117
    %v666 = vunpack.c.l.b16 %v118
    %v667 = vunpack.c.h.b16 %v118
    %v668 = vunpack.c.l.b16 %v119
    %v669 = vunpack.c.h.b16 %v119
    %v670 = vunpack.c.l.b16 %v120
    %v671 = vunpack.c.h.b16 %v120
    %v672 = vunpack.c.l.b16 %v121
    %v673 = vunpack.c.h.b16 %v121
    %v674 = vunpack.c.l.b16 %v122
    %v675 = vunpack.c.h.b16 %v122
    %v676 = vunpack.c.l.b16 %v123
    %v677 = vunpack.c.h.b16 %v123
    %v678 = vunpack.c.l.b16 %v124
    %v679 = vunpack.c.h.b16 %v124
    %v680 = vunpack.c.l.b16 %v125
    %v681 = vunpack.c.h.b16 %v125
    %v682 = vunpack.c.l.b16 %v126
    %v683 = vunpack.c.h.b16 %v126
    %v684 = vunpack.c.l.b16 %v127
    %v685 = vunpack.c.h.b16 %v127
    %v686 = vunpack.c.l.b16 %v128
    %v687 = vunpack.c.h.b16 %v128
    %v688 = vunpack.c.l.b16 %v129
    %v689 = vunpack.c.h.b16 %v129
    %v690 = vunpack.c.l.b16 %v130
    %v691 = vunpack.c.h.b16 %v130
    %v692 = vunpack.c.l.b16 %v131
    %v693 = vunpack.c.h.b16 %v131
    %v694 = vunpack.c.l.b16 %v132
    %v695 = vunpack.c.h.b16 %v132
    %v696 = vunpack.c.l.b16 %v133
    %v697 = vunpack.c.h.b16 %v133
    %v698 = vunpack.c.l.b16 %v134
    %v699 = vunpack.c.h.b16 %v134
    %v700 = vunpack.c.l.b16 %v135
    %v701 = vunpack.c.h.b16 %v135
    %v702 = vunpack.c.l.b16 %v136
    %v703 = vunpack.c.h.b16 %v136
    %v704 = vunpack.c.l.b16 %v137
    %v705 = vunpack.c.h.b16 %v137
    %v706 = vunpack.c.l.b16 %v138
    %v707 = vunpack.c.h.b16 %v138
    %v708 = vunpack.c.l.b16 %v139
    %v709 = vunpack.c.h.b16 %v139
    %v710 = vunpack.c.l.b16 %v140
    %v711 = vunpack.c.h.b16 %v140
    %v712 = vunpack.c.l.b16 %v141
    %v713 = vunpack.c.h.b16 %v141
    %v714 = vunpack.c.l.b16 %v142
    %v715 = vunpack.c.h.b16 %v142
    %v716 = vunpack.c.l.b16 %v143
    %v717 = vunpack.c.h.b16 %v143
    %v718 = vunpack.c.l.b16 %v144
    %v719 = vunpack.c.h.b16 %v144
    %v720 = vunpack.c.l.b16 %v145
    %v721 = vunpack.c.h.b16 %v145
    %v722 = vunpack.c.l.b16 %v146
    %v723 = vunpack.c.h.b16 %v146
    %v724 = vunpack.c.l.b16 %v147
    %v725 = vunpack.c.h.b16 %v147
    %v726 = vunpack.c.l.b16 %v148
    %v727 = vunpack.c.h.b16 %v148
    %v728 = vunpack.c.l.b16 %v149
    %v729 = vunpack.c.h.b16 %v149
    %v730 = vunpack.c.l.b16 %v150
    %v731 = vunpack.c.h.b16 %v150
    %v732 = vunpack.c.l.b16 %v151
    %v733 = vunpack.c.h.b16 %v151
    %v734 = vunpack.c.l.b16 %v152
    %v735 = vunpack.c.h.b16 %v152
    %v736 = vunpack.c.l.b16 %v153
    %v737 = vunpack.c.h.b16 %v153
    %v738 = vunpack.c.l.b16 %v154
    %v739 = vunpack.c.h.b16 %v154
    %v740 = vunpack.c.l.b16 %v155
    %v741 = vunpack.c.h.b16 %v155
    %v742 = vunpack.c.l.b16 %v156
    %v743 = vunpack.c.h.b16 %v156
    %v744 = vunpack.c.l.b16 %v157
    %v745 = vunpack.c.h.b16 %v157
    %v746 = vunpack.c.l.b16 %v158
    %v747 = vunpack.c.h.b16 %v158
    %v748 = vunpack.c.l.b16 %v159
    %v749 = vunpack.c.h.b16 %v159
    %v750 = vunpack.c.l.b16 %v160
    %v751 = vunpack.c.h.b16 %v160
    %v752 = vunpack.c.l.b16 %v161
    %v753 = vunpack.c.h.b16 %v161
    %v754 = vunpack.c.l.b16 %v162
    %v755 = vunpack.c.h.b16 %v162
    %v756 = vunpack.c.l.b16 %v163
    %v757 = vunpack.c.h.b16 %v163
    %v758 = vunpack.c.l.b16 %v164
    %v759 = vunpack.c.h.b16 %v164
    %v760 = vunpack.c.l.b16 %v165
    %v761 = vunpack.c.h.b16 %v165
    %v762 = vunpack.c.l.b16 %v166
    %v763 = vunpack.c.h.b16 %v166
    %v764 = vunpack.c.l.b16 %v167
    %v765 = vunpack.c.h.b16 %v167
    %v766 = vunpack.c.l.b16 %v168
    %v767 = vunpack.c.h.b16 %v168
    %v768 = vunpack.c.l.b16 %v169
    %v769 = vunpack.c.h.b16 %v169
    %v770 = vunpack.c.l.b16 %v170
    %v771 = vunpack.c.h.b16 %v170
    %v772 = vunpack.c.l.b16 %v171
    %v773 = vunpack.c.h.b16 %v171
    %v774 = vunpack.c.l.b16 %v172
    %v775 = vunpack.c.h.b16 %v172
    %v776 = vunpack.c.l.b16 %v173
    %v777 = vunpack.c.h.b16 %v173
    %v778 = vunpack.c.l.b16 %v174
    %v779 = vunpack.c.h.b16 %v174
    %v780 = vunpack.c.l.b16 %v175
    %v781 = vunpack.c.h.b16 %v175
    %v782 = vunpack.c.l.b16 %v176
    %v783 = vunpack.c.h.b16 %v176
    %v784 = vunpack.c.l.b16 %v177
    %v785 = vunpack.c.h.b16 %v177
    %v786 = vunpack.c.l.b16 %v178
    %v787 = vunpack.c.h.b16 %v178
    %v788 = vunpack.c.l.b16 %v179
    %v789 = vunpack.c.h.b16 %v179
    %v790 = vunpack.c.l.b16 %v180
    %v791 = vunpack.c.h.b16 %v180
    %v792 = vunpack.c.l.b16 %v181
    %v793 = vunpack.c.h.b16 %v181
    %v794 = vunpack.c.l.b16 %v182
    %v795 = vunpack.c.h.b16 %v182
    %v796 = vunpack.c.l.b16 %v183
    %v797 = vunpack.c.h.b16 %v183
    %v798 = vunpack.c.l.b16 %v184
    %v799 = vunpack.c.h.b16 %v184
    %v800 = vunpack.c.l.b16 %v185
    %v801 = vunpack.c.h.b16 %v185
    %v802 = vunpack.c.l.b16 %v186
    %v803 = vunpack.c.h.b16 %v186
    %v804 = vunpack.c.l.b16 %v187
    %v805 = vunpack.c.h.b16 %v187
    %v806 = vunpack.c.l.b16 %v188
    %v807 = vunpack.c.h.b16 %v188
    %v808 = vunpack.c.l.b16 %v189
    %v809 = vunpack.c.h.b16 %v189
    %v810 = vunpack.c.l.b16 %v190
    %v811 = vunpack.c.h.b16 %v190
    %v812 = vunpack.c.l.b16 %v191
    %v813 = vunpack.c.h.b16 %v191
    %v814 = vunpack.c.l.b16 %v192
    %v815 = vunpack.c.h.b16 %v192
    %v816 = vunpack.c.l.b16 %v193
    %v817 = vunpack.c.h.b16 %v193
    %v818 = vunpack.c.l.b16 %v194
    %v819 = vunpack.c.h.b16 %v194
    %v820 = vunpack.c.l.b16 %v195
    %v821 = vunpack.c.h.b16 %v195
    %v822 = vunpack.c.l.b16 %v196
    %v823 = vunpack.c.h.b16 %v196
    %v824 = vunpack.c.l.b16 %v197
    %v825 = vunpack.c.h.b16 %v197
    %v826 = vunpack.c.l.b16 %v198
    %v827 = vunpack.c.h.b16 %v198
    %v828 = vunpack.c.l.b16 %v199
    %v829 = vunpack.c.h.b16 %v199
    %v830 = vunpack.c.l.b16 %v200
    %v831 = vunpack.c.h.b16 %v200
    %v832 = vunpack.c.l.b16 %v201
    %v833 = vunpack.c.h.b16 %v201
    %v834 = vunpack.c.l.b16 %v202
    %v835 = vunpack.c.h.b16 %v202
    %v836 = vunpack.c.l.b16 %v203
    %v837 = vunpack.c.h.b16 %v203
    %v838 = vunpack.c.l.b16 %v204
    %v839 = vunpack.c.h.b16 %v204
    %v840 = vunpack.c.l.b16 %v205
    %v841 = vunpack.c.h.b16 %v205
    %v842 = vunpack.c.l.b16 %v206
    %v843 = vunpack.c.h.b16 %v206
    %v844 = vunpack.c.l.b16 %v207
    %v845 = vunpack.c.h.b16 %v207
    %v846 = vunpack.c.l.b16 %v208
    %v847 = vunpack.c.h.b16 %v208
    %v848 = vunpack.c.l.b16 %v209
    %v849 = vunpack.c.h.b16 %v209
    %v850 = vunpack.c.l.b16 %v210
    %v851 = vunpack.c.h.b16 %v210
    %v852 = vunpack.c.l.b16 %v211
    %v853 = vunpack.c.h.b16 %v211
    %v854 = vunpack.c.l.b16 %v212
    %v855 = vunpack.c.h.b16 %v212
    %v856 = vunpack.c.l.b16 %v213
    %v857 = vunpack.c.h.b16 %v213
    %v858 = vunpack.c.l.b16 %v214
    %v859 = vunpack.c.h.b16 %v214
    %v860 = vunpack.c.l.b16 %v215
    %v861 = vunpack.c.h.b16 %v215
    %v862 = vunpack.c.l.b16 %v216
    %v863 = vunpack.c.h.b16 %v216
    %v864 = vunpack.c.l.b16 %v217
    %v865 = vunpack.c.h.b16 %v217
    %v866 = vunpack.c.l.b16 %v218
    %v867 = vunpack.c.h.b16 %v218
    %v868 = vunpack.c.l.b16 %v219
    %v869 = vunpack.c.h.b16 %v219
    %v870 = vunpack.c.l.b16 %v220
    %v871 = vunpack.c.h.b16 %v220
    %v872 = vunpack.c.l.b16 %v221
    %v873 = vunpack.c.h.b16 %v221
    %v874 = vunpack.c.l.b16 %v222
    %v875 = vunpack.c.h.b16 %v222
    %v876 = vunpack.c.l.b16 %v223
    %v877 = vunpack.c.h.b16 %v223
    %v878 = vunpack.c.l.b16 %v224
    %v879 = vunpack.c.h.b16 %v224
    %v880 = vunpack.c.l.b16 %v225
    %v881 = vunpack.c.h.b16 %v225
    %v882 = vunpack.c.l.b16 %v226
    %v883 = vunpack.c.h.b16 %v226
    %v884 = vunpack.c.l.b16 %v227
    %v885 = vunpack.c.h.b16 %v227
    %v886 = vunpack.c.l.b16 %v228
    %v887 = vunpack.c.h.b16 %v228
    %v888 = vunpack.c.l.b16 %v229
    %v889 = vunpack.c.h.b16 %v229
    %v890 = vunpack.c.l.b16 %v230
    %v891 = vunpack.c.h.b16 %v230
    %v892 = vunpack.c.l.b16 %v231
    %v893 = vunpack.c.h.b16 %v231
    %v894 = vunpack.c.l.b16 %v232
    %v895 = vunpack.c.h.b16 %v232
    %v896 = vunpack.c.l.b16 %v233
    %v897 = vunpack.c.h.b16 %v233
    %v898 = vunpack.c.l.b16 %v234
    %v899 = vunpack.c.h.b16 %v234
    %v900 = vunpack.c.l.b16 %v235
    %v901 = vunpack.c.h.b16 %v235
    %v902 = vunpack.c.l.b16 %v236
    %v903 = vunpack.c.h.b16 %v236
    %v904 = vunpack.c.l.b16 %v237
    %v905 = vunpack.c.h.b16 %v237
    %v906 = vunpack.c.l.b16 %v238
    %v907 = vunpack.c.h.b16 %v238
    %v908 = vunpack.c.l.b16 %v239
    %v909 = vunpack.c.h.b16 %v239
    %v910 = vunpack.c.l.b16 %v240
    %v911 = vunpack.c.h.b16 %v240
    %v912 = vunpack.c.l.b16 %v241
    %v913 = vunpack.c.h.b16 %v241
    %v914 = vunpack.c.l.b16 %v242
    %v915 = vunpack.c.h.b16 %v242
    %v916 = vunpack.c.l.b16 %v243
    %v917 = vunpack.c.h.b16 %v243
    %v918 = vunpack.c.l.b16 %v244
    %v919 = vunpack.c.h.b16 %v244
    %v920 = vunpack.c.l.b16 %v245
    %v921 = vunpack.c.h.b16 %v245
    %v922 = vunpack.c.l.b16 %v246
    %v923 = vunpack.c.h.b16 %v246
    %v924 = vunpack.c.l.b16 %v247
    %v925 = vunpack.c.h.b16 %v247
    %v926 = vunpack.c.l.b16 %v248
    %v927 = vunpack.c.h.b16 %v248
    %v928 = vunpack.c.l.b16 %v249
    %v929 = vunpack.c.h.b16 %v249
    %v930 = vunpack.c.l.b16 %v250
    %v931 = vunpack.c.h.b16 %v250
    %v932 = vunpack.c.l.b16 %v251
    %v933 = vunpack.c.h.b16 %v251
    %v934 = vunpack.c.l.b16 %v252
    %v935 = vunpack.c.h.b16 %v252
    %v936 = vunpack.c.l.b16 %v253
    %v937 = vunpack.c.h.b16 %v253
    %v938 = vunpack.c.l.b16 %v254
    %v939 = vunpack.c.h.b16 %v254
    %v940 = vunpack.c.l.b16 %v255
    %v941 = vunpack.c.h.b16 %v255
    %v942 = vunpack.c.l.b16 %v256
    %v943 = vunpack.c.h.b16 %v256
    %v944 = vunpack.c.l.b16 %v257
    %v945 = vunpack.c.h.b16 %v257
    %v946 = vunpack.c.l.b16 %v258
    %v947 = vunpack.c.h.b16 %v258
    %v948 = vunpack.c.l.b16 %v259
    %v949 = vunpack.c.h.b16 %v259
    %v950 = vunpack.c.l.b16 %v260
    %v951 = vunpack.c.h.b16 %v260
    %v952 = vunpack.c.l.b16 %v261
    %v953 = vunpack.c.h.b16 %v261
    %v954 = vunpack.c.l.b16 %v262
    %v955 = vunpack.c.h.b16 %v262
    %v956 = vunpack.c.l.b16 %v263
    %v957 = vunpack.c.h.b16 %v263
    %v958 = vunpack.c.l.b16 %v264
    %v959 = vunpack.c.h.b16 %v264
    %v960 = vunpack.c.l.b16 %v265
    %v961 = vunpack.c.h.b16 %v265
    %v962 = vunpack.c.l.b16 %v266
    %v963 = vunpack.c.h.b16 %v266
    %v964 = vunpack.c.l.b16 %v267
    %v965 = vunpack.c.h.b16 %v267
    %v966 = vunpack.c.l.b16 %v268
    %v967 = vunpack.c.h.b16 %v268
    %v968 = vunpack.c.l.b16 %v269
    %v969 = vunpack.c.h.b16 %v269
    %v970 = vunpack.c.l.b16 %v270
    %v971 = vunpack.c.h.b16 %v270
    %v972 = vunpack.c.l.b16 %v271
    %v973 = vunpack.c.h.b16 %v271
    %v974 = vunpack.c.l.b16 %v272
    %v975 = vunpack.c.h.b16 %v272
    %v976 = vunpack.c.l.b16 %v273
    %v977 = vunpack.c.h.b16 %v273
    %v978 = vunpack.c.l.b16 %v274
    %v979 = vunpack.c.h.b16 %v274
    %v980 = vunpack.c.l.b16 %v275
    %v981 = vunpack.c.h.b16 %v275
    %v982 = vunpack.c.l.b16 %v276
    %v983 = vunpack.c.h.b16 %v276
    %v984 = vunpack.c.l.b16 %v277
    %v985 = vunpack.c.h.b16 %v277
    %v986 = vunpack.c.l.b16 %v278
    %v987 = vunpack.c.h.b16 %v278
    %v988 = vunpack.c.l.b16 %v279
    %v989 = vunpack.c.h.b16 %v279
    %v990 = vunpack.c.l.b16 %v280
    %v991 = vunpack.c.h.b16 %v280
    %v992 = vunpack.c.l.b16 %v281
    %v993 = vunpack.c.h.b16 %v281
    %v994 = vunpack.c.l.b16 %v282
    %v995 = vunpack.c.h.b16 %v282
    %v996 = vunpack.c.l.b16 %v283
    %v997 = vunpack.c.h.b16 %v283
    %v998 = vunpack.c.l.b16 %v284
    %v999 = vunpack.c.h.b16 %v284
    %v1000 = vunpack.c.l.b16 %v285
    %v1001 = vunpack.c.h.b16 %v285
    %v1002 = vunpack.c.l.b16 %v286
    %v1003 = vunpack.c.h.b16 %v286
    %v1004 = vunpack.c.l.b16 %v287
    %v1005 = vunpack.c.h.b16 %v287
    %v1006 = vunpack.c.l.b16 %v288
    %v1007 = vunpack.c.h.b16 %v288
    %v1008 = vunpack.c.l.b16 %v289
    %v1009 = vunpack.c.h.b16 %v289
    %v1010 = vunpack.c.l.b16 %v290
    %v1011 = vunpack.c.h.b16 %v290
    %v1012 = vunpack.c.l.b16 %v291
    %v1013 = vunpack.c.h.b16 %v291
    %v1014 = vunpack.c.l.b16 %v292
    %v1015 = vunpack.c.h.b16 %v292
    %v1016 = vunpack.c.l.b16 %v293
    %v1017 = vunpack.c.h.b16 %v293
    %v1018 = vunpack.c.l.b16 %v294
    %v1019 = vunpack.c.h.b16 %v294
    %v1020 = vunpack.c.l.b16 %v295
    %v1021 = vunpack.c.h.b16 %v295
    %v1022 = vunpack.c.l.b16 %v296
    %v1023 = vunpack.c.h.b16 %v296
    %v1024 = vunpack.c.l.b16 %v297
    %v1025 = vunpack.c.h.b16 %v297
    %v1026 = vunpack.c.l.b16 %v298
    %v1027 = vunpack.c.h.b16 %v298
    %v1028 = vunpack.c.l.b16 %v299
    %v1029 = vunpack.c.h.b16 %v299
    %v1030 = vunpack.c.l.b16 %v300
    %v1031 = vunpack.c.h.b16 %v300
    %v1032 = vunpack.c.l.b16 %v301
    %v1033 = vunpack.c.h.b16 %v301
    %v1034 = vunpack.c.l.b16 %v302
    %v1035 = vunpack.c.h.b16 %v302
    %v1036 = vunpack.c.l.b16 %v303
    %v1037 = vunpack.c.h.b16 %v303
    %v1038 = vunpack.c.l.b16 %v304
    %v1039 = vunpack.c.h.b16 %v304
    %v1040 = vunpack.c.l.b16 %v305
    %v1041 = vunpack.c.h.b16 %v305
    %v1042 = vunpack.c.l.b16 %v306
    %v1043 = vunpack.c.h.b16 %v306
    %v1044 = vunpack.c.l.b16 %v307
    %v1045 = vunpack.c.h.b16 %v307
    %v1046 = vunpack.c.l.b16 %v308
    %v1047 = vunpack.c.h.b16 %v308
    %v1048 = vunpack.c.l.b16 %v309
    %v1049 = vunpack.c.h.b16 %v309
    %v1050 = vunpack.c.l.b16 %v310
    %v1051 = vunpack.c.h.b16 %v310
    %v1052 = vunpack.c.l.b16 %v311
    %v1053 = vunpack.c.h.b16 %v311
    %v1054 = vunpack.c.l.b16 %v312
    %v1055 = vunpack.c.h.b16 %v312
    %v1056 = vunpack.c.l.b16 %v313
    %v1057 = vunpack.c.h.b16 %v313
    %v1058 = vunpack.c.l.b16 %v314
    %v1059 = vunpack.c.h.b16 %v314
    %v1060 = vunpack.c.l.b16 %v315
    %v1061 = vunpack.c.h.b16 %v315
    %v1062 = vunpack.c.l.b16 %v316
    %v1063 = vunpack.c.h.b16 %v316
    %v1064 = vunpack.c.l.b16 %v317
    %v1065 = vunpack.c.h.b16 %v317
    %v1066 = vunpack.c.l.b16 %v318
    %v1067 = vunpack.c.h.b16 %v318
    %v1068 = vunpack.c.l.b16 %v319
    %v1069 = vunpack.c.h.b16 %v319
    %v1070 = vunpack.c.l.b16 %v320
    %v1071 = vunpack.c.h.b16 %v320
    %v1072 = vunpack.c.l.b16 %v321
    %v1073 = vunpack.c.h.b16 %v321
    %v1074 = vunpack.c.l.b16 %v322
    %v1075 = vunpack.c.h.b16 %v322
    %v1076 = vunpack.c.l.b16 %v323
    %v1077 = vunpack.c.h.b16 %v323
    %v1078 = vunpack.c.l.b16 %v324
    %v1079 = vunpack.c.h.b16 %v324
    %v1080 = vunpack.c.l.b16 %v325
    %v1081 = vunpack.c.h.b16 %v325
    %v1082 = vunpack.c.l.b16 %v326
    %v1083 = vunpack.c.h.b16 %v326
    %v1084 = vunpack.c.l.b16 %v327
    %v1085 = vunpack.c.h.b16 %v327
    %v1086 = vunpack.c.l.b16 %v328
    %v1087 = vunpack.c.h.b16 %v328
    %v1088 = vunpack.c.l.b16 %v329
    %v1089 = vunpack.c.h.b16 %v329
    %v1090 = vunpack.c.l.b16 %v330
    %v1091 = vunpack.c.h.b16 %v330
    %v1092 = vunpack.c.l.b16 %v331
    %v1093 = vunpack.c.h.b16 %v331
    %v1094 = vunpack.c.l.b16 %v332
    %v1095 = vunpack.c.h.b16 %v332
    %v1096 = vunpack.c.l.b16 %v333
    %v1097 = vunpack.c.h.b16 %v333
    %v1098 = vunpack.c.l.b16 %v334
    %v1099 = vunpack.c.h.b16 %v334
    %v1100 = vunpack.c.l.b16 %v335
    %v1101 = vunpack.c.h.b16 %v335
    %v1102 = vunpack.c.l.b16 %v336
    %v1103 = vunpack.c.h.b16 %v336
    %v1104 = vunpack.c.l.b16 %v337
    %v1105 = vunpack.c.h.b16 %v337
    %v1106 = vpack.c.b16 %v596, %v594
    %v1107 = vpack.c.b16 %v597, %v595
    %v1108 = vpack.c.b16 %v600, %v598
    %v1109 = vpack.c.b16 %v601, %v599
    %v1110 = vpack.c.b16 %v604, %v602
    %v1111 = vpack.c.b16 %v605, %v603
    %v1112 = vpack.c.b16 %v608, %v606
    %v1113 = vpack.c.b16 %v609, %v607
    %v1114 = vpack.c.b16 %v612, %v610
    %v1115 = vpack.c.b16 %v613, %v611
    %v1116 = vpack.c.b16 %v616, %v614
    %v1117 = vpack.c.b16 %v617, %v615
    %v1118 = vpack.c.b16 %v620, %v618
    %v1119 = vpack.c.b16 %v621, %v619
    %v1120 = vpack.c.b16 %v624, %v622
    %v1121 = vpack.c.b16 %v625, %v623
    %v1122 = vpack.c.b16 %v628, %v626
    %v1123 = vpack.c.b16 %v629, %v627
    %v1124 = vpack.c.b16 %v632, %v630
    %v1125 = vpack.c.b16 %v633, %v631
    %v1126 = vpack.c.b16 %v636, %v634
    %v1127 = vpack.c.b16 %v637, %v635
    %v1128 = vpack.c.b16 %v640, %v638
    %v1129 = vpack.c.b16 %v641, %v639
    %v1130 = vpack.c.b16 %v644, %v642
    %v1131 = vpack.c.b16 %v645, %v643
    %v1132 = vpack.c.b16 %v648, %v646
    %v1133 = vpack.c.b16 %v649, %v647
    %v1134 = vpack.c.b16 %v652, %v650
    %v1135 = vpack.c.b16 %v653, %v651
    %v1136 = vpack.c.b16 %v656, %v654
    %v1137 = vpack.c.b16 %v657, %v655
    %v1138 = vpack.c.b16 %v660, %v658
    %v1139 = vpack.c.b16 %v661, %v659
    %v1140 = vpack.c.b16 %v664, %v662
    %v1141 = vpack.c.b16 %v665, %v663
    %v1142 = vpack.c.b16 %v668, %v666
    %v1143 = vpack.c.b16 %v669, %v667
    %v1144 = vpack.c.b16 %v672, %v670
    %v1145 = vpack.c.b16 %v673, %v671
    %v1146 = vpack.c.b16 %v676, %v674
    %v1147 = vpack.c.b16 %v677, %v675
    %v1148 = vpack.c.b16 %v680, %v678
    %v1149 = vpack.c.b16 %v681, %v679
    %v1150 = vpack.c.b16 %v684, %v682
    %v1151 = vpack.c.b16 %v685, %v683
    %v1152 = vpack.c.b16 %v688, %v686
    %v1153 = vpack.c.b16 %v689, %v687
    %v1154 = vpack.c.b16 %v692, %v690
    %v1155 = vpack.c.b16 %v693, %v691
    %v1156 = vpack.c.b16 %v696, %v694
    %v1157 = vpack.c.b16 %v697, %v695
    %v1158 = vpack.c.b16 %v700, %v698
    %v1159 = vpack.c.b16 %v701, %v699
    %v1160 = vpack.c.b16 %v704, %v702
    %v1161 = vpack.c.b16 %v705, %v703
    %v1162 = vpack.c.b16 %v708, %v706
    %v1163 = vpack.c.b16 %v709, %v707
    %v1164 = vpack.c.b16 %v712, %v710
    %v1165 = vpack.c.b16 %v713, %v711
    %v1166 = vpack.c.b16 %v716, %v714
    %v1167 = vpack.c.b16 %v717, %v715
    %v1168 = vpack.c.b16 %v720, %v718
    %v1169 = vpack.c.b16 %v721, %v719
    %v1170 = vpack.c.b16 %v724, %v722
    %v1171 = vpack.c.b16 %v725, %v723
    %v1172 = vpack.c.b16 %v728, %v726
    %v1173 = vpack.c.b16 %v729, %v727
    %v1174 = vpack.c.b16 %v732, %v730
    %v1175 = vpack.c.b16 %v733, %v731
    %v1176 = vpack.c.b16 %v736, %v734
    %v1177 = vpack.c.b16 %v737, %v735
    %v1178 = vpack.c.b16 %v740, %v738
    %v1179 = vpack.c.b16 %v741, %v739
    %v1180 = vpack.c.b16 %v744, %v742
    %v1181 = vpack.c.b16 %v745, %v743
    %v1182 = vpack.c.b16 %v748, %v746
    %v1183 = vpack.c.b16 %v749, %v747
    %v1184 = vpack.c.b16 %v752, %v750
    %v1185 = vpack.c.b16 %v753, %v751
    %v1186 = vpack.c.b16 %v756, %v754
    %v1187 = vpack.c.b16 %v757, %v755
    %v1188 = vpack.c.b16 %v760, %v758
    %v1189 = vpack.c.b16 %v761, %v759
    %v1190 = vpack.c.b16 %v764, %v762
    %v1191 = vpack.c.b16 %v765, %v763
    %v1192 = vpack.c.b16 %v768, %v766
    %v1193 = vpack.c.b16 %v769, %v767
    %v1194 = vpack.c.b16 %v772, %v770
    %v1195 = vpack.c.b16 %v773, %v771
    %v1196 = vpack.c.b16 %v776, %v774
    %v1197 = vpack.c.b16 %v777, %v775
    %v1198 = vpack.c.b16 %v780, %v778
    %v1199 = vpack.c.b16 %v781, %v779
    %v1200 = vpack.c.b16 %v784, %v782
    %v1201 = vpack.c.b16 %v785, %v783
    %v1202 = vpack.c.b16 %v788, %v786
    %v1203 = vpack.c.b16 %v789, %v787
    %v1204 = vpack.c.b16 %v792, %v790
    %v1205 = vpack.c.b16 %v793, %v791
    %v1206 = vpack.c.b16 %v796, %v794
    %v1207 = vpack.c.b16 %v797, %v795
    %v1208 = vpack.c.b16 %v800, %v798
    %v1209 = vpack.c.b16 %v801, %v799
    %v1210 = vpack.c.b16 %v804, %v802
    %v1211 = vpack.c.b16 %v805, %v803
    %v1212 = vpack.c.b16 %v808, %v806
    %v1213 = vpack.c.b16 %v809, %v807
    %v1214 = vpack.c.b16 %v812, %v810
    %v1215 = vpack.c.b16 %v813, %v811
    %v1216 = vpack.c.b16 %v816, %v814
    %v1217 = vpack.c.b16 %v817, %v815
    %v1218 = vpack.c.b16 %v820, %v818
    %v1219 = vpack.c.b16 %v821, %v819
    %v1220 = vpack.c.b16 %v824, %v822
    %v1221 = vpack.c.b16 %v825, %v823
    %v1222 = vpack.c.b16 %v828, %v826
    %v1223 = vpack.c.b16 %v829, %v827
    %v1224 = vpack.c.b16 %v832, %v830
    %v1225 = vpack.c.b16 %v833, %v831
    %v1226 = vpack.c.b16 %v836, %v834
    %v1227 = vpack.c.b16 %v837, %v835
    %v1228 = vpack.c.b16 %v840, %v838
    %v1229 = vpack.c.b16 %v841, %v839
    %v1230 = vpack.c.b16 %v844, %v842
    %v1231 = vpack.c.b16 %v845, %v843
    %v1232 = vpack.c.b16 %v848, %v846
    %v1233 = vpack.c.b16 %v849, %v847
    %v1234 = vpack.c.b16 %v852, %v850
    %v1235 = vpack.c.b16 %v853, %v851
    %v1236 = vpack.c.b16 %v856, %v854
    %v1237 = vpack.c.b16 %v857, %v855
    %v1238 = vpack.c.b16 %v860, %v858
    %v1239 = vpack.c.b16 %v861, %v859
    %v1240 = vpack.c.b16 %v864, %v862
    %v1241 = vpack.c.b16 %v865, %v863
    %v1242 = vpack.c.b16 %v868, %v866
    %v1243 = vpack.c.b16 %v869, %v867
    %v1244 = vpack.c.b16 %v872, %v870
    %v1245 = vpack.c.b16 %v873, %v871
    %v1246 = vpack.c.b16 %v876, %v874
    %v1247 = vpack.c.b16 %v877, %v875
    %v1248 = vpack.c.b16 %v880, %v878
    %v1249 = vpack.c.b16 %v881, %v879
    %v1250 = vpack.c.b16 %v884, %v882
    %v1251 = vpack.c.b16 %v885, %v883
    %v1252 = vpack.c.b16 %v888, %v886
    %v1253 = vpack.c.b16 %v889, %v887
    %v1254 = vpack.c.b16 %v892, %v890
    %v1255 = vpack.c.b16 %v893, %v891
    %v1256 = vpack.c.b16 %v896, %v894
    %v1257 = vpack.c.b16 %v897, %v895
    %v1258 = vpack.c.b16 %v900, %v898
    %v1259 = vpack.c.b16 %v901, %v899
    %v1260 = vpack.c.b16 %v904, %v902
    %v1261 = vpack.c.b16 %v905, %v903
    %v1262 = vpack.c.b16 %v908, %v906
    %v1263 = vpack.c.b16 %v909, %v907
    %v1264 = vpack.c.b16 %v912, %v910
    %v1265 = vpack.c.b16 %v913, %v911
    %v1266 = vpack.c.b16 %v916, %v914
    %v1267 = vpack.c.b16 %v917, %v915
    %v1268 = vpack.c.b16 %v920, %v918
    %v1269 = vpack.c.b16 %v921, %v919
    %v1270 = vpack.c.b16 %v924, %v922
    %v1271 = vpack.c.b16 %v925, %v923
    %v1272 = vpack.c.b16 %v928, %v926
    %v1273 = vpack.c.b16 %v929, %v927
    %v1274 = vpack.c.b16 %v932, %v930
    %v1275 = vpack.c.b16 %v933, %v931
    %v1276 = vpack.c.b16 %v936, %v934
    %v1277 = vpack.c.b16 %v937, %v935
    %v1278 = vpack.c.b16 %v940, %v938
    %v1279 = vpack.c.b16 %v941, %v939
    %v1280 = vpack.c.b16 %v944, %v942
    %v1281 = vpack.c.b16 %v945, %v943
    %v1282 = vpack.c.b16 %v948, %v946
    %v1283 = vpack.c.b16 %v949, %v947
    %v1284 = vpack.c.b16 %v952, %v950
    %v1285 = vpack.c.b16 %v953, %v951
    %v1286 = vpack.c.b16 %v956, %v954
    %v1287 = vpack.c.b16 %v957, %v955
    %v1288 = vpack.c.b16 %v960, %v958
    %v1289 = vpack.c.b16 %v961, %v959
    %v1290 = vpack.c.b16 %v964, %v962
    %v1291 = vpack.c.b16 %v965, %v963
    %v1292 = vpack.c.b16 %v968, %v966
    %v1293 = vpack.c.b16 %v969, %v967
    %v1294 = vpack.c.b16 %v972, %v970
    %v1295 = vpack.c.b16 %v973, %v971
    %v1296 = vpack.c.b16 %v976, %v974
    %v1297 = vpack.c.b16 %v977, %v975
    %v1298 = vpack.c.b16 %v980, %v978
    %v1299 = vpack.c.b16 %v981, %v979
    %v1300 = vpack.c.b16 %v984, %v982
    %v1301 = vpack.c.b16 %v985, %v983
    %v1302 = vpack.c.b16 %v988, %v986
    %v1303 = vpack.c.b16 %v989, %v987
    %v1304 = vpack.c.b16 %v992, %v990
    %v1305 = vpack.c.b16 %v993, %v991
    %v1306 = vpack.c.b16 %v996, %v994
    %v1307 = vpack.c.b16 %v997, %v995
    %v1308 = vpack.c.b16 %v1000, %v998
    %v1309 = vpack.c.b16 %v1001, %v999
    %v1310 = vpack.c.b16 %v1004, %v1002
    %v1311 = vpack.c.b16 %v1005, %v1003
    %v1312 = vpack.c.b16 %v1008, %v1006
    %v1313 = vpack.c.b16 %v1009, %v1007
    %v1314 = vpack.c.b16 %v1012, %v1010
    %v1315 = vpack.c.b16 %v1013, %v1011
    %v1316 = vpack.c.b16 %v1016, %v1014
    %v1317 = vpack.c.b16 %v1017, %v1015
    %v1318 = vpack.c.b16 %v1020, %v1018
    %v1319 = vpack.c.b16 %v1021, %v1019
    %v1320 = vpack.c.b16 %v1024, %v1022
    %v1321 = vpack.c.b16 %v1025, %v1023
    %v1322 = vpack.c.b16 %v1028, %v1026
    %v1323 = vpack.c.b16 %v1029, %v1027
    %v1324 = vpack.c.b16 %v1032, %v1030
    %v1325 = vpack.c.b16 %v1033, %v1031
    %v1326 = vpack.c.b16 %v1036, %v1034
    %v1327 = vpack.c.b16 %v1037, %v1035
    %v1328 = vpack.c.b16 %v1040, %v1038
    %v1329 = vpack.c.b16 %v1041, %v1039
    %v1330 = vpack.c.b16 %v1044, %v1042
    %v1331 = vpack.c.b16 %v1045, %v1043
    %v1332 = vpack.c.b16 %v1048, %v1046
    %v1333 = vpack.c.b16 %v1049, %v1047
    %v1334 = vpack.c.b16 %v1052, %v1050
    %v1335 = vpack.c.b16 %v1053, %v1051
    %v1336 = vpack.c.b16 %v1056, %v1054
    %v1337 = vpack.c.b16 %v1057, %v1055
    %v1338 = vpack.c.b16 %v1060, %v1058
    %v1339 = vpack.c.b16 %v1061, %v1059
    %v1340 = vpack.c.b16 %v1064, %v1062
    %v1341 = vpack.c.b16 %v1065, %v1063
    %v1342 = vpack.c.b16 %v1068, %v1066
    %v1343 = vpack.c.b16 %v1069, %v1067
    %v1344 = vpack.c.b16 %v1072, %v1070
    %v1345 = vpack.c.b16 %v1073, %v1071
    %v1346 = vpack.c.b16 %v1076, %v1074
    %v1347 = vpack.c.b16 %v1077, %v1075
    %v1348 = vpack.c.b16 %v1080, %v1078
    %v1349 = vpack.c.b16 %v1081, %v1079
    %v1350 = vpack.c.b16 %v1084, %v1082
    %v1351 = vpack.c.b16 %v1085, %v1083
    %v1352 = vpack.c.b16 %v1088, %v1086
    %v1353 = vpack.c.b16 %v1089, %v1087
    %v1354 = vpack.c.b16 %v1092, %v1090
    %v1355 = vpack.c.b16 %v1093, %v1091
    %v1356 = vpack.c.b16 %v1096, %v1094
    %v1357 = vpack.c.b16 %v1097, %v1095
    %v1358 = vpack.c.b16 %v1100, %v1098
    %v1359 = vpack.c.b16 %v1101, %v1099
    %v1360 = vpack.c.b16 %v1104, %v1102
    %v1361 = vpack.c.b16 %v1105, %v1103
    %1618 = vmatprep.subr.bf16.mxu0 %v1107
    %1619 = vmatpush1.bf16.msra.mxu0 %v1106
    %1620 = vmatprep.subr.bf16.mxu0 %v1109
    %1621 = vmatpush1.bf16.msra.mxu0 %v1108
    %1622 = vmatprep.subr.bf16.mxu0 %v1111
    %1623 = vmatpush1.bf16.msra.mxu0 %v1110
    %1624 = vmatprep.subr.bf16.mxu0 %v1113
    %1625 = vmatpush1.bf16.msra.mxu0 %v1112
    %1626 = vmatprep.subr.bf16.mxu0 %v1115
    %1627 = vmatpush1.bf16.msra.mxu0 %v1114
    %1628 = vmatprep.subr.bf16.mxu0 %v1117
    %1629 = vmatpush1.bf16.msra.mxu0 %v1116
    %1630 = vmatprep.subr.bf16.mxu0 %v1119
    %1631 = vmatpush1.bf16.msra.mxu0 %v1118
    %1632 = vmatprep.subr.bf16.mxu0 %v1121
    %1633 = vmatpush1.bf16.msra.mxu0 %v1120
    %1634 = vmatprep.subr.bf16.mxu0 %v1123
    %1635 = vmatpush1.bf16.msra.mxu0 %v1122
    %1636 = vmatprep.subr.bf16.mxu0 %v1125
    %1637 = vmatpush1.bf16.msra.mxu0 %v1124
    %1638 = vmatprep.subr.bf16.mxu0 %v1127
    %1639 = vmatpush1.bf16.msra.mxu0 %v1126
    %1640 = vmatprep.subr.bf16.mxu0 %v1129
    %1641 = vmatpush1.bf16.msra.mxu0 %v1128
    %1642 = vmatprep.subr.bf16.mxu0 %v1131
    %1643 = vmatpush1.bf16.msra.mxu0 %v1130
    %1644 = vmatprep.subr.bf16.mxu0 %v1133
    %1645 = vmatpush1.bf16.msra.mxu0 %v1132
    %1646 = vmatprep.subr.bf16.mxu0 %v1135
    %1647 = vmatpush1.bf16.msra.mxu0 %v1134
    %1648 = vmatprep.subr.bf16.mxu0 %v1137
    %1649 = vmatpush1.bf16.msra.mxu0 %v1136
    %1650 = vmatprep.mubr.bf16.mxu0 %v67
    %1651 = vmatmul.mubr.bf16.gmra.mrb[0].mxu0 %v66
    %v1652 = vpop.f32.mrb[0].mxu0
    %v1653 = vadd.f32 0.0, %v1652
    %v1654 = vpop.f32.mrb[0].mxu0
    %v1655 = vadd.f32 0.0, %v1654
    %v1656 = vpop.f32.mrb[0].mxu0
    %v1657 = vpop.f32.mrb[0].mxu0
    %1658 = vdwg.mxu0
    %1659 = vmatprep.subr.bf16.mxu0 %v1139
    %1660 = vmatpush1.bf16.msra.mxu0 %v1138
    %1661 = vmatprep.subr.bf16.mxu0 %v1141
    %1662 = vmatpush1.bf16.msra.mxu0 %v1140
    %1663 = vmatprep.subr.bf16.mxu0 %v1143
    %1664 = vmatpush1.bf16.msra.mxu0 %v1142
    %1665 = vmatprep.subr.bf16.mxu0 %v1145
    %1666 = vmatpush1.bf16.msra.mxu0 %v1144
    %1667 = vmatprep.subr.bf16.mxu0 %v1147
    %1668 = vmatpush1.bf16.msra.mxu0 %v1146
    %1669 = vmatprep.subr.bf16.mxu0 %v1149
    %1670 = vmatpush1.bf16.msra.mxu0 %v1148
    %1671 = vmatprep.subr.bf16.mxu0 %v1151
    %1672 = vmatpush1.bf16.msra.mxu0 %v1150
    %1673 = vmatprep.subr.bf16.mxu0 %v1153
    %1674 = vmatpush1.bf16.msra.mxu0 %v1152
    %1675 = vmatprep.subr.bf16.mxu0 %v1155
    %1676 = vmatpush1.bf16.msra.mxu0 %v1154
    %1677 = vmatprep.subr.bf16.mxu0 %v1157
    %1678 = vmatpush1.bf16.msra.mxu0 %v1156
    %1679 = vmatprep.subr.bf16.mxu0 %v1159
    %1680 = vmatpush1.bf16.msra.mxu0 %v1158
    %1681 = vmatprep.subr.bf16.mxu0 %v1161
    %1682 = vmatpush1.bf16.msra.mxu0 %v1160
    %1683 = vmatprep.subr.bf16.mxu0 %v1163
    %1684 = vmatpush1.bf16.msra.mxu0 %v1162
    %1685 = vmatprep.subr.bf16.mxu0 %v1165
    %1686 = vmatpush1.bf16.msra.mxu0 %v1164
    %1687 = vmatprep.subr.bf16.mxu0 %v1167
    %1688 = vmatpush1.bf16.msra.mxu0 %v1166
    %1689 = vmatprep.subr.bf16.mxu0 %v1169
    %1690 = vmatpush1.bf16.msra.mxu0 %v1168
    %1691 = vmatprep.mubr.bf16.mxu0 %v69
    %1692 = vmatmul.mubr.bf16.gmra.mrb[0].mxu0 %v68
    %v1693 = vpop.f32.mrb[0].mxu0
    %v1694 = vadd.f32 %v1653, %v1693
    %v1695 = vpop.f32.mrb[0].mxu0
    %v1696 = vadd.f32 %v1655, %v1695
    %v1697 = vpop.f32.mrb[0].mxu0
    %v1698 = vpop.f32.mrb[0].mxu0
    %1699 = vdwg.mxu0
    %1700 = vmatprep.subr.bf16.mxu0 %v1171
    %1701 = vmatpush1.bf16.msra.mxu0 %v1170
    %1702 = vmatprep.subr.bf16.mxu0 %v1173
    %1703 = vmatpush1.bf16.msra.mxu0 %v1172
    %1704 = vmatprep.subr.bf16.mxu0 %v1175
    %1705 = vmatpush1.bf16.msra.mxu0 %v1174
    %1706 = vmatprep.subr.bf16.mxu0 %v1177
    %1707 = vmatpush1.bf16.msra.mxu0 %v1176
    %1708 = vmatprep.subr.bf16.mxu0 %v1179
    %1709 = vmatpush1.bf16.msra.mxu0 %v1178
    %1710 = vmatprep.subr.bf16.mxu0 %v1181
    %1711 = vmatpush1.bf16.msra.mxu0 %v1180
    %1712 = vmatprep.subr.bf16.mxu0 %v1183
    %1713 = vmatpush1.bf16.msra.mxu0 %v1182
    %1714 = vmatprep.subr.bf16.mxu0 %v1185
    %1715 = vmatpush1.bf16.msra.mxu0 %v1184
    %1716 = vmatprep.subr.bf16.mxu0 %v1187
    %1717 = vmatpush1.bf16.msra.mxu0 %v1186
    %1718 = vmatprep.subr.bf16.mxu0 %v1189
    %1719 = vmatpush1.bf16.msra.mxu0 %v1188
    %1720 = vmatprep.subr.bf16.mxu0 %v1191
    %1721 = vmatpush1.bf16.msra.mxu0 %v1190
    %1722 = vmatprep.subr.bf16.mxu0 %v1193
    %1723 = vmatpush1.bf16.msra.mxu0 %v1192
    %1724 = vmatprep.subr.bf16.mxu0 %v1195
    %1725 = vmatpush1.bf16.msra.mxu0 %v1194
    %1726 = vmatprep.subr.bf16.mxu0 %v1197
    %1727 = vmatpush1.bf16.msra.mxu0 %v1196
    %1728 = vmatprep.subr.bf16.mxu0 %v1199
    %1729 = vmatpush1.bf16.msra.mxu0 %v1198
    %1730 = vmatprep.subr.bf16.mxu0 %v1201
    %1731 = vmatpush1.bf16.msra.mxu0 %v1200
    %1732 = vmatprep.mubr.bf16.mxu0 %v71
    %1733 = vmatmul.mubr.bf16.gmra.mrb[0].mxu0 %v70
    %v1734 = vpop.f32.mrb[0].mxu0
    %v1735 = vadd.f32 %v1694, %v1734
    %v1736 = vpop.f32.mrb[0].mxu0
    %v1737 = vadd.f32 %v1696, %v1736
    %v1738 = vpop.f32.mrb[0].mxu0
    %v1739 = vpop.f32.mrb[0].mxu0
    %1740 = vdwg.mxu0
    %1741 = vmatprep.subr.bf16.mxu0 %v1203
    %1742 = vmatpush1.bf16.msra.mxu0 %v1202
    %1743 = vmatprep.subr.bf16.mxu0 %v1205
    %1744 = vmatpush1.bf16.msra.mxu0 %v1204
    %1745 = vmatprep.subr.bf16.mxu0 %v1207
    %1746 = vmatpush1.bf16.msra.mxu0 %v1206
    %1747 = vmatprep.subr.bf16.mxu0 %v1209
    %1748 = vmatpush1.bf16.msra.mxu0 %v1208
    %1749 = vmatprep.subr.bf16.mxu0 %v1211
    %1750 = vmatpush1.bf16.msra.mxu0 %v1210
    %1751 = vmatprep.subr.bf16.mxu0 %v1213
    %1752 = vmatpush1.bf16.msra.mxu0 %v1212
    %1753 = vmatprep.subr.bf16.mxu0 %v1215
    %1754 = vmatpush1.bf16.msra.mxu0 %v1214
    %1755 = vmatprep.subr.bf16.mxu0 %v1217
    %1756 = vmatpush1.bf16.msra.mxu0 %v1216
    %1757 = vmatprep.subr.bf16.mxu0 %v1219
    %1758 = vmatpush1.bf16.msra.mxu0 %v1218
    %1759 = vmatprep.subr.bf16.mxu0 %v1221
    %1760 = vmatpush1.bf16.msra.mxu0 %v1220
    %1761 = vmatprep.subr.bf16.mxu0 %v1223
    %1762 = vmatpush1.bf16.msra.mxu0 %v1222
    %1763 = vmatprep.subr.bf16.mxu0 %v1225
    %1764 = vmatpush1.bf16.msra.mxu0 %v1224
    %1765 = vmatprep.subr.bf16.mxu0 %v1227
    %1766 = vmatpush1.bf16.msra.mxu0 %v1226
    %1767 = vmatprep.subr.bf16.mxu0 %v1229
    %1768 = vmatpush1.bf16.msra.mxu0 %v1228
    %1769 = vmatprep.subr.bf16.mxu0 %v1231
    %1770 = vmatpush1.bf16.msra.mxu0 %v1230
    %1771 = vmatprep.subr.bf16.mxu0 %v1233
    %1772 = vmatpush1.bf16.msra.mxu0 %v1232
    %1773 = vmatprep.mubr.bf16.mxu0 %v73
    %1774 = vmatmul.mubr.bf16.gmra.mrb[0].mxu0 %v72
    %v1775 = vpop.f32.mrb[0].mxu0
    %v1776 = vadd.f32 %v1735, %v1775
    %v1777 = vpop.f32.mrb[0].mxu0
    %v1778 = vadd.f32 %v1737, %v1777
    %v1779 = vpop.f32.mrb[0].mxu0
    %v1780 = vpop.f32.mrb[0].mxu0
    %1781 = vdwg.mxu0
    %1782 = vmatprep.subr.bf16.mxu0 %v1235
    %1783 = vmatpush1.bf16.msra.mxu0 %v1234
    %1784 = vmatprep.subr.bf16.mxu0 %v1237
    %1785 = vmatpush1.bf16.msra.mxu0 %v1236
    %1786 = vmatprep.subr.bf16.mxu0 %v1239
    %1787 = vmatpush1.bf16.msra.mxu0 %v1238
    %1788 = vmatprep.subr.bf16.mxu0 %v1241
    %1789 = vmatpush1.bf16.msra.mxu0 %v1240
    %1790 = vmatprep.subr.bf16.mxu0 %v1243
    %1791 = vmatpush1.bf16.msra.mxu0 %v1242
    %1792 = vmatprep.subr.bf16.mxu0 %v1245
    %1793 = vmatpush1.bf16.msra.mxu0 %v1244
    %1794 = vmatprep.subr.bf16.mxu0 %v1247
    %1795 = vmatpush1.bf16.msra.mxu0 %v1246
    %1796 = vmatprep.subr.bf16.mxu0 %v1249
    %1797 = vmatpush1.bf16.msra.mxu0 %v1248
    %1798 = vmatprep.subr.bf16.mxu0 %v1251
    %1799 = vmatpush1.bf16.msra.mxu0 %v1250
    %1800 = vmatprep.subr.bf16.mxu0 %v1253
    %1801 = vmatpush1.bf16.msra.mxu0 %v1252
    %1802 = vmatprep.subr.bf16.mxu0 %v1255
    %1803 = vmatpush1.bf16.msra.mxu0 %v1254
    %1804 = vmatprep.subr.bf16.mxu0 %v1257
    %1805 = vmatpush1.bf16.msra.mxu0 %v1256
    %1806 = vmatprep.subr.bf16.mxu0 %v1259
    %1807 = vmatpush1.bf16.msra.mxu0 %v1258
    %1808 = vmatprep.subr.bf16.mxu0 %v1261
    %1809 = vmatpush1.bf16.msra.mxu0 %v1260
    %1810 = vmatprep.subr.bf16.mxu0 %v1263
    %1811 = vmatpush1.bf16.msra.mxu0 %v1262
    %1812 = vmatprep.subr.bf16.mxu0 %v1265
    %1813 = vmatpush1.bf16.msra.mxu0 %v1264
    %1814 = vmatprep.mubr.bf16.mxu0 %v75
    %1815 = vmatmul.mubr.bf16.gmra.mrb[0].mxu0 %v74
    %v1816 = vpop.f32.mrb[0].mxu0
    %v1817 = vadd.f32 %v1776, %v1816
    %v1818 = vpop.f32.mrb[0].mxu0
    %v1819 = vadd.f32 %v1778, %v1818
    %v1820 = vpop.f32.mrb[0].mxu0
    %v1821 = vpop.f32.mrb[0].mxu0
    %1822 = vdwg.mxu0
    %1823 = vmatprep.subr.bf16.mxu0 %v1267
    %1824 = vmatpush1.bf16.msra.mxu0 %v1266
    %1825 = vmatprep.subr.bf16.mxu0 %v1269
    %1826 = vmatpush1.bf16.msra.mxu0 %v1268
    %1827 = vmatprep.subr.bf16.mxu0 %v1271
    %1828 = vmatpush1.bf16.msra.mxu0 %v1270
    %1829 = vmatprep.subr.bf16.mxu0 %v1273
    %1830 = vmatpush1.bf16.msra.mxu0 %v1272
    %1831 = vmatprep.subr.bf16.mxu0 %v1275
    %1832 = vmatpush1.bf16.msra.mxu0 %v1274
    %1833 = vmatprep.subr.bf16.mxu0 %v1277
    %1834 = vmatpush1.bf16.msra.mxu0 %v1276
    %1835 = vmatprep.subr.bf16.mxu0 %v1279
    %1836 = vmatpush1.bf16.msra.mxu0 %v1278
    %1837 = vmatprep.subr.bf16.mxu0 %v1281
    %1838 = vmatpush1.bf16.msra.mxu0 %v1280
    %1839 = vmatprep.subr.bf16.mxu0 %v1283
    %1840 = vmatpush1.bf16.msra.mxu0 %v1282
    %1841 = vmatprep.subr.bf16.mxu0 %v1285
    %1842 = vmatpush1.bf16.msra.mxu0 %v1284
    %1843 = vmatprep.subr.bf16.mxu0 %v1287
    %1844 = vmatpush1.bf16.msra.mxu0 %v1286
    %1845 = vmatprep.subr.bf16.mxu0 %v1289
    %1846 = vmatpush1.bf16.msra.mxu0 %v1288
    %1847 = vmatprep.subr.bf16.mxu0 %v1291
    %1848 = vmatpush1.bf16.msra.mxu0 %v1290
    %1849 = vmatprep.subr.bf16.mxu0 %v1293
    %1850 = vmatpush1.bf16.msra.mxu0 %v1292
    %1851 = vmatprep.subr.bf16.mxu0 %v1295
    %1852 = vmatpush1.bf16.msra.mxu0 %v1294
    %1853 = vmatprep.subr.bf16.mxu0 %v1297
    %1854 = vmatpush1.bf16.msra.mxu0 %v1296
    %1855 = vmatprep.mubr.bf16.mxu0 %v77
    %1856 = vmatmul.mubr.bf16.gmra.mrb[0].mxu0 %v76
    %v1857 = vpop.f32.mrb[0].mxu0
    %v1858 = vadd.f32 %v1817, %v1857
    %v1859 = vpop.f32.mrb[0].mxu0
    %v1860 = vadd.f32 %v1819, %v1859
    %v1861 = vpop.f32.mrb[0].mxu0
    %v1862 = vpop.f32.mrb[0].mxu0
    %1863 = vdwg.mxu0
    %1864 = vmatprep.subr.bf16.mxu0 %v1299
    %1865 = vmatpush1.bf16.msra.mxu0 %v1298
    %1866 = vmatprep.subr.bf16.mxu0 %v1301
    %1867 = vmatpush1.bf16.msra.mxu0 %v1300
    %1868 = vmatprep.subr.bf16.mxu0 %v1303
    %1869 = vmatpush1.bf16.msra.mxu0 %v1302
    %1870 = vmatprep.subr.bf16.mxu0 %v1305
    %1871 = vmatpush1.bf16.msra.mxu0 %v1304
    %1872 = vmatprep.subr.bf16.mxu0 %v1307
    %1873 = vmatpush1.bf16.msra.mxu0 %v1306
    %1874 = vmatprep.subr.bf16.mxu0 %v1309
    %1875 = vmatpush1.bf16.msra.mxu0 %v1308
    %1876 = vmatprep.subr.bf16.mxu0 %v1311
    %1877 = vmatpush1.bf16.msra.mxu0 %v1310
    %1878 = vmatprep.subr.bf16.mxu0 %v1313
    %1879 = vmatpush1.bf16.msra.mxu0 %v1312
    %1880 = vmatprep.subr.bf16.mxu0 %v1315
    %1881 = vmatpush1.bf16.msra.mxu0 %v1314
    %1882 = vmatprep.subr.bf16.mxu0 %v1317
    %1883 = vmatpush1.bf16.msra.mxu0 %v1316
    %1884 = vmatprep.subr.bf16.mxu0 %v1319
    %1885 = vmatpush1.bf16.msra.mxu0 %v1318
    %1886 = vmatprep.subr.bf16.mxu0 %v1321
    %1887 = vmatpush1.bf16.msra.mxu0 %v1320
    %1888 = vmatprep.subr.bf16.mxu0 %v1323
    %1889 = vmatpush1.bf16.msra.mxu0 %v1322
    %1890 = vmatprep.subr.bf16.mxu0 %v1325
    %1891 = vmatpush1.bf16.msra.mxu0 %v1324
    %1892 = vmatprep.subr.bf16.mxu0 %v1327
    %1893 = vmatpush1.bf16.msra.mxu0 %v1326
    %1894 = vmatprep.subr.bf16.mxu0 %v1329
    %1895 = vmatpush1.bf16.msra.mxu0 %v1328
    %1896 = vmatprep.mubr.bf16.mxu0 %v79
    %1897 = vmatmul.mubr.bf16.gmra.mrb[0].mxu0 %v78
    %v1898 = vpop.f32.mrb[0].mxu0
    %v1899 = vadd.f32 %v1858, %v1898
    %v1900 = vpop.f32.mrb[0].mxu0
    %v1901 = vadd.f32 %v1860, %v1900
    %v1902 = vpop.f32.mrb[0].mxu0
    %v1903 = vpop.f32.mrb[0].mxu0
    %1904 = vdwg.mxu0
    %1905 = vmatprep.subr.bf16.mxu0 %v1331
    %1906 = vmatpush1.bf16.msra.mxu0 %v1330
    %1907 = vmatprep.subr.bf16.mxu0 %v1333
    %1908 = vmatpush1.bf16.msra.mxu0 %v1332
    %1909 = vmatprep.subr.bf16.mxu0 %v1335
    %1910 = vmatpush1.bf16.msra.mxu0 %v1334
    %1911 = vmatprep.subr.bf16.mxu0 %v1337
    %1912 = vmatpush1.bf16.msra.mxu0 %v1336
    %1913 = vmatprep.subr.bf16.mxu0 %v1339
    %1914 = vmatpush1.bf16.msra.mxu0 %v1338
    %1915 = vmatprep.subr.bf16.mxu0 %v1341
    %1916 = vmatpush1.bf16.msra.mxu0 %v1340
    %1917 = vmatprep.subr.bf16.mxu0 %v1343
    %1918 = vmatpush1.bf16.msra.mxu0 %v1342
    %1919 = vmatprep.subr.bf16.mxu0 %v1345
    %1920 = vmatpush1.bf16.msra.mxu0 %v1344
    %1921 = vmatprep.subr.bf16.mxu0 %v1347
    %1922 = vmatpush1.bf16.msra.mxu0 %v1346
    %1923 = vmatprep.subr.bf16.mxu0 %v1349
    %1924 = vmatpush1.bf16.msra.mxu0 %v1348
    %1925 = vmatprep.subr.bf16.mxu0 %v1351
    %1926 = vmatpush1.bf16.msra.mxu0 %v1350
    %1927 = vmatprep.subr.bf16.mxu0 %v1353
    %1928 = vmatpush1.bf16.msra.mxu0 %v1352
    %1929 = vmatprep.subr.bf16.mxu0 %v1355
    %1930 = vmatpush1.bf16.msra.mxu0 %v1354
    %1931 = vmatprep.subr.bf16.mxu0 %v1357
    %1932 = vmatpush1.bf16.msra.mxu0 %v1356
    %1933 = vmatprep.subr.bf16.mxu0 %v1359
    %1934 = vmatpush1.bf16.msra.mxu0 %v1358
    %1935 = vmatprep.subr.bf16.mxu0 %v1361
    %1936 = vmatpush1.bf16.msra.mxu0 %v1360
    %1937 = vmatprep.mubr.bf16.mxu0 %v81
    %1938 = vmatmul.mubr.bf16.gmra.mrb[0].mxu0 %v80
    %v1939 = vpop.f32.mrb[0].mxu0
    %v1940 = vadd.f32 %v1899, %v1939
    %v1941 = vpop.f32.mrb[0].mxu0
    %v1942 = vadd.f32 %v1901, %v1941
    %v1943 = vpop.f32.mrb[0].mxu0
    %v1944 = vpop.f32.mrb[0].mxu0
    %1945 = vdwg.mxu0
    %v1946 = vmax.f32 %v1940, 0.0
    %v1947 = vmax.f32 %v1942, 0.0
    %v1948 = vpack.c.bf16 %v1946, %v1946
    %v1949 = vpack.c.bf16 %v1947, %v1947
    %v1950 = vld [vmem:[%s3] sm:$0x1]
    %vm1951 = vcmask 64512
    %v1953 = vsel %vm1951, %v1950, 0
    %vm1955 = vcmask 1043456
    %v1957 = vsel %vm1955, %v1948, 0
    %v1960 = vsel %vm1955, %v1949, 0
    %1962 = vmatprep.subr.bf16.mxu0 %v1960
    %1963 = vmatpush1.bf16.msra.mxu0 %v1957
    %1964 = vmatprep.subr.bf16.mxu0 0
    %1965 = vmatpush1.bf16.msra.mxu0 0
    %1966 = vmatprep.subr.bf16.mxu0 0
    %1967 = vmatpush1.bf16.msra.mxu0 0
    %1968 = vmatprep.subr.bf16.mxu0 0
    %1969 = vmatpush1.bf16.msra.mxu0 0
    %1970 = vmatprep.subr.bf16.mxu0 0
    %1971 = vmatpush1.bf16.msra.mxu0 0
    %1972 = vmatprep.subr.bf16.mxu0 0
    %1973 = vmatpush1.bf16.msra.mxu0 0
    %1974 = vmatprep.subr.bf16.mxu0 0
    %1975 = vmatpush1.bf16.msra.mxu0 0
    %1976 = vmatprep.subr.bf16.mxu0 0
    %1977 = vmatpush1.bf16.msra.mxu0 0
    %1978 = vmatprep.subr.bf16.mxu0 0
    %1979 = vmatpush1.bf16.msra.mxu0 0
    %1980 = vmatprep.subr.bf16.mxu0 0
    %1981 = vmatpush1.bf16.msra.mxu0 0
    %1982 = vmatprep.subr.bf16.mxu0 0
    %1983 = vmatpush1.bf16.msra.mxu0 0
    %1984 = vmatprep.subr.bf16.mxu0 0
    %1985 = vmatpush1.bf16.msra.mxu0 0
    %1986 = vmatprep.subr.bf16.mxu0 0
    %1987 = vmatpush1.bf16.msra.mxu0 0
    %1988 = vmatprep.subr.bf16.mxu0 0
    %1989 = vmatpush1.bf16.msra.mxu0 0
    %1990 = vmatprep.subr.bf16.mxu0 0
    %1991 = vmatpush1.bf16.msra.mxu0 0
    %1992 = vmatprep.subr.bf16.mxu0 0
    %1993 = vmatpush1.bf16.msra.mxu0 0
    %1994 = vmatprep.mubr.bf16.mxu0 0
    %1995 = vmatmul.mubr.bf16.gmra.mrb[0].mxu0 %v1953
    %v1996 = vpop.f32.mrb[0].mxu0
    %v1997 = vadd.f32 0.0, %v1996
    %v1998 = vpop.f32.mrb[0].mxu0
    %v1999 = vadd.f32 0.0, %v1998
    %v2000 = vpop.f32.mrb[0].mxu0
    %v2001 = vpop.f32.mrb[0].mxu0
    %2002 = vdwg.mxu0
    %v2003 = vmul.f32 %v1997, 0.25
    %v2004 = vmul.f32 %v1999, 0.25
    %v2007 = vcombine.low %v2003, %v2004
    %v2009 = vunpack.c.l.s4 1983009808
    %v2010 = vunpack.c.0.s8 %v2009
    %v2011 = vlaneseq
    %v2012 = vshrl.u32 %v2011, 7
    %v2013 = vsub.s32 %v2010, %v2012
    %v2014 = vrot.slane %v2007, %v2013
    %2016 = vst [vmem:[#allocation2] sm:$0xf] %v2014
    %v2017 = vld [vmem:[%s2] sm:$0xff]
    %v2018 = vld [vmem:[%s2 + $0x8] sm:$0xff]
    %v2021 = vcombine.high %v2017, %v2017
    %v2023 = vunpack.c.l.s4 1966171168
    %v2024 = vunpack.c.0.s8 %v2023
    %v2025 = vlaneseq
    %v2026 = vshrl.u32 %v2025, 7
    %v2027 = vsub.s32 %v2024, %v2026
    %v2028 = vrot.slane %v2017, %v2027
    %v2030 = vunpack.c.l.s4 1966171168
    %v2031 = vunpack.c.0.s8 %v2030
    %v2032 = vlaneseq
    %v2033 = vshrl.u32 %v2032, 7
    %v2034 = vsub.s32 %v2031, %v2033
    %v2035 = vrot.slane %v2021, %v2034
    %v2036 = vcombine.high %v2028, %v2028
    %v2037 = vcombine.high %v2035, %v2035
    %v2039 = vunpack.c.l.s4 1966171168
    %v2040 = vunpack.c.0.s8 %v2039
    %v2041 = vlaneseq
    %v2042 = vshrl.u32 %v2041, 7
    %v2043 = vsub.s32 %v2040, %v2042
    %v2044 = vrot.slane %v2028, %v2043
    %v2046 = vunpack.c.l.s4 1966171168
    %v2047 = vunpack.c.0.s8 %v2046
    %v2048 = vlaneseq
    %v2049 = vshrl.u32 %v2048, 7
    %v2050 = vsub.s32 %v2047, %v2049
    %v2051 = vrot.slane %v2035, %v2050
    %v2053 = vunpack.c.l.s4 1966171168
    %v2054 = vunpack.c.0.s8 %v2053
    %v2055 = vlaneseq
    %v2056 = vshrl.u32 %v2055, 7
    %v2057 = vsub.s32 %v2054, %v2056
    %v2058 = vrot.slane %v2036, %v2057
    %v2060 = vunpack.c.l.s4 1966171168
    %v2061 = vunpack.c.0.s8 %v2060
    %v2062 = vlaneseq
    %v2063 = vshrl.u32 %v2062, 7
    %v2064 = vsub.s32 %v2061, %v2063
    %v2065 = vrot.slane %v2037, %v2064
    %v2066 = vcombine.high %v2044, %v2044
    %v2067 = vcombine.high %v2051, %v2051
    %v2068 = vcombine.high %v2058, %v2058
    %v2069 = vcombine.high %v2065, %v2065
    %v2070 = vcombine.high %v2018, %v2018
    %v2072 = vunpack.c.l.s4 1966171168
    %v2073 = vunpack.c.0.s8 %v2072
    %v2074 = vlaneseq
    %v2075 = vshrl.u32 %v2074, 7
    %v2076 = vsub.s32 %v2073, %v2075
    %v2077 = vrot.slane %v2018, %v2076
    %v2079 = vunpack.c.l.s4 1966171168
    %v2080 = vunpack.c.0.s8 %v2079
    %v2081 = vlaneseq
    %v2082 = vshrl.u32 %v2081, 7
    %v2083 = vsub.s32 %v2080, %v2082
    %v2084 = vrot.slane %v2070, %v2083
    %v2085 = vcombine.high %v2077, %v2077
    %v2086 = vcombine.high %v2084, %v2084
    %v2088 = vunpack.c.l.s4 1966171168
    %v2089 = vunpack.c.0.s8 %v2088
    %v2090 = vlaneseq
    %v2091 = vshrl.u32 %v2090, 7
    %v2092 = vsub.s32 %v2089, %v2091
    %v2093 = vrot.slane %v2077, %v2092
    %v2095 = vunpack.c.l.s4 1966171168
    %v2096 = vunpack.c.0.s8 %v2095
    %v2097 = vlaneseq
    %v2098 = vshrl.u32 %v2097, 7
    %v2099 = vsub.s32 %v2096, %v2098
    %v2100 = vrot.slane %v2084, %v2099
    %v2102 = vunpack.c.l.s4 1966171168
    %v2103 = vunpack.c.0.s8 %v2102
    %v2104 = vlaneseq
    %v2105 = vshrl.u32 %v2104, 7
    %v2106 = vsub.s32 %v2103, %v2105
    %v2107 = vrot.slane %v2085, %v2106
    %v2109 = vunpack.c.l.s4 1966171168
    %v2110 = vunpack.c.0.s8 %v2109
    %v2111 = vlaneseq
    %v2112 = vshrl.u32 %v2111, 7
    %v2113 = vsub.s32 %v2110, %v2112
    %v2114 = vrot.slane %v2086, %v2113
    %v2115 = vcombine.high %v2093, %v2093
    %v2116 = vcombine.high %v2100, %v2100
    %v2117 = vcombine.high %v2107, %v2107
    %v2118 = vcombine.high %v2114, %v2114
    %2135 = vmatprep.subr.bf16.mxu0 %v67
    %2136 = vmatpush1.bf16.xpose.msra.mxu0 %v66
    %2137 = vmatprep.subr.bf16.mxu0 0
    %2138 = vmatpush1.bf16.xpose.msra.mxu0 0
    %2139 = vmatprep.subr.bf16.mxu0 0
    %2140 = vmatpush1.bf16.xpose.msra.mxu0 0
    %2141 = vmatprep.subr.bf16.mxu0 0
    %2142 = vmatpush1.bf16.xpose.msra.mxu0 0
    %2143 = vmatprep.subr.bf16.mxu0 0
    %2144 = vmatpush1.bf16.xpose.msra.mxu0 0
    %2145 = vmatprep.subr.bf16.mxu0 0
    %2146 = vmatpush1.bf16.xpose.msra.mxu0 0
    %2147 = vmatprep.subr.bf16.mxu0 0
    %2148 = vmatpush1.bf16.xpose.msra.mxu0 0
    %2149 = vmatprep.subr.bf16.mxu0 0
    %2150 = vmatpush1.bf16.xpose.msra.mxu0 0
    %2151 = vmatprep.subr.bf16.mxu0 0
    %2152 = vmatpush1.bf16.xpose.msra.mxu0 0
    %2153 = vmatprep.subr.bf16.mxu0 0
    %2154 = vmatpush1.bf16.xpose.msra.mxu0 0
    %2155 = vmatprep.subr.bf16.mxu0 0
    %2156 = vmatpush1.bf16.xpose.msra.mxu0 0
    %2157 = vmatprep.subr.bf16.mxu0 0
    %2158 = vmatpush1.bf16.xpose.msra.mxu0 0
    %2159 = vmatprep.subr.bf16.mxu0 0
    %2160 = vmatpush1.bf16.xpose.msra.mxu0 0
    %2161 = vmatprep.subr.bf16.mxu0 0
    %2162 = vmatpush1.bf16.xpose.msra.mxu0 0
    %2163 = vmatprep.subr.bf16.mxu0 0
    %2164 = vmatpush1.bf16.xpose.msra.mxu0 0
    %2165 = vmatprep.subr.bf16.mxu0 0
    %2166 = vmatpush1.bf16.xpose.msra.mxu0 0
    %2167 = vmatprep.mubr.bf16.mxu0 %v2058
    %2168 = vmatmul.mubr.bf16.gmra.mrb[0].mxu0 %v2044
    %v2169 = vpop.f32.mrb[0].mxu0
    %v2170 = vadd.f32 0.0, %v2169
    %v2171 = vpop.f32.mrb[0].mxu0
    %v2172 = vpop.f32.mrb[0].mxu0
    %v2173 = vpop.f32.mrb[0].mxu0
    %2174 = vdwg.mxu0
    %2175 = vmatprep.subr.bf16.mxu0 %v69
    %2176 = vmatpush1.bf16.xpose.msra.mxu0 %v68
    %2177 = vmatprep.subr.bf16.mxu0 0
    %2178 = vmatpush1.bf16.xpose.msra.mxu0 0
    %2179 = vmatprep.subr.bf16.mxu0 0
    %2180 = vmatpush1.bf16.xpose.msra.mxu0 0
    %2181 = vmatprep.subr.bf16.mxu0 0
    %2182 = vmatpush1.bf16.xpose.msra.mxu0 0
    %2183 = vmatprep.subr.bf16.mxu0 0
    %2184 = vmatpush1.bf16.xpose.msra.mxu0 0
    %2185 = vmatprep.subr.bf16.mxu0 0
    %2186 = vmatpush1.bf16.xpose.msra.mxu0 0
    %2187 = vmatprep.subr.bf16.mxu0 0
    %2188 = vmatpush1.bf16.xpose.msra.mxu0 0
    %2189 = vmatprep.subr.bf16.mxu0 0
    %2190 = vmatpush1.bf16.xpose.msra.mxu0 0
    %2191 = vmatprep.subr.bf16.mxu0 0
    %2192 = vmatpush1.bf16.xpose.msra.mxu0 0
    %2193 = vmatprep.subr.bf16.mxu0 0
    %2194 = vmatpush1.bf16.xpose.msra.mxu0 0
    %2195 = vmatprep.subr.bf16.mxu0 0
    %2196 = vmatpush1.bf16.xpose.msra.mxu0 0
    %2197 = vmatprep.subr.bf16.mxu0 0
    %2198 = vmatpush1.bf16.xpose.msra.mxu0 0
    %2199 = vmatprep.subr.bf16.mxu0 0
    %2200 = vmatpush1.bf16.xpose.msra.mxu0 0
    %2201 = vmatprep.subr.bf16.mxu0 0
    %2202 = vmatpush1.bf16.xpose.msra.mxu0 0
    %2203 = vmatprep.subr.bf16.mxu0 0
    %2204 = vmatpush1.bf16.xpose.msra.mxu0 0
    %2205 = vmatprep.subr.bf16.mxu0 0
    %2206 = vmatpush1.bf16.xpose.msra.mxu0 0
    %2207 = vmatprep.mubr.bf16.mxu0 %v2068
    %2208 = vmatmul.mubr.bf16.gmra.mrb[0].mxu0 %v2066
    %v2209 = vpop.f32.mrb[0].mxu0
    %v2210 = vadd.f32 %v2170, %v2209
    %v2211 = vpop.f32.mrb[0].mxu0
    %v2212 = vpop.f32.mrb[0].mxu0
    %v2213 = vpop.f32.mrb[0].mxu0
    %2214 = vdwg.mxu0
    %2215 = vmatprep.subr.bf16.mxu0 %v71
    %2216 = vmatpush1.bf16.xpose.msra.mxu0 %v70
    %2217 = vmatprep.subr.bf16.mxu0 0
    %2218 = vmatpush1.bf16.xpose.msra.mxu0 0
    %2219 = vmatprep.subr.bf16.mxu0 0
    %2220 = vmatpush1.bf16.xpose.msra.mxu0 0
    %2221 = vmatprep.subr.bf16.mxu0 0
    %2222 = vmatpush1.bf16.xpose.msra.mxu0 0
    %2223 = vmatprep.subr.bf16.mxu0 0
    %2224 = vmatpush1.bf16.xpose.msra.mxu0 0
    %2225 = vmatprep.subr.bf16.mxu0 0
    %2226 = vmatpush1.bf16.xpose.msra.mxu0 0
    %2227 = vmatprep.subr.bf16.mxu0 0
    %2228 = vmatpush1.bf16.xpose.msra.mxu0 0
    %2229 = vmatprep.subr.bf16.mxu0 0
    %2230 = vmatpush1.bf16.xpose.msra.mxu0 0
    %2231 = vmatprep.subr.bf16.mxu0 0
    %2232 = vmatpush1.bf16.xpose.msra.mxu0 0
    %2233 = vmatprep.subr.bf16.mxu0 0
    %2234 = vmatpush1.bf16.xpose.msra.mxu0 0
    %2235 = vmatprep.subr.bf16.mxu0 0
    %2236 = vmatpush1.bf16.xpose.msra.mxu0 0
    %2237 = vmatprep.subr.bf16.mxu0 0
    %2238 = vmatpush1.bf16.xpose.msra.mxu0 0
    %2239 = vmatprep.subr.bf16.mxu0 0
    %2240 = vmatpush1.bf16.xpose.msra.mxu0 0
    %2241 = vmatprep.subr.bf16.mxu0 0
    %2242 = vmatpush1.bf16.xpose.msra.mxu0 0
    %2243 = vmatprep.subr.bf16.mxu0 0
    %2244 = vmatpush1.bf16.xpose.msra.mxu0 0
    %2245 = vmatprep.subr.bf16.mxu0 0
    %2246 = vmatpush1.bf16.xpose.msra.mxu0 0
    %2247 = vmatprep.mubr.bf16.mxu0 %v2065
    %2248 = vmatmul.mubr.bf16.gmra.mrb[0].mxu0 %v2051
    %v2249 = vpop.f32.mrb[0].mxu0
    %v2250 = vadd.f32 %v2210, %v2249
    %v2251 = vpop.f32.mrb[0].mxu0
    %v2252 = vpop.f32.mrb[0].mxu0
    %v2253 = vpop.f32.mrb[0].mxu0
    %2254 = vdwg.mxu0
    %2255 = vmatprep.subr.bf16.mxu0 %v73
    %2256 = vmatpush1.bf16.xpose.msra.mxu0 %v72
    %2257 = vmatprep.subr.bf16.mxu0 0
    %2258 = vmatpush1.bf16.xpose.msra.mxu0 0
    %2259 = vmatprep.subr.bf16.mxu0 0
    %2260 = vmatpush1.bf16.xpose.msra.mxu0 0
    %2261 = vmatprep.subr.bf16.mxu0 0
    %2262 = vmatpush1.bf16.xpose.msra.mxu0 0
    %2263 = vmatprep.subr.bf16.mxu0 0
    %2264 = vmatpush1.bf16.xpose.msra.mxu0 0
    %2265 = vmatprep.subr.bf16.mxu0 0
    %2266 = vmatpush1.bf16.xpose.msra.mxu0 0
    %2267 = vmatprep.subr.bf16.mxu0 0
    %2268 = vmatpush1.bf16.xpose.msra.mxu0 0
    %2269 = vmatprep.subr.bf16.mxu0 0
    %2270 = vmatpush1.bf16.xpose.msra.mxu0 0
    %2271 = vmatprep.subr.bf16.mxu0 0
    %2272 = vmatpush1.bf16.xpose.msra.mxu0 0
    %2273 = vmatprep.subr.bf16.mxu0 0
    %2274 = vmatpush1.bf16.xpose.msra.mxu0 0
    %2275 = vmatprep.subr.bf16.mxu0 0
    %2276 = vmatpush1.bf16.xpose.msra.mxu0 0
    %2277 = vmatprep.subr.bf16.mxu0 0
    %2278 = vmatpush1.bf16.xpose.msra.mxu0 0
    %2279 = vmatprep.subr.bf16.mxu0 0
    %2280 = vmatpush1.bf16.xpose.msra.mxu0 0
    %2281 = vmatprep.subr.bf16.mxu0 0
    %2282 = vmatpush1.bf16.xpose.msra.mxu0 0
    %2283 = vmatprep.subr.bf16.mxu0 0
    %2284 = vmatpush1.bf16.xpose.msra.mxu0 0
    %2285 = vmatprep.subr.bf16.mxu0 0
    %2286 = vmatpush1.bf16.xpose.msra.mxu0 0
    %2287 = vmatprep.mubr.bf16.mxu0 %v2069
    %2288 = vmatmul.mubr.bf16.gmra.mrb[0].mxu0 %v2067
    %v2289 = vpop.f32.mrb[0].mxu0
    %v2290 = vadd.f32 %v2250, %v2289
    %v2291 = vpop.f32.mrb[0].mxu0
    %v2292 = vpop.f32.mrb[0].mxu0
    %v2293 = vpop.f32.mrb[0].mxu0
    %2294 = vdwg.mxu0
    %2295 = vmatprep.subr.bf16.mxu0 %v75
    %2296 = vmatpush1.bf16.xpose.msra.mxu0 %v74
    %2297 = vmatprep.subr.bf16.mxu0 0
    %2298 = vmatpush1.bf16.xpose.msra.mxu0 0
    %2299 = vmatprep.subr.bf16.mxu0 0
    %2300 = vmatpush1.bf16.xpose.msra.mxu0 0
    %2301 = vmatprep.subr.bf16.mxu0 0
    %2302 = vmatpush1.bf16.xpose.msra.mxu0 0
    %2303 = vmatprep.subr.bf16.mxu0 0
    %2304 = vmatpush1.bf16.xpose.msra.mxu0 0
    %2305 = vmatprep.subr.bf16.mxu0 0
    %2306 = vmatpush1.bf16.xpose.msra.mxu0 0
    %2307 = vmatprep.subr.bf16.mxu0 0
    %2308 = vmatpush1.bf16.xpose.msra.mxu0 0
    %2309 = vmatprep.subr.bf16.mxu0 0
    %2310 = vmatpush1.bf16.xpose.msra.mxu0 0
    %2311 = vmatprep.subr.bf16.mxu0 0
    %2312 = vmatpush1.bf16.xpose.msra.mxu0 0
    %2313 = vmatprep.subr.bf16.mxu0 0
    %2314 = vmatpush1.bf16.xpose.msra.mxu0 0
    %2315 = vmatprep.subr.bf16.mxu0 0
    %2316 = vmatpush1.bf16.xpose.msra.mxu0 0
    %2317 = vmatprep.subr.bf16.mxu0 0
    %2318 = vmatpush1.bf16.xpose.msra.mxu0 0
    %2319 = vmatprep.subr.bf16.mxu0 0
    %2320 = vmatpush1.bf16.xpose.msra.mxu0 0
    %2321 = vmatprep.subr.bf16.mxu0 0
    %2322 = vmatpush1.bf16.xpose.msra.mxu0 0
    %2323 = vmatprep.subr.bf16.mxu0 0
    %2324 = vmatpush1.bf16.xpose.msra.mxu0 0
    %2325 = vmatprep.subr.bf16.mxu0 0
    %2326 = vmatpush1.bf16.xpose.msra.mxu0 0
    %2327 = vmatprep.mubr.bf16.mxu0 %v2107
    %2328 = vmatmul.mubr.bf16.gmra.mrb[0].mxu0 %v2093
    %v2329 = vpop.f32.mrb[0].mxu0
    %v2330 = vadd.f32 %v2290, %v2329
    %v2331 = vpop.f32.mrb[0].mxu0
    %v2332 = vpop.f32.mrb[0].mxu0
    %v2333 = vpop.f32.mrb[0].mxu0
    %2334 = vdwg.mxu0
    %2335 = vmatprep.subr.bf16.mxu0 %v77
    %2336 = vmatpush1.bf16.xpose.msra.mxu0 %v76
    %2337 = vmatprep.subr.bf16.mxu0 0
    %2338 = vmatpush1.bf16.xpose.msra.mxu0 0
    %2339 = vmatprep.subr.bf16.mxu0 0
    %2340 = vmatpush1.bf16.xpose.msra.mxu0 0
    %2341 = vmatprep.subr.bf16.mxu0 0
    %2342 = vmatpush1.bf16.xpose.msra.mxu0 0
    %2343 = vmatprep.subr.bf16.mxu0 0
    %2344 = vmatpush1.bf16.xpose.msra.mxu0 0
    %2345 = vmatprep.subr.bf16.mxu0 0
    %2346 = vmatpush1.bf16.xpose.msra.mxu0 0
    %2347 = vmatprep.subr.bf16.mxu0 0
    %2348 = vmatpush1.bf16.xpose.msra.mxu0 0
    %2349 = vmatprep.subr.bf16.mxu0 0
    %2350 = vmatpush1.bf16.xpose.msra.mxu0 0
    %2351 = vmatprep.subr.bf16.mxu0 0
    %2352 = vmatpush1.bf16.xpose.msra.mxu0 0
    %2353 = vmatprep.subr.bf16.mxu0 0
    %2354 = vmatpush1.bf16.xpose.msra.mxu0 0
    %2355 = vmatprep.subr.bf16.mxu0 0
    %2356 = vmatpush1.bf16.xpose.msra.mxu0 0
    %2357 = vmatprep.subr.bf16.mxu0 0
    %2358 = vmatpush1.bf16.xpose.msra.mxu0 0
    %2359 = vmatprep.subr.bf16.mxu0 0
    %2360 = vmatpush1.bf16.xpose.msra.mxu0 0
    %2361 = vmatprep.subr.bf16.mxu0 0
    %2362 = vmatpush1.bf16.xpose.msra.mxu0 0
    %2363 = vmatprep.subr.bf16.mxu0 0
    %2364 = vmatpush1.bf16.xpose.msra.mxu0 0
    %2365 = vmatprep.subr.bf16.mxu0 0
    %2366 = vmatpush1.bf16.xpose.msra.mxu0 0
    %2367 = vmatprep.mubr.bf16.mxu0 %v2117
    %2368 = vmatmul.mubr.bf16.gmra.mrb[0].mxu0 %v2115
    %v2369 = vpop.f32.mrb[0].mxu0
    %v2370 = vadd.f32 %v2330, %v2369
    %v2371 = vpop.f32.mrb[0].mxu0
    %v2372 = vpop.f32.mrb[0].mxu0
    %v2373 = vpop.f32.mrb[0].mxu0
    %2374 = vdwg.mxu0
    %2375 = vmatprep.subr.bf16.mxu0 %v79
    %2376 = vmatpush1.bf16.xpose.msra.mxu0 %v78
    %2377 = vmatprep.subr.bf16.mxu0 0
    %2378 = vmatpush1.bf16.xpose.msra.mxu0 0
    %2379 = vmatprep.subr.bf16.mxu0 0
    %2380 = vmatpush1.bf16.xpose.msra.mxu0 0
    %2381 = vmatprep.subr.bf16.mxu0 0
    %2382 = vmatpush1.bf16.xpose.msra.mxu0 0
    %2383 = vmatprep.subr.bf16.mxu0 0
    %2384 = vmatpush1.bf16.xpose.msra.mxu0 0
    %2385 = vmatprep.subr.bf16.mxu0 0
    %2386 = vmatpush1.bf16.xpose.msra.mxu0 0
    %2387 = vmatprep.subr.bf16.mxu0 0
    %2388 = vmatpush1.bf16.xpose.msra.mxu0 0
    %2389 = vmatprep.subr.bf16.mxu0 0
    %2390 = vmatpush1.bf16.xpose.msra.mxu0 0
    %2391 = vmatprep.subr.bf16.mxu0 0
    %2392 = vmatpush1.bf16.xpose.msra.mxu0 0
    %2393 = vmatprep.subr.bf16.mxu0 0
    %2394 = vmatpush1.bf16.xpose.msra.mxu0 0
    %2395 = vmatprep.subr.bf16.mxu0 0
    %2396 = vmatpush1.bf16.xpose.msra.mxu0 0
    %2397 = vmatprep.subr.bf16.mxu0 0
    %2398 = vmatpush1.bf16.xpose.msra.mxu0 0
    %2399 = vmatprep.subr.bf16.mxu0 0
    %2400 = vmatpush1.bf16.xpose.msra.mxu0 0
    %2401 = vmatprep.subr.bf16.mxu0 0
    %2402 = vmatpush1.bf16.xpose.msra.mxu0 0
    %2403 = vmatprep.subr.bf16.mxu0 0
    %2404 = vmatpush1.bf16.xpose.msra.mxu0 0
    %2405 = vmatprep.subr.bf16.mxu0 0
    %2406 = vmatpush1.bf16.xpose.msra.mxu0 0
    %2407 = vmatprep.mubr.bf16.mxu0 %v2114
    %2408 = vmatmul.mubr.bf16.gmra.mrb[0].mxu0 %v2100
    %v2409 = vpop.f32.mrb[0].mxu0
    %v2410 = vadd.f32 %v2370, %v2409
    %v2411 = vpop.f32.mrb[0].mxu0
    %v2412 = vpop.f32.mrb[0].mxu0
    %v2413 = vpop.f32.mrb[0].mxu0
    %2414 = vdwg.mxu0
    %2415 = vmatprep.subr.bf16.mxu0 %v81
    %2416 = vmatpush1.bf16.xpose.msra.mxu0 %v80
    %2417 = vmatprep.subr.bf16.mxu0 0
    %2418 = vmatpush1.bf16.xpose.msra.mxu0 0
    %2419 = vmatprep.subr.bf16.mxu0 0
    %2420 = vmatpush1.bf16.xpose.msra.mxu0 0
    %2421 = vmatprep.subr.bf16.mxu0 0
    %2422 = vmatpush1.bf16.xpose.msra.mxu0 0
    %2423 = vmatprep.subr.bf16.mxu0 0
    %2424 = vmatpush1.bf16.xpose.msra.mxu0 0
    %2425 = vmatprep.subr.bf16.mxu0 0
    %2426 = vmatpush1.bf16.xpose.msra.mxu0 0
    %2427 = vmatprep.subr.bf16.mxu0 0
    %2428 = vmatpush1.bf16.xpose.msra.mxu0 0
    %2429 = vmatprep.subr.bf16.mxu0 0
    %2430 = vmatpush1.bf16.xpose.msra.mxu0 0
    %2431 = vmatprep.subr.bf16.mxu0 0
    %2432 = vmatpush1.bf16.xpose.msra.mxu0 0
    %2433 = vmatprep.subr.bf16.mxu0 0
    %2434 = vmatpush1.bf16.xpose.msra.mxu0 0
    %2435 = vmatprep.subr.bf16.mxu0 0
    %2436 = vmatpush1.bf16.xpose.msra.mxu0 0
    %2437 = vmatprep.subr.bf16.mxu0 0
    %2438 = vmatpush1.bf16.xpose.msra.mxu0 0
    %2439 = vmatprep.subr.bf16.mxu0 0
    %2440 = vmatpush1.bf16.xpose.msra.mxu0 0
    %2441 = vmatprep.subr.bf16.mxu0 0
    %2442 = vmatpush1.bf16.xpose.msra.mxu0 0
    %2443 = vmatprep.subr.bf16.mxu0 0
    %2444 = vmatpush1.bf16.xpose.msra.mxu0 0
    %2445 = vmatprep.subr.bf16.mxu0 0
    %2446 = vmatpush1.bf16.xpose.msra.mxu0 0
    %2447 = vmatprep.mubr.bf16.mxu0 %v2118
    %2448 = vmatmul.mubr.bf16.gmra.mrb[0].mxu0 %v2116
    %v2449 = vpop.f32.mrb[0].mxu0
    %v2450 = vadd.f32 %v2410, %v2449
    %v2451 = vpop.f32.mrb[0].mxu0
    %v2452 = vpop.f32.mrb[0].mxu0
    %v2453 = vpop.f32.mrb[0].mxu0
    %2454 = vdwg.mxu0
    %vm2455 = vcmask 57344
    %2456 = vst.msk [vmem:[%s15] sm:$0x1] %vm2455, %v2450
    %v2457 = vld [vmem:[%s4] sm:$0xff]
    %v2458 = vld [vmem:[%s4 + $0x8] sm:$0xff]
    %v2459 = vld [vmem:[%s4 + $0x10] sm:$0xff]
    %v2460 = vld [vmem:[%s4 + $0x18] sm:$0xff]
    %v2461 = vld [vmem:[%s4 + $0x20] sm:$0xff]
    %v2462 = vld [vmem:[%s4 + $0x28] sm:$0xff]
    %v2463 = vld [vmem:[%s4 + $0x30] sm:$0xff]
    %v2464 = vld [vmem:[%s4 + $0x38] sm:$0xff]
    %v2465 = vld [vmem:[%s4 + $0x40] sm:$0xff]
    %v2466 = vld [vmem:[%s4 + $0x48] sm:$0xff]
    %v2467 = vld [vmem:[%s4 + $0x50] sm:$0xff]
    %v2468 = vld [vmem:[%s4 + $0x58] sm:$0xff]
    %v2469 = vld [vmem:[%s4 + $0x60] sm:$0xff]
    %v2470 = vld [vmem:[%s4 + $0x68] sm:$0xff]
    %v2471 = vld [vmem:[%s4 + $0x70] sm:$0xff]
    %v2472 = vld [vmem:[%s4 + $0x78] sm:$0xff]
    %v2473 = vld [vmem:[%s4 + $0x80] sm:$0xff]
    %v2474 = vld [vmem:[%s4 + $0x88] sm:$0xff]
    %v2475 = vld [vmem:[%s4 + $0x90] sm:$0xff]
    %v2476 = vld [vmem:[%s4 + $0x98] sm:$0xff]
    %v2477 = vld [vmem:[%s4 + $0xa0] sm:$0xff]
    %v2478 = vld [vmem:[%s4 + $0xa8] sm:$0xff]
    %v2479 = vld [vmem:[%s4 + $0xb0] sm:$0xff]
    %v2480 = vld [vmem:[%s4 + $0xb8] sm:$0xff]
    %v2481 = vld [vmem:[%s4 + $0xc0] sm:$0xff]
    %v2482 = vld [vmem:[%s4 + $0xc8] sm:$0xff]
    %v2483 = vld [vmem:[%s4 + $0xd0] sm:$0xff]
    %v2484 = vld [vmem:[%s4 + $0xd8] sm:$0xff]
    %v2485 = vld [vmem:[%s4 + $0xe0] sm:$0xff]
    %v2486 = vld [vmem:[%s4 + $0xe8] sm:$0xff]
    %v2487 = vld [vmem:[%s4 + $0xf0] sm:$0xff]
    %v2488 = vld [vmem:[%s4 + $0xf8] sm:$0xff]
    %v2489 = vpack.c.bf16 %v2465, %v2457
    %v2490 = vpack.c.bf16 %v2466, %v2458
    %v2491 = vpack.c.bf16 %v2467, %v2459
    %v2492 = vpack.c.bf16 %v2468, %v2460
    %v2493 = vpack.c.bf16 %v2469, %v2461
    %v2494 = vpack.c.bf16 %v2470, %v2462
    %v2495 = vpack.c.bf16 %v2471, %v2463
    %v2496 = vpack.c.bf16 %v2472, %v2464
    %v2497 = vpack.c.bf16 %v2481, %v2473
    %v2498 = vpack.c.bf16 %v2482, %v2474
    %v2499 = vpack.c.bf16 %v2483, %v2475
    %v2500 = vpack.c.bf16 %v2484, %v2476
    %v2501 = vpack.c.bf16 %v2485, %v2477
    %v2502 = vpack.c.bf16 %v2486, %v2478
    %v2503 = vpack.c.bf16 %v2487, %v2479
    %v2504 = vpack.c.bf16 %v2488, %v2480
    %v2505 = vld [vmem:[%s5] sm:$0xff]
    %v2506 = vld [vmem:[%s5 + $0x8] sm:$0xff]
    %v2507 = vld [vmem:[%s5 + $0x10] sm:$0xff]
    %v2508 = vld [vmem:[%s5 + $0x18] sm:$0xff]
    %v2509 = vld [vmem:[%s5 + $0x20] sm:$0xff]
    %v2510 = vld [vmem:[%s5 + $0x28] sm:$0xff]
    %v2511 = vld [vmem:[%s5 + $0x30] sm:$0xff]
    %v2512 = vld [vmem:[%s5 + $0x38] sm:$0xff]
    %v2513 = vld [vmem:[%s5 + $0x40] sm:$0xff]
    %v2514 = vld [vmem:[%s5 + $0x48] sm:$0xff]
    %v2515 = vld [vmem:[%s5 + $0x50] sm:$0xff]
    %v2516 = vld [vmem:[%s5 + $0x58] sm:$0xff]
    %v2517 = vld [vmem:[%s5 + $0x60] sm:$0xff]
    %v2518 = vld [vmem:[%s5 + $0x68] sm:$0xff]
    %v2519 = vld [vmem:[%s5 + $0x70] sm:$0xff]
    %v2520 = vld [vmem:[%s5 + $0x78] sm:$0xff]
    %v2521 = vld [vmem:[%s5 + $0x80] sm:$0xff]
    %v2522 = vld [vmem:[%s5 + $0x88] sm:$0xff]
    %v2523 = vld [vmem:[%s5 + $0x90] sm:$0xff]
    %v2524 = vld [vmem:[%s5 + $0x98] sm:$0xff]
    %v2525 = vld [vmem:[%s5 + $0xa0] sm:$0xff]
    %v2526 = vld [vmem:[%s5 + $0xa8] sm:$0xff]
    %v2527 = vld [vmem:[%s5 + $0xb0] sm:$0xff]
    %v2528 = vld [vmem:[%s5 + $0xb8] sm:$0xff]
    %v2529 = vld [vmem:[%s5 + $0xc0] sm:$0xff]
    %v2530 = vld [vmem:[%s5 + $0xc8] sm:$0xff]
    %v2531 = vld [vmem:[%s5 + $0xd0] sm:$0xff]
    %v2532 = vld [vmem:[%s5 + $0xd8] sm:$0xff]
    %v2533 = vld [vmem:[%s5 + $0xe0] sm:$0xff]
    %v2534 = vld [vmem:[%s5 + $0xe8] sm:$0xff]
    %v2535 = vld [vmem:[%s5 + $0xf0] sm:$0xff]
    %v2536 = vld [vmem:[%s5 + $0xf8] sm:$0xff]
    %v2537 = vld [vmem:[%s5 + $0x100] sm:$0xff]
    %v2538 = vld [vmem:[%s5 + $0x108] sm:$0xff]
    %v2539 = vld [vmem:[%s5 + $0x110] sm:$0xff]
    %v2540 = vld [vmem:[%s5 + $0x118] sm:$0xff]
    %v2541 = vld [vmem:[%s5 + $0x120] sm:$0xff]
    %v2542 = vld [vmem:[%s5 + $0x128] sm:$0xff]
    %v2543 = vld [vmem:[%s5 + $0x130] sm:$0xff]
    %v2544 = vld [vmem:[%s5 + $0x138] sm:$0xff]
    %v2545 = vld [vmem:[%s5 + $0x140] sm:$0xff]
    %v2546 = vld [vmem:[%s5 + $0x148] sm:$0xff]
    %v2547 = vld [vmem:[%s5 + $0x150] sm:$0xff]
    %v2548 = vld [vmem:[%s5 + $0x158] sm:$0xff]
    %v2549 = vld [vmem:[%s5 + $0x160] sm:$0xff]
    %v2550 = vld [vmem:[%s5 + $0x168] sm:$0xff]
    %v2551 = vld [vmem:[%s5 + $0x170] sm:$0xff]
    %v2552 = vld [vmem:[%s5 + $0x178] sm:$0xff]
    %v2553 = vld [vmem:[%s5 + $0x180] sm:$0xff]
    %v2554 = vld [vmem:[%s5 + $0x188] sm:$0xff]
    %v2555 = vld [vmem:[%s5 + $0x190] sm:$0xff]
    %v2556 = vld [vmem:[%s5 + $0x198] sm:$0xff]
    %v2557 = vld [vmem:[%s5 + $0x1a0] sm:$0xff]
    %v2558 = vld [vmem:[%s5 + $0x1a8] sm:$0xff]
    %v2559 = vld [vmem:[%s5 + $0x1b0] sm:$0xff]
    %v2560 = vld [vmem:[%s5 + $0x1b8] sm:$0xff]
    %v2561 = vld [vmem:[%s5 + $0x1c0] sm:$0xff]
    %v2562 = vld [vmem:[%s5 + $0x1c8] sm:$0xff]
    %v2563 = vld [vmem:[%s5 + $0x1d0] sm:$0xff]
    %v2564 = vld [vmem:[%s5 + $0x1d8] sm:$0xff]
    %v2565 = vld [vmem:[%s5 + $0x1e0] sm:$0xff]
    %v2566 = vld [vmem:[%s5 + $0x1e8] sm:$0xff]
    %v2567 = vld [vmem:[%s5 + $0x1f0] sm:$0xff]
    %v2568 = vld [vmem:[%s5 + $0x1f8] sm:$0xff]
    %v2569 = vld [vmem:[%s5 + $0x200] sm:$0xff]
    %v2570 = vld [vmem:[%s5 + $0x208] sm:$0xff]
    %v2571 = vld [vmem:[%s5 + $0x210] sm:$0xff]
    %v2572 = vld [vmem:[%s5 + $0x218] sm:$0xff]
    %v2573 = vld [vmem:[%s5 + $0x220] sm:$0xff]
    %v2574 = vld [vmem:[%s5 + $0x228] sm:$0xff]
    %v2575 = vld [vmem:[%s5 + $0x230] sm:$0xff]
    %v2576 = vld [vmem:[%s5 + $0x238] sm:$0xff]
    %v2577 = vld [vmem:[%s5 + $0x240] sm:$0xff]
    %v2578 = vld [vmem:[%s5 + $0x248] sm:$0xff]
    %v2579 = vld [vmem:[%s5 + $0x250] sm:$0xff]
    %v2580 = vld [vmem:[%s5 + $0x258] sm:$0xff]
    %v2581 = vld [vmem:[%s5 + $0x260] sm:$0xff]
    %v2582 = vld [vmem:[%s5 + $0x268] sm:$0xff]
    %v2583 = vld [vmem:[%s5 + $0x270] sm:$0xff]
    %v2584 = vld [vmem:[%s5 + $0x278] sm:$0xff]
    %v2585 = vld [vmem:[%s5 + $0x280] sm:$0xff]
    %v2586 = vld [vmem:[%s5 + $0x288] sm:$0xff]
    %v2587 = vld [vmem:[%s5 + $0x290] sm:$0xff]
    %v2588 = vld [vmem:[%s5 + $0x298] sm:$0xff]
    %v2589 = vld [vmem:[%s5 + $0x2a0] sm:$0xff]
    %v2590 = vld [vmem:[%s5 + $0x2a8] sm:$0xff]
    %v2591 = vld [vmem:[%s5 + $0x2b0] sm:$0xff]
    %v2592 = vld [vmem:[%s5 + $0x2b8] sm:$0xff]
    %v2593 = vld [vmem:[%s5 + $0x2c0] sm:$0xff]
    %v2594 = vld [vmem:[%s5 + $0x2c8] sm:$0xff]
    %v2595 = vld [vmem:[%s5 + $0x2d0] sm:$0xff]
    %v2596 = vld [vmem:[%s5 + $0x2d8] sm:$0xff]
    %v2597 = vld [vmem:[%s5 + $0x2e0] sm:$0xff]
    %v2598 = vld [vmem:[%s5 + $0x2e8] sm:$0xff]
    %v2599 = vld [vmem:[%s5 + $0x2f0] sm:$0xff]
    %v2600 = vld [vmem:[%s5 + $0x2f8] sm:$0xff]
    %v2601 = vld [vmem:[%s5 + $0x300] sm:$0xff]
    %v2602 = vld [vmem:[%s5 + $0x308] sm:$0xff]
    %v2603 = vld [vmem:[%s5 + $0x310] sm:$0xff]
    %v2604 = vld [vmem:[%s5 + $0x318] sm:$0xff]
    %v2605 = vld [vmem:[%s5 + $0x320] sm:$0xff]
    %v2606 = vld [vmem:[%s5 + $0x328] sm:$0xff]
    %v2607 = vld [vmem:[%s5 + $0x330] sm:$0xff]
    %v2608 = vld [vmem:[%s5 + $0x338] sm:$0xff]
    %v2609 = vld [vmem:[%s5 + $0x340] sm:$0xff]
    %v2610 = vld [vmem:[%s5 + $0x348] sm:$0xff]
    %v2611 = vld [vmem:[%s5 + $0x350] sm:$0xff]
    %v2612 = vld [vmem:[%s5 + $0x358] sm:$0xff]
    %v2613 = vld [vmem:[%s5 + $0x360] sm:$0xff]
    %v2614 = vld [vmem:[%s5 + $0x368] sm:$0xff]
    %v2615 = vld [vmem:[%s5 + $0x370] sm:$0xff]
    %v2616 = vld [vmem:[%s5 + $0x378] sm:$0xff]
    %v2617 = vld [vmem:[%s5 + $0x380] sm:$0xff]
    %v2618 = vld [vmem:[%s5 + $0x388] sm:$0xff]
    %v2619 = vld [vmem:[%s5 + $0x390] sm:$0xff]
    %v2620 = vld [vmem:[%s5 + $0x398] sm:$0xff]
    %v2621 = vld [vmem:[%s5 + $0x3a0] sm:$0xff]
    %v2622 = vld [vmem:[%s5 + $0x3a8] sm:$0xff]
    %v2623 = vld [vmem:[%s5 + $0x3b0] sm:$0xff]
    %v2624 = vld [vmem:[%s5 + $0x3b8] sm:$0xff]
    %v2625 = vld [vmem:[%s5 + $0x3c0] sm:$0xff]
    %v2626 = vld [vmem:[%s5 + $0x3c8] sm:$0xff]
    %v2627 = vld [vmem:[%s5 + $0x3d0] sm:$0xff]
    %v2628 = vld [vmem:[%s5 + $0x3d8] sm:$0xff]
    %v2629 = vld [vmem:[%s5 + $0x3e0] sm:$0xff]
    %v2630 = vld [vmem:[%s5 + $0x3e8] sm:$0xff]
    %v2631 = vld [vmem:[%s5 + $0x3f0] sm:$0xff]
    %v2632 = vld [vmem:[%s5 + $0x3f8] sm:$0xff]
    %v2761 = vunpack.c.l.b16 %v2505
    %v2762 = vunpack.c.h.b16 %v2505
    %v2763 = vunpack.c.l.b16 %v2506
    %v2764 = vunpack.c.h.b16 %v2506
    %v2765 = vunpack.c.l.b16 %v2507
    %v2766 = vunpack.c.h.b16 %v2507
    %v2767 = vunpack.c.l.b16 %v2508
    %v2768 = vunpack.c.h.b16 %v2508
    %v2769 = vunpack.c.l.b16 %v2509
    %v2770 = vunpack.c.h.b16 %v2509
    %v2771 = vunpack.c.l.b16 %v2510
    %v2772 = vunpack.c.h.b16 %v2510
    %v2773 = vunpack.c.l.b16 %v2511
    %v2774 = vunpack.c.h.b16 %v2511
    %v2775 = vunpack.c.l.b16 %v2512
    %v2776 = vunpack.c.h.b16 %v2512
    %v2777 = vunpack.c.l.b16 %v2513
    %v2778 = vunpack.c.h.b16 %v2513
    %v2779 = vunpack.c.l.b16 %v2514
    %v2780 = vunpack.c.h.b16 %v2514
    %v2781 = vunpack.c.l.b16 %v2515
    %v2782 = vunpack.c.h.b16 %v2515
    %v2783 = vunpack.c.l.b16 %v2516
    %v2784 = vunpack.c.h.b16 %v2516
    %v2785 = vunpack.c.l.b16 %v2517
    %v2786 = vunpack.c.h.b16 %v2517
    %v2787 = vunpack.c.l.b16 %v2518
    %v2788 = vunpack.c.h.b16 %v2518
    %v2789 = vunpack.c.l.b16 %v2519
    %v2790 = vunpack.c.h.b16 %v2519
    %v2791 = vunpack.c.l.b16 %v2520
    %v2792 = vunpack.c.h.b16 %v2520
    %v2793 = vunpack.c.l.b16 %v2521
    %v2794 = vunpack.c.h.b16 %v2521
    %v2795 = vunpack.c.l.b16 %v2522
    %v2796 = vunpack.c.h.b16 %v2522
    %v2797 = vunpack.c.l.b16 %v2523
    %v2798 = vunpack.c.h.b16 %v2523
    %v2799 = vunpack.c.l.b16 %v2524
    %v2800 = vunpack.c.h.b16 %v2524
    %v2801 = vunpack.c.l.b16 %v2525
    %v2802 = vunpack.c.h.b16 %v2525
    %v2803 = vunpack.c.l.b16 %v2526
    %v2804 = vunpack.c.h.b16 %v2526
    %v2805 = vunpack.c.l.b16 %v2527
    %v2806 = vunpack.c.h.b16 %v2527
    %v2807 = vunpack.c.l.b16 %v2528
    %v2808 = vunpack.c.h.b16 %v2528
    %v2809 = vunpack.c.l.b16 %v2529
    %v2810 = vunpack.c.h.b16 %v2529
    %v2811 = vunpack.c.l.b16 %v2530
    %v2812 = vunpack.c.h.b16 %v2530
    %v2813 = vunpack.c.l.b16 %v2531
    %v2814 = vunpack.c.h.b16 %v2531
    %v2815 = vunpack.c.l.b16 %v2532
    %v2816 = vunpack.c.h.b16 %v2532
    %v2817 = vunpack.c.l.b16 %v2533
    %v2818 = vunpack.c.h.b16 %v2533
    %v2819 = vunpack.c.l.b16 %v2534
    %v2820 = vunpack.c.h.b16 %v2534
    %v2821 = vunpack.c.l.b16 %v2535
    %v2822 = vunpack.c.h.b16 %v2535
    %v2823 = vunpack.c.l.b16 %v2536
    %v2824 = vunpack.c.h.b16 %v2536
    %v2825 = vunpack.c.l.b16 %v2537
    %v2826 = vunpack.c.h.b16 %v2537
    %v2827 = vunpack.c.l.b16 %v2538
    %v2828 = vunpack.c.h.b16 %v2538
    %v2829 = vunpack.c.l.b16 %v2539
    %v2830 = vunpack.c.h.b16 %v2539
    %v2831 = vunpack.c.l.b16 %v2540
    %v2832 = vunpack.c.h.b16 %v2540
    %v2833 = vunpack.c.l.b16 %v2541
    %v2834 = vunpack.c.h.b16 %v2541
    %v2835 = vunpack.c.l.b16 %v2542
    %v2836 = vunpack.c.h.b16 %v2542
    %v2837 = vunpack.c.l.b16 %v2543
    %v2838 = vunpack.c.h.b16 %v2543
    %v2839 = vunpack.c.l.b16 %v2544
    %v2840 = vunpack.c.h.b16 %v2544
    %v2841 = vunpack.c.l.b16 %v2545
    %v2842 = vunpack.c.h.b16 %v2545
    %v2843 = vunpack.c.l.b16 %v2546
    %v2844 = vunpack.c.h.b16 %v2546
    %v2845 = vunpack.c.l.b16 %v2547
    %v2846 = vunpack.c.h.b16 %v2547
    %v2847 = vunpack.c.l.b16 %v2548
    %v2848 = vunpack.c.h.b16 %v2548
    %v2849 = vunpack.c.l.b16 %v2549
    %v2850 = vunpack.c.h.b16 %v2549
    %v2851 = vunpack.c.l.b16 %v2550
    %v2852 = vunpack.c.h.b16 %v2550
    %v2853 = vunpack.c.l.b16 %v2551
    %v2854 = vunpack.c.h.b16 %v2551
    %v2855 = vunpack.c.l.b16 %v2552
    %v2856 = vunpack.c.h.b16 %v2552
    %v2857 = vunpack.c.l.b16 %v2553
    %v2858 = vunpack.c.h.b16 %v2553
    %v2859 = vunpack.c.l.b16 %v2554
    %v2860 = vunpack.c.h.b16 %v2554
    %v2861 = vunpack.c.l.b16 %v2555
    %v2862 = vunpack.c.h.b16 %v2555
    %v2863 = vunpack.c.l.b16 %v2556
    %v2864 = vunpack.c.h.b16 %v2556
    %v2865 = vunpack.c.l.b16 %v2557
    %v2866 = vunpack.c.h.b16 %v2557
    %v2867 = vunpack.c.l.b16 %v2558
    %v2868 = vunpack.c.h.b16 %v2558
    %v2869 = vunpack.c.l.b16 %v2559
    %v2870 = vunpack.c.h.b16 %v2559
    %v2871 = vunpack.c.l.b16 %v2560
    %v2872 = vunpack.c.h.b16 %v2560
    %v2873 = vunpack.c.l.b16 %v2561
    %v2874 = vunpack.c.h.b16 %v2561
    %v2875 = vunpack.c.l.b16 %v2562
    %v2876 = vunpack.c.h.b16 %v2562
    %v2877 = vunpack.c.l.b16 %v2563
    %v2878 = vunpack.c.h.b16 %v2563
    %v2879 = vunpack.c.l.b16 %v2564
    %v2880 = vunpack.c.h.b16 %v2564
    %v2881 = vunpack.c.l.b16 %v2565
    %v2882 = vunpack.c.h.b16 %v2565
    %v2883 = vunpack.c.l.b16 %v2566
    %v2884 = vunpack.c.h.b16 %v2566
    %v2885 = vunpack.c.l.b16 %v2567
    %v2886 = vunpack.c.h.b16 %v2567
    %v2887 = vunpack.c.l.b16 %v2568
    %v2888 = vunpack.c.h.b16 %v2568
    %v2889 = vunpack.c.l.b16 %v2569
    %v2890 = vunpack.c.h.b16 %v2569
    %v2891 = vunpack.c.l.b16 %v2570
    %v2892 = vunpack.c.h.b16 %v2570
    %v2893 = vunpack.c.l.b16 %v2571
    %v2894 = vunpack.c.h.b16 %v2571
    %v2895 = vunpack.c.l.b16 %v2572
    %v2896 = vunpack.c.h.b16 %v2572
    %v2897 = vunpack.c.l.b16 %v2573
    %v2898 = vunpack.c.h.b16 %v2573
    %v2899 = vunpack.c.l.b16 %v2574
    %v2900 = vunpack.c.h.b16 %v2574
    %v2901 = vunpack.c.l.b16 %v2575
    %v2902 = vunpack.c.h.b16 %v2575
    %v2903 = vunpack.c.l.b16 %v2576
    %v2904 = vunpack.c.h.b16 %v2576
    %v2905 = vunpack.c.l.b16 %v2577
    %v2906 = vunpack.c.h.b16 %v2577
    %v2907 = vunpack.c.l.b16 %v2578
    %v2908 = vunpack.c.h.b16 %v2578
    %v2909 = vunpack.c.l.b16 %v2579
    %v2910 = vunpack.c.h.b16 %v2579
    %v2911 = vunpack.c.l.b16 %v2580
    %v2912 = vunpack.c.h.b16 %v2580
    %v2913 = vunpack.c.l.b16 %v2581
    %v2914 = vunpack.c.h.b16 %v2581
    %v2915 = vunpack.c.l.b16 %v2582
    %v2916 = vunpack.c.h.b16 %v2582
    %v2917 = vunpack.c.l.b16 %v2583
    %v2918 = vunpack.c.h.b16 %v2583
    %v2919 = vunpack.c.l.b16 %v2584
    %v2920 = vunpack.c.h.b16 %v2584
    %v2921 = vunpack.c.l.b16 %v2585
    %v2922 = vunpack.c.h.b16 %v2585
    %v2923 = vunpack.c.l.b16 %v2586
    %v2924 = vunpack.c.h.b16 %v2586
    %v2925 = vunpack.c.l.b16 %v2587
    %v2926 = vunpack.c.h.b16 %v2587
    %v2927 = vunpack.c.l.b16 %v2588
    %v2928 = vunpack.c.h.b16 %v2588
    %v2929 = vunpack.c.l.b16 %v2589
    %v2930 = vunpack.c.h.b16 %v2589
    %v2931 = vunpack.c.l.b16 %v2590
    %v2932 = vunpack.c.h.b16 %v2590
    %v2933 = vunpack.c.l.b16 %v2591
    %v2934 = vunpack.c.h.b16 %v2591
    %v2935 = vunpack.c.l.b16 %v2592
    %v2936 = vunpack.c.h.b16 %v2592
    %v2937 = vunpack.c.l.b16 %v2593
    %v2938 = vunpack.c.h.b16 %v2593
    %v2939 = vunpack.c.l.b16 %v2594
    %v2940 = vunpack.c.h.b16 %v2594
    %v2941 = vunpack.c.l.b16 %v2595
    %v2942 = vunpack.c.h.b16 %v2595
    %v2943 = vunpack.c.l.b16 %v2596
    %v2944 = vunpack.c.h.b16 %v2596
    %v2945 = vunpack.c.l.b16 %v2597
    %v2946 = vunpack.c.h.b16 %v2597
    %v2947 = vunpack.c.l.b16 %v2598
    %v2948 = vunpack.c.h.b16 %v2598
    %v2949 = vunpack.c.l.b16 %v2599
    %v2950 = vunpack.c.h.b16 %v2599
    %v2951 = vunpack.c.l.b16 %v2600
    %v2952 = vunpack.c.h.b16 %v2600
    %v2953 = vunpack.c.l.b16 %v2601
    %v2954 = vunpack.c.h.b16 %v2601
    %v2955 = vunpack.c.l.b16 %v2602
    %v2956 = vunpack.c.h.b16 %v2602
    %v2957 = vunpack.c.l.b16 %v2603
    %v2958 = vunpack.c.h.b16 %v2603
    %v2959 = vunpack.c.l.b16 %v2604
    %v2960 = vunpack.c.h.b16 %v2604
    %v2961 = vunpack.c.l.b16 %v2605
    %v2962 = vunpack.c.h.b16 %v2605
    %v2963 = vunpack.c.l.b16 %v2606
    %v2964 = vunpack.c.h.b16 %v2606
    %v2965 = vunpack.c.l.b16 %v2607
    %v2966 = vunpack.c.h.b16 %v2607
    %v2967 = vunpack.c.l.b16 %v2608
    %v2968 = vunpack.c.h.b16 %v2608
    %v2969 = vunpack.c.l.b16 %v2609
    %v2970 = vunpack.c.h.b16 %v2609
    %v2971 = vunpack.c.l.b16 %v2610
    %v2972 = vunpack.c.h.b16 %v2610
    %v2973 = vunpack.c.l.b16 %v2611
    %v2974 = vunpack.c.h.b16 %v2611
    %v2975 = vunpack.c.l.b16 %v2612
    %v2976 = vunpack.c.h.b16 %v2612
    %v2977 = vunpack.c.l.b16 %v2613
    %v2978 = vunpack.c.h.b16 %v2613
    %v2979 = vunpack.c.l.b16 %v2614
    %v2980 = vunpack.c.h.b16 %v2614
    %v2981 = vunpack.c.l.b16 %v2615
    %v2982 = vunpack.c.h.b16 %v2615
    %v2983 = vunpack.c.l.b16 %v2616
    %v2984 = vunpack.c.h.b16 %v2616
    %v2985 = vunpack.c.l.b16 %v2617
    %v2986 = vunpack.c.h.b16 %v2617
    %v2987 = vunpack.c.l.b16 %v2618
    %v2988 = vunpack.c.h.b16 %v2618
    %v2989 = vunpack.c.l.b16 %v2619
    %v2990 = vunpack.c.h.b16 %v2619
    %v2991 = vunpack.c.l.b16 %v2620
    %v2992 = vunpack.c.h.b16 %v2620
    %v2993 = vunpack.c.l.b16 %v2621
    %v2994 = vunpack.c.h.b16 %v2621
    %v2995 = vunpack.c.l.b16 %v2622
    %v2996 = vunpack.c.h.b16 %v2622
    %v2997 = vunpack.c.l.b16 %v2623
    %v2998 = vunpack.c.h.b16 %v2623
    %v2999 = vunpack.c.l.b16 %v2624
    %v3000 = vunpack.c.h.b16 %v2624
    %v3001 = vunpack.c.l.b16 %v2625
    %v3002 = vunpack.c.h.b16 %v2625
    %v3003 = vunpack.c.l.b16 %v2626
    %v3004 = vunpack.c.h.b16 %v2626
    %v3005 = vunpack.c.l.b16 %v2627
    %v3006 = vunpack.c.h.b16 %v2627
    %v3007 = vunpack.c.l.b16 %v2628
    %v3008 = vunpack.c.h.b16 %v2628
    %v3009 = vunpack.c.l.b16 %v2629
    %v3010 = vunpack.c.h.b16 %v2629
    %v3011 = vunpack.c.l.b16 %v2630
    %v3012 = vunpack.c.h.b16 %v2630
    %v3013 = vunpack.c.l.b16 %v2631
    %v3014 = vunpack.c.h.b16 %v2631
    %v3015 = vunpack.c.l.b16 %v2632
    %v3016 = vunpack.c.h.b16 %v2632
    %v3017 = vpack.c.b16 %v2763, %v2761
    %v3018 = vpack.c.b16 %v2764, %v2762
    %v3019 = vpack.c.b16 %v2767, %v2765
    %v3020 = vpack.c.b16 %v2768, %v2766
    %v3021 = vpack.c.b16 %v2771, %v2769
    %v3022 = vpack.c.b16 %v2772, %v2770
    %v3023 = vpack.c.b16 %v2775, %v2773
    %v3024 = vpack.c.b16 %v2776, %v2774
    %v3025 = vpack.c.b16 %v2779, %v2777
    %v3026 = vpack.c.b16 %v2780, %v2778
    %v3027 = vpack.c.b16 %v2783, %v2781
    %v3028 = vpack.c.b16 %v2784, %v2782
    %v3029 = vpack.c.b16 %v2787, %v2785
    %v3030 = vpack.c.b16 %v2788, %v2786
    %v3031 = vpack.c.b16 %v2791, %v2789
    %v3032 = vpack.c.b16 %v2792, %v2790
    %v3033 = vpack.c.b16 %v2795, %v2793
    %v3034 = vpack.c.b16 %v2796, %v2794
    %v3035 = vpack.c.b16 %v2799, %v2797
    %v3036 = vpack.c.b16 %v2800, %v2798
    %v3037 = vpack.c.b16 %v2803, %v2801
    %v3038 = vpack.c.b16 %v2804, %v2802
    %v3039 = vpack.c.b16 %v2807, %v2805
    %v3040 = vpack.c.b16 %v2808, %v2806
    %v3041 = vpack.c.b16 %v2811, %v2809
    %v3042 = vpack.c.b16 %v2812, %v2810
    %v3043 = vpack.c.b16 %v2815, %v2813
    %v3044 = vpack.c.b16 %v2816, %v2814
    %v3045 = vpack.c.b16 %v2819, %v2817
    %v3046 = vpack.c.b16 %v2820, %v2818
    %v3047 = vpack.c.b16 %v2823, %v2821
    %v3048 = vpack.c.b16 %v2824, %v2822
    %v3049 = vpack.c.b16 %v2827, %v2825
    %v3050 = vpack.c.b16 %v2828, %v2826
    %v3051 = vpack.c.b16 %v2831, %v2829
    %v3052 = vpack.c.b16 %v2832, %v2830
    %v3053 = vpack.c.b16 %v2835, %v2833
    %v3054 = vpack.c.b16 %v2836, %v2834
    %v3055 = vpack.c.b16 %v2839, %v2837
    %v3056 = vpack.c.b16 %v2840, %v2838
    %v3057 = vpack.c.b16 %v2843, %v2841
    %v3058 = vpack.c.b16 %v2844, %v2842
    %v3059 = vpack.c.b16 %v2847, %v2845
    %v3060 = vpack.c.b16 %v2848, %v2846
    %v3061 = vpack.c.b16 %v2851, %v2849
    %v3062 = vpack.c.b16 %v2852, %v2850
    %v3063 = vpack.c.b16 %v2855, %v2853
    %v3064 = vpack.c.b16 %v2856, %v2854
    %v3065 = vpack.c.b16 %v2859, %v2857
    %v3066 = vpack.c.b16 %v2860, %v2858
    %v3067 = vpack.c.b16 %v2863, %v2861
    %v3068 = vpack.c.b16 %v2864, %v2862
    %v3069 = vpack.c.b16 %v2867, %v2865
    %v3070 = vpack.c.b16 %v2868, %v2866
    %v3071 = vpack.c.b16 %v2871, %v2869
    %v3072 = vpack.c.b16 %v2872, %v2870
    %v3073 = vpack.c.b16 %v2875, %v2873
    %v3074 = vpack.c.b16 %v2876, %v2874
    %v3075 = vpack.c.b16 %v2879, %v2877
    %v3076 = vpack.c.b16 %v2880, %v2878
    %v3077 = vpack.c.b16 %v2883, %v2881
    %v3078 = vpack.c.b16 %v2884, %v2882
    %v3079 = vpack.c.b16 %v2887, %v2885
    %v3080 = vpack.c.b16 %v2888, %v2886
    %v3081 = vpack.c.b16 %v2891, %v2889
    %v3082 = vpack.c.b16 %v2892, %v2890
    %v3083 = vpack.c.b16 %v2895, %v2893
    %v3084 = vpack.c.b16 %v2896, %v2894
    %v3085 = vpack.c.b16 %v2899, %v2897
    %v3086 = vpack.c.b16 %v2900, %v2898
    %v3087 = vpack.c.b16 %v2903, %v2901
    %v3088 = vpack.c.b16 %v2904, %v2902
    %v3089 = vpack.c.b16 %v2907, %v2905
    %v3090 = vpack.c.b16 %v2908, %v2906
    %v3091 = vpack.c.b16 %v2911, %v2909
    %v3092 = vpack.c.b16 %v2912, %v2910
    %v3093 = vpack.c.b16 %v2915, %v2913
    %v3094 = vpack.c.b16 %v2916, %v2914
    %v3095 = vpack.c.b16 %v2919, %v2917
    %v3096 = vpack.c.b16 %v2920, %v2918
    %v3097 = vpack.c.b16 %v2923, %v2921
    %v3098 = vpack.c.b16 %v2924, %v2922
    %v3099 = vpack.c.b16 %v2927, %v2925
    %v3100 = vpack.c.b16 %v2928, %v2926
    %v3101 = vpack.c.b16 %v2931, %v2929
    %v3102 = vpack.c.b16 %v2932, %v2930
    %v3103 = vpack.c.b16 %v2935, %v2933
    %v3104 = vpack.c.b16 %v2936, %v2934
    %v3105 = vpack.c.b16 %v2939, %v2937
    %v3106 = vpack.c.b16 %v2940, %v2938
    %v3107 = vpack.c.b16 %v2943, %v2941
    %v3108 = vpack.c.b16 %v2944, %v2942
    %v3109 = vpack.c.b16 %v2947, %v2945
    %v3110 = vpack.c.b16 %v2948, %v2946
    %v3111 = vpack.c.b16 %v2951, %v2949
    %v3112 = vpack.c.b16 %v2952, %v2950
    %v3113 = vpack.c.b16 %v2955, %v2953
    %v3114 = vpack.c.b16 %v2956, %v2954
    %v3115 = vpack.c.b16 %v2959, %v2957
    %v3116 = vpack.c.b16 %v2960, %v2958
    %v3117 = vpack.c.b16 %v2963, %v2961
    %v3118 = vpack.c.b16 %v2964, %v2962
    %v3119 = vpack.c.b16 %v2967, %v2965
    %v3120 = vpack.c.b16 %v2968, %v2966
    %v3121 = vpack.c.b16 %v2971, %v2969
    %v3122 = vpack.c.b16 %v2972, %v2970
    %v3123 = vpack.c.b16 %v2975, %v2973
    %v3124 = vpack.c.b16 %v2976, %v2974
    %v3125 = vpack.c.b16 %v2979, %v2977
    %v3126 = vpack.c.b16 %v2980, %v2978
    %v3127 = vpack.c.b16 %v2983, %v2981
    %v3128 = vpack.c.b16 %v2984, %v2982
    %v3129 = vpack.c.b16 %v2987, %v2985
    %v3130 = vpack.c.b16 %v2988, %v2986
    %v3131 = vpack.c.b16 %v2991, %v2989
    %v3132 = vpack.c.b16 %v2992, %v2990
    %v3133 = vpack.c.b16 %v2995, %v2993
    %v3134 = vpack.c.b16 %v2996, %v2994
    %v3135 = vpack.c.b16 %v2999, %v2997
    %v3136 = vpack.c.b16 %v3000, %v2998
    %v3137 = vpack.c.b16 %v3003, %v3001
    %v3138 = vpack.c.b16 %v3004, %v3002
    %v3139 = vpack.c.b16 %v3007, %v3005
    %v3140 = vpack.c.b16 %v3008, %v3006
    %v3141 = vpack.c.b16 %v3011, %v3009
    %v3142 = vpack.c.b16 %v3012, %v3010
    %v3143 = vpack.c.b16 %v3015, %v3013
    %v3144 = vpack.c.b16 %v3016, %v3014
    %3273 = vmatprep.subr.bf16.mxu0 %v3018
    %3274 = vmatpush1.bf16.msra.mxu0 %v3017
    %3275 = vmatprep.subr.bf16.mxu0 %v3020
    %3276 = vmatpush1.bf16.msra.mxu0 %v3019
    %3277 = vmatprep.subr.bf16.mxu0 %v3022
    %3278 = vmatpush1.bf16.msra.mxu0 %v3021
    %3279 = vmatprep.subr.bf16.mxu0 %v3024
    %3280 = vmatpush1.bf16.msra.mxu0 %v3023
    %3281 = vmatprep.subr.bf16.mxu0 %v3026
    %3282 = vmatpush1.bf16.msra.mxu0 %v3025
    %3283 = vmatprep.subr.bf16.mxu0 %v3028
    %3284 = vmatpush1.bf16.msra.mxu0 %v3027
    %3285 = vmatprep.subr.bf16.mxu0 %v3030
    %3286 = vmatpush1.bf16.msra.mxu0 %v3029
    %3287 = vmatprep.subr.bf16.mxu0 %v3032
    %3288 = vmatpush1.bf16.msra.mxu0 %v3031
    %3289 = vmatprep.subr.bf16.mxu0 %v3034
    %3290 = vmatpush1.bf16.msra.mxu0 %v3033
    %3291 = vmatprep.subr.bf16.mxu0 %v3036
    %3292 = vmatpush1.bf16.msra.mxu0 %v3035
    %3293 = vmatprep.subr.bf16.mxu0 %v3038
    %3294 = vmatpush1.bf16.msra.mxu0 %v3037
    %3295 = vmatprep.subr.bf16.mxu0 %v3040
    %3296 = vmatpush1.bf16.msra.mxu0 %v3039
    %3297 = vmatprep.subr.bf16.mxu0 %v3042
    %3298 = vmatpush1.bf16.msra.mxu0 %v3041
    %3299 = vmatprep.subr.bf16.mxu0 %v3044
    %3300 = vmatpush1.bf16.msra.mxu0 %v3043
    %3301 = vmatprep.subr.bf16.mxu0 %v3046
    %3302 = vmatpush1.bf16.msra.mxu0 %v3045
    %3303 = vmatprep.subr.bf16.mxu0 %v3048
    %3304 = vmatpush1.bf16.msra.mxu0 %v3047
    %3305 = vmatprep.mubr.bf16.mxu0 %v2490
    %3306 = vmatmul.mubr.bf16.gmra.mrb[0].mxu0 %v2489
    %v3307 = vpop.f32.mrb[0].mxu0
    %v3308 = vadd.f32 0.0, %v3307
    %v3309 = vpop.f32.mrb[0].mxu0
    %v3310 = vadd.f32 0.0, %v3309
    %v3311 = vpop.f32.mrb[0].mxu0
    %v3312 = vadd.f32 0.0, %v3311
    %v3313 = vpop.f32.mrb[0].mxu0
    %v3314 = vadd.f32 0.0, %v3313
    %3315 = vmatprep.mubr.bf16.mxu0 %v2498
    %3316 = vmatmul.mubr.bf16.gmra.mrb[0].mxu0 %v2497
    %v3317 = vpop.f32.mrb[0].mxu0
    %v3318 = vadd.f32 0.0, %v3317
    %v3319 = vpop.f32.mrb[0].mxu0
    %v3320 = vadd.f32 0.0, %v3319
    %v3321 = vpop.f32.mrb[0].mxu0
    %v3322 = vadd.f32 0.0, %v3321
    %v3323 = vpop.f32.mrb[0].mxu0
    %v3324 = vadd.f32 0.0, %v3323
    %3325 = vdwg.mxu0
    %3326 = vmatprep.subr.bf16.mxu0 %v3050
    %3327 = vmatpush1.bf16.msra.mxu0 %v3049
    %3328 = vmatprep.subr.bf16.mxu0 %v3052
    %3329 = vmatpush1.bf16.msra.mxu0 %v3051
    %3330 = vmatprep.subr.bf16.mxu0 %v3054
    %3331 = vmatpush1.bf16.msra.mxu0 %v3053
    %3332 = vmatprep.subr.bf16.mxu0 %v3056
    %3333 = vmatpush1.bf16.msra.mxu0 %v3055
    %3334 = vmatprep.subr.bf16.mxu0 %v3058
    %3335 = vmatpush1.bf16.msra.mxu0 %v3057
    %3336 = vmatprep.subr.bf16.mxu0 %v3060
    %3337 = vmatpush1.bf16.msra.mxu0 %v3059
    %3338 = vmatprep.subr.bf16.mxu0 %v3062
    %3339 = vmatpush1.bf16.msra.mxu0 %v3061
    %3340 = vmatprep.subr.bf16.mxu0 %v3064
    %3341 = vmatpush1.bf16.msra.mxu0 %v3063
    %3342 = vmatprep.subr.bf16.mxu0 %v3066
    %3343 = vmatpush1.bf16.msra.mxu0 %v3065
    %3344 = vmatprep.subr.bf16.mxu0 %v3068
    %3345 = vmatpush1.bf16.msra.mxu0 %v3067
    %3346 = vmatprep.subr.bf16.mxu0 %v3070
    %3347 = vmatpush1.bf16.msra.mxu0 %v3069
    %3348 = vmatprep.subr.bf16.mxu0 %v3072
    %3349 = vmatpush1.bf16.msra.mxu0 %v3071
    %3350 = vmatprep.subr.bf16.mxu0 %v3074
    %3351 = vmatpush1.bf16.msra.mxu0 %v3073
    %3352 = vmatprep.subr.bf16.mxu0 %v3076
    %3353 = vmatpush1.bf16.msra.mxu0 %v3075
    %3354 = vmatprep.subr.bf16.mxu0 %v3078
    %3355 = vmatpush1.bf16.msra.mxu0 %v3077
    %3356 = vmatprep.subr.bf16.mxu0 %v3080
    %3357 = vmatpush1.bf16.msra.mxu0 %v3079
    %3358 = vmatprep.mubr.bf16.mxu0 %v2492
    %3359 = vmatmul.mubr.bf16.gmra.mrb[0].mxu0 %v2491
    %v3360 = vpop.f32.mrb[0].mxu0
    %v3361 = vadd.f32 %v3308, %v3360
    %v3362 = vpop.f32.mrb[0].mxu0
    %v3363 = vadd.f32 %v3310, %v3362
    %v3364 = vpop.f32.mrb[0].mxu0
    %v3365 = vadd.f32 %v3312, %v3364
    %v3366 = vpop.f32.mrb[0].mxu0
    %v3367 = vadd.f32 %v3314, %v3366
    %3368 = vmatprep.mubr.bf16.mxu0 %v2500
    %3369 = vmatmul.mubr.bf16.gmra.mrb[0].mxu0 %v2499
    %v3370 = vpop.f32.mrb[0].mxu0
    %v3371 = vadd.f32 %v3318, %v3370
    %v3372 = vpop.f32.mrb[0].mxu0
    %v3373 = vadd.f32 %v3320, %v3372
    %v3374 = vpop.f32.mrb[0].mxu0
    %v3375 = vadd.f32 %v3322, %v3374
    %v3376 = vpop.f32.mrb[0].mxu0
    %v3377 = vadd.f32 %v3324, %v3376
    %3378 = vdwg.mxu0
    %3379 = vmatprep.subr.bf16.mxu0 %v3082
    %3380 = vmatpush1.bf16.msra.mxu0 %v3081
    %3381 = vmatprep.subr.bf16.mxu0 %v3084
    %3382 = vmatpush1.bf16.msra.mxu0 %v3083
    %3383 = vmatprep.subr.bf16.mxu0 %v3086
    %3384 = vmatpush1.bf16.msra.mxu0 %v3085
    %3385 = vmatprep.subr.bf16.mxu0 %v3088
    %3386 = vmatpush1.bf16.msra.mxu0 %v3087
    %3387 = vmatprep.subr.bf16.mxu0 %v3090
    %3388 = vmatpush1.bf16.msra.mxu0 %v3089
    %3389 = vmatprep.subr.bf16.mxu0 %v3092
    %3390 = vmatpush1.bf16.msra.mxu0 %v3091
    %3391 = vmatprep.subr.bf16.mxu0 %v3094
    %3392 = vmatpush1.bf16.msra.mxu0 %v3093
    %3393 = vmatprep.subr.bf16.mxu0 %v3096
    %3394 = vmatpush1.bf16.msra.mxu0 %v3095
    %3395 = vmatprep.subr.bf16.mxu0 %v3098
    %3396 = vmatpush1.bf16.msra.mxu0 %v3097
    %3397 = vmatprep.subr.bf16.mxu0 %v3100
    %3398 = vmatpush1.bf16.msra.mxu0 %v3099
    %3399 = vmatprep.subr.bf16.mxu0 %v3102
    %3400 = vmatpush1.bf16.msra.mxu0 %v3101
    %3401 = vmatprep.subr.bf16.mxu0 %v3104
    %3402 = vmatpush1.bf16.msra.mxu0 %v3103
    %3403 = vmatprep.subr.bf16.mxu0 %v3106
    %3404 = vmatpush1.bf16.msra.mxu0 %v3105
    %3405 = vmatprep.subr.bf16.mxu0 %v3108
    %3406 = vmatpush1.bf16.msra.mxu0 %v3107
    %3407 = vmatprep.subr.bf16.mxu0 %v3110
    %3408 = vmatpush1.bf16.msra.mxu0 %v3109
    %3409 = vmatprep.subr.bf16.mxu0 %v3112
    %3410 = vmatpush1.bf16.msra.mxu0 %v3111
    %3411 = vmatprep.mubr.bf16.mxu0 %v2494
    %3412 = vmatmul.mubr.bf16.gmra.mrb[0].mxu0 %v2493
    %v3413 = vpop.f32.mrb[0].mxu0
    %v3414 = vadd.f32 %v3361, %v3413
    %v3415 = vpop.f32.mrb[0].mxu0
    %v3416 = vadd.f32 %v3363, %v3415
    %v3417 = vpop.f32.mrb[0].mxu0
    %v3418 = vadd.f32 %v3365, %v3417
    %v3419 = vpop.f32.mrb[0].mxu0
    %v3420 = vadd.f32 %v3367, %v3419
    %3421 = vmatprep.mubr.bf16.mxu0 %v2502
    %3422 = vmatmul.mubr.bf16.gmra.mrb[0].mxu0 %v2501
    %v3423 = vpop.f32.mrb[0].mxu0
    %v3424 = vadd.f32 %v3371, %v3423
    %v3425 = vpop.f32.mrb[0].mxu0
    %v3426 = vadd.f32 %v3373, %v3425
    %v3427 = vpop.f32.mrb[0].mxu0
    %v3428 = vadd.f32 %v3375, %v3427
    %v3429 = vpop.f32.mrb[0].mxu0
    %v3430 = vadd.f32 %v3377, %v3429
    %3431 = vdwg.mxu0
    %3432 = vmatprep.subr.bf16.mxu0 %v3114
    %3433 = vmatpush1.bf16.msra.mxu0 %v3113
    %3434 = vmatprep.subr.bf16.mxu0 %v3116
    %3435 = vmatpush1.bf16.msra.mxu0 %v3115
    %3436 = vmatprep.subr.bf16.mxu0 %v3118
    %3437 = vmatpush1.bf16.msra.mxu0 %v3117
    %3438 = vmatprep.subr.bf16.mxu0 %v3120
    %3439 = vmatpush1.bf16.msra.mxu0 %v3119
    %3440 = vmatprep.subr.bf16.mxu0 %v3122
    %3441 = vmatpush1.bf16.msra.mxu0 %v3121
    %3442 = vmatprep.subr.bf16.mxu0 %v3124
    %3443 = vmatpush1.bf16.msra.mxu0 %v3123
    %3444 = vmatprep.subr.bf16.mxu0 %v3126
    %3445 = vmatpush1.bf16.msra.mxu0 %v3125
    %3446 = vmatprep.subr.bf16.mxu0 %v3128
    %3447 = vmatpush1.bf16.msra.mxu0 %v3127
    %3448 = vmatprep.subr.bf16.mxu0 %v3130
    %3449 = vmatpush1.bf16.msra.mxu0 %v3129
    %3450 = vmatprep.subr.bf16.mxu0 %v3132
    %3451 = vmatpush1.bf16.msra.mxu0 %v3131
    %3452 = vmatprep.subr.bf16.mxu0 %v3134
    %3453 = vmatpush1.bf16.msra.mxu0 %v3133
    %3454 = vmatprep.subr.bf16.mxu0 %v3136
    %3455 = vmatpush1.bf16.msra.mxu0 %v3135
    %3456 = vmatprep.subr.bf16.mxu0 %v3138
    %3457 = vmatpush1.bf16.msra.mxu0 %v3137
    %3458 = vmatprep.subr.bf16.mxu0 %v3140
    %3459 = vmatpush1.bf16.msra.mxu0 %v3139
    %3460 = vmatprep.subr.bf16.mxu0 %v3142
    %3461 = vmatpush1.bf16.msra.mxu0 %v3141
    %3462 = vmatprep.subr.bf16.mxu0 %v3144
    %3463 = vmatpush1.bf16.msra.mxu0 %v3143
    %3464 = vmatprep.mubr.bf16.mxu0 %v2496
    %3465 = vmatmul.mubr.bf16.gmra.mrb[0].mxu0 %v2495
    %v3466 = vpop.f32.mrb[0].mxu0
    %v3467 = vadd.f32 %v3414, %v3466
    %v3468 = vpop.f32.mrb[0].mxu0
    %v3469 = vadd.f32 %v3416, %v3468
    %v3470 = vpop.f32.mrb[0].mxu0
    %v3471 = vadd.f32 %v3418, %v3470
    %v3472 = vpop.f32.mrb[0].mxu0
    %v3473 = vadd.f32 %v3420, %v3472
    %3474 = vmatprep.mubr.bf16.mxu0 %v2504
    %3475 = vmatmul.mubr.bf16.gmra.mrb[0].mxu0 %v2503
    %v3476 = vpop.f32.mrb[0].mxu0
    %v3477 = vadd.f32 %v3424, %v3476
    %v3478 = vpop.f32.mrb[0].mxu0
    %v3479 = vadd.f32 %v3426, %v3478
    %v3480 = vpop.f32.mrb[0].mxu0
    %v3481 = vadd.f32 %v3428, %v3480
    %v3482 = vpop.f32.mrb[0].mxu0
    %v3483 = vadd.f32 %v3430, %v3482
    %3484 = vdwg.mxu0
    %v3485 = vmax.f32 %v3467, 0.0
    %v3486 = vmax.f32 %v3469, 0.0
    %v3487 = vmax.f32 %v3471, 0.0
    %v3488 = vmax.f32 %v3473, 0.0
    %v3489 = vmax.f32 %v3477, 0.0
    %v3490 = vmax.f32 %v3479, 0.0
    %v3491 = vmax.f32 %v3481, 0.0
    %v3492 = vmax.f32 %v3483, 0.0
    %v3493 = vpack.c.bf16 %v3487, %v3485
    %v3494 = vpack.c.bf16 %v3488, %v3486
    %v3495 = vpack.c.bf16 %v3491, %v3489
    %v3496 = vpack.c.bf16 %v3492, %v3490
    %v3497 = vld [vmem:[%s7] sm:$0x1]
    %vm3498 = vcmask 261120
    %v3500 = vsel %vm3498, %v3497, 0
    %3502 = vmatprep.subr.bf16.mxu0 %v3494
    %3503 = vmatpush1.bf16.msra.mxu0 %v3493
    %3504 = vmatprep.subr.bf16.mxu0 %v3496
    %3505 = vmatpush1.bf16.msra.mxu0 %v3495
    %3506 = vmatprep.subr.bf16.mxu0 0
    %3507 = vmatpush1.bf16.msra.mxu0 0
    %3508 = vmatprep.subr.bf16.mxu0 0
    %3509 = vmatpush1.bf16.msra.mxu0 0
    %3510 = vmatprep.subr.bf16.mxu0 0
    %3511 = vmatpush1.bf16.msra.mxu0 0
    %3512 = vmatprep.subr.bf16.mxu0 0
    %3513 = vmatpush1.bf16.msra.mxu0 0
    %3514 = vmatprep.subr.bf16.mxu0 0
    %3515 = vmatpush1.bf16.msra.mxu0 0
    %3516 = vmatprep.subr.bf16.mxu0 0
    %3517 = vmatpush1.bf16.msra.mxu0 0
    %3518 = vmatprep.subr.bf16.mxu0 0
    %3519 = vmatpush1.bf16.msra.mxu0 0
    %3520 = vmatprep.subr.bf16.mxu0 0
    %3521 = vmatpush1.bf16.msra.mxu0 0
    %3522 = vmatprep.subr.bf16.mxu0 0
    %3523 = vmatpush1.bf16.msra.mxu0 0
    %3524 = vmatprep.subr.bf16.mxu0 0
    %3525 = vmatpush1.bf16.msra.mxu0 0
    %3526 = vmatprep.subr.bf16.mxu0 0
    %3527 = vmatpush1.bf16.msra.mxu0 0
    %3528 = vmatprep.subr.bf16.mxu0 0
    %3529 = vmatpush1.bf16.msra.mxu0 0
    %3530 = vmatprep.subr.bf16.mxu0 0
    %3531 = vmatpush1.bf16.msra.mxu0 0
    %3532 = vmatprep.subr.bf16.mxu0 0
    %3533 = vmatpush1.bf16.msra.mxu0 0
    %3534 = vmatprep.mubr.bf16.mxu0 0
    %3535 = vmatmul.mubr.bf16.gmra.mrb[0].mxu0 %v3500
    %v3536 = vpop.f32.mrb[0].mxu0
    %v3537 = vadd.f32 0.0, %v3536
    %v3538 = vpop.f32.mrb[0].mxu0
    %v3539 = vadd.f32 0.0, %v3538
    %v3540 = vpop.f32.mrb[0].mxu0
    %v3541 = vpop.f32.mrb[0].mxu0
    %3542 = vdwg.mxu0
    %v3543 = vmul.f32 %v3537, 0.0625
    %v3544 = vmul.f32 %v3539, 0.0625
    %v3547 = vcombine.low %v3543, %v3544
    %v3549 = vunpack.c.l.s4 1983009808
    %v3550 = vunpack.c.0.s8 %v3549
    %v3551 = vlaneseq
    %v3552 = vshrl.u32 %v3551, 7
    %v3553 = vsub.s32 %v3550, %v3552
    %v3554 = vrot.slane %v3547, %v3553
    %3556 = vst [vmem:[#allocation4] sm:$0xf] %v3554
    %v3557 = vld [vmem:[%s6] sm:$0xff]
    %v3559 = vcombine.high %v3557, %v3557
    %v3561 = vunpack.c.l.s4 1966171168
    %v3562 = vunpack.c.0.s8 %v3561
    %v3563 = vlaneseq
    %v3564 = vshrl.u32 %v3563, 7
    %v3565 = vsub.s32 %v3562, %v3564
    %v3566 = vrot.slane %v3557, %v3565
    %v3568 = vunpack.c.l.s4 1966171168
    %v3569 = vunpack.c.0.s8 %v3568
    %v3570 = vlaneseq
    %v3571 = vshrl.u32 %v3570, 7
    %v3572 = vsub.s32 %v3569, %v3571
    %v3573 = vrot.slane %v3559, %v3572
    %v3574 = vcombine.high %v3566, %v3566
    %v3575 = vcombine.high %v3573, %v3573
    %v3577 = vunpack.c.l.s4 1966171168
    %v3578 = vunpack.c.0.s8 %v3577
    %v3579 = vlaneseq
    %v3580 = vshrl.u32 %v3579, 7
    %v3581 = vsub.s32 %v3578, %v3580
    %v3582 = vrot.slane %v3566, %v3581
    %v3584 = vunpack.c.l.s4 1966171168
    %v3585 = vunpack.c.0.s8 %v3584
    %v3586 = vlaneseq
    %v3587 = vshrl.u32 %v3586, 7
    %v3588 = vsub.s32 %v3585, %v3587
    %v3589 = vrot.slane %v3573, %v3588
    %v3591 = vunpack.c.l.s4 1966171168
    %v3592 = vunpack.c.0.s8 %v3591
    %v3593 = vlaneseq
    %v3594 = vshrl.u32 %v3593, 7
    %v3595 = vsub.s32 %v3592, %v3594
    %v3596 = vrot.slane %v3574, %v3595
    %v3598 = vunpack.c.l.s4 1966171168
    %v3599 = vunpack.c.0.s8 %v3598
    %v3600 = vlaneseq
    %v3601 = vshrl.u32 %v3600, 7
    %v3602 = vsub.s32 %v3599, %v3601
    %v3603 = vrot.slane %v3575, %v3602
    %v3604 = vcombine.high %v3582, %v3582
    %v3605 = vcombine.high %v3589, %v3589
    %v3606 = vcombine.high %v3596, %v3596
    %v3607 = vcombine.high %v3603, %v3603
    %3616 = vmatprep.subr.bf16.mxu0 %v2490
    %3617 = vmatpush1.bf16.xpose.msra.mxu0 %v2489
    %3618 = vmatprep.subr.bf16.mxu0 %v2498
    %3619 = vmatpush1.bf16.xpose.msra.mxu0 %v2497
    %3620 = vmatprep.subr.bf16.mxu0 0
    %3621 = vmatpush1.bf16.xpose.msra.mxu0 0
    %3622 = vmatprep.subr.bf16.mxu0 0
    %3623 = vmatpush1.bf16.xpose.msra.mxu0 0
    %3624 = vmatprep.subr.bf16.mxu0 0
    %3625 = vmatpush1.bf16.xpose.msra.mxu0 0
    %3626 = vmatprep.subr.bf16.mxu0 0
    %3627 = vmatpush1.bf16.xpose.msra.mxu0 0
    %3628 = vmatprep.subr.bf16.mxu0 0
    %3629 = vmatpush1.bf16.xpose.msra.mxu0 0
    %3630 = vmatprep.subr.bf16.mxu0 0
    %3631 = vmatpush1.bf16.xpose.msra.mxu0 0
    %3632 = vmatprep.subr.bf16.mxu0 0
    %3633 = vmatpush1.bf16.xpose.msra.mxu0 0
    %3634 = vmatprep.subr.bf16.mxu0 0
    %3635 = vmatpush1.bf16.xpose.msra.mxu0 0
    %3636 = vmatprep.subr.bf16.mxu0 0
    %3637 = vmatpush1.bf16.xpose.msra.mxu0 0
    %3638 = vmatprep.subr.bf16.mxu0 0
    %3639 = vmatpush1.bf16.xpose.msra.mxu0 0
    %3640 = vmatprep.subr.bf16.mxu0 0
    %3641 = vmatpush1.bf16.xpose.msra.mxu0 0
    %3642 = vmatprep.subr.bf16.mxu0 0
    %3643 = vmatpush1.bf16.xpose.msra.mxu0 0
    %3644 = vmatprep.subr.bf16.mxu0 0
    %3645 = vmatpush1.bf16.xpose.msra.mxu0 0
    %3646 = vmatprep.subr.bf16.mxu0 0
    %3647 = vmatpush1.bf16.xpose.msra.mxu0 0
    %3648 = vmatprep.mubr.bf16.mxu0 %v3596
    %3649 = vmatmul.mubr.bf16.gmra.mrb[0].mxu0 %v3582
    %v3650 = vpop.f32.mrb[0].mxu0
    %v3651 = vadd.f32 0.0, %v3650
    %v3652 = vpop.f32.mrb[0].mxu0
    %v3653 = vpop.f32.mrb[0].mxu0
    %v3654 = vpop.f32.mrb[0].mxu0
    %3655 = vdwg.mxu0
    %3656 = vmatprep.subr.bf16.mxu0 %v2492
    %3657 = vmatpush1.bf16.xpose.msra.mxu0 %v2491
    %3658 = vmatprep.subr.bf16.mxu0 %v2500
    %3659 = vmatpush1.bf16.xpose.msra.mxu0 %v2499
    %3660 = vmatprep.subr.bf16.mxu0 0
    %3661 = vmatpush1.bf16.xpose.msra.mxu0 0
    %3662 = vmatprep.subr.bf16.mxu0 0
    %3663 = vmatpush1.bf16.xpose.msra.mxu0 0
    %3664 = vmatprep.subr.bf16.mxu0 0
    %3665 = vmatpush1.bf16.xpose.msra.mxu0 0
    %3666 = vmatprep.subr.bf16.mxu0 0
    %3667 = vmatpush1.bf16.xpose.msra.mxu0 0
    %3668 = vmatprep.subr.bf16.mxu0 0
    %3669 = vmatpush1.bf16.xpose.msra.mxu0 0
    %3670 = vmatprep.subr.bf16.mxu0 0
    %3671 = vmatpush1.bf16.xpose.msra.mxu0 0
    %3672 = vmatprep.subr.bf16.mxu0 0
    %3673 = vmatpush1.bf16.xpose.msra.mxu0 0
    %3674 = vmatprep.subr.bf16.mxu0 0
    %3675 = vmatpush1.bf16.xpose.msra.mxu0 0
    %3676 = vmatprep.subr.bf16.mxu0 0
    %3677 = vmatpush1.bf16.xpose.msra.mxu0 0
    %3678 = vmatprep.subr.bf16.mxu0 0
    %3679 = vmatpush1.bf16.xpose.msra.mxu0 0
    %3680 = vmatprep.subr.bf16.mxu0 0
    %3681 = vmatpush1.bf16.xpose.msra.mxu0 0
    %3682 = vmatprep.subr.bf16.mxu0 0
    %3683 = vmatpush1.bf16.xpose.msra.mxu0 0
    %3684 = vmatprep.subr.bf16.mxu0 0
    %3685 = vmatpush1.bf16.xpose.msra.mxu0 0
    %3686 = vmatprep.subr.bf16.mxu0 0
    %3687 = vmatpush1.bf16.xpose.msra.mxu0 0
    %3688 = vmatprep.mubr.bf16.mxu0 %v3606
    %3689 = vmatmul.mubr.bf16.gmra.mrb[0].mxu0 %v3604
    %v3690 = vpop.f32.mrb[0].mxu0
    %v3691 = vadd.f32 %v3651, %v3690
    %v3692 = vpop.f32.mrb[0].mxu0
    %v3693 = vpop.f32.mrb[0].mxu0
    %v3694 = vpop.f32.mrb[0].mxu0
    %3695 = vdwg.mxu0
    %3696 = vmatprep.subr.bf16.mxu0 %v2494
    %3697 = vmatpush1.bf16.xpose.msra.mxu0 %v2493
    %3698 = vmatprep.subr.bf16.mxu0 %v2502
    %3699 = vmatpush1.bf16.xpose.msra.mxu0 %v2501
    %3700 = vmatprep.subr.bf16.mxu0 0
    %3701 = vmatpush1.bf16.xpose.msra.mxu0 0
    %3702 = vmatprep.subr.bf16.mxu0 0
    %3703 = vmatpush1.bf16.xpose.msra.mxu0 0
    %3704 = vmatprep.subr.bf16.mxu0 0
    %3705 = vmatpush1.bf16.xpose.msra.mxu0 0
    %3706 = vmatprep.subr.bf16.mxu0 0
    %3707 = vmatpush1.bf16.xpose.msra.mxu0 0
    %3708 = vmatprep.subr.bf16.mxu0 0
    %3709 = vmatpush1.bf16.xpose.msra.mxu0 0
    %3710 = vmatprep.subr.bf16.mxu0 0
    %3711 = vmatpush1.bf16.xpose.msra.mxu0 0
    %3712 = vmatprep.subr.bf16.mxu0 0
    %3713 = vmatpush1.bf16.xpose.msra.mxu0 0
    %3714 = vmatprep.subr.bf16.mxu0 0
    %3715 = vmatpush1.bf16.xpose.msra.mxu0 0
    %3716 = vmatprep.subr.bf16.mxu0 0
    %3717 = vmatpush1.bf16.xpose.msra.mxu0 0
    %3718 = vmatprep.subr.bf16.mxu0 0
    %3719 = vmatpush1.bf16.xpose.msra.mxu0 0
    %3720 = vmatprep.subr.bf16.mxu0 0
    %3721 = vmatpush1.bf16.xpose.msra.mxu0 0
    %3722 = vmatprep.subr.bf16.mxu0 0
    %3723 = vmatpush1.bf16.xpose.msra.mxu0 0
    %3724 = vmatprep.subr.bf16.mxu0 0
    %3725 = vmatpush1.bf16.xpose.msra.mxu0 0
    %3726 = vmatprep.subr.bf16.mxu0 0
    %3727 = vmatpush1.bf16.xpose.msra.mxu0 0
    %3728 = vmatprep.mubr.bf16.mxu0 %v3603
    %3729 = vmatmul.mubr.bf16.gmra.mrb[0].mxu0 %v3589
    %v3730 = vpop.f32.mrb[0].mxu0
    %v3731 = vadd.f32 %v3691, %v3730
    %v3732 = vpop.f32.mrb[0].mxu0
    %v3733 = vpop.f32.mrb[0].mxu0
    %v3734 = vpop.f32.mrb[0].mxu0
    %3735 = vdwg.mxu0
    %3736 = vmatprep.subr.bf16.mxu0 %v2496
    %3737 = vmatpush1.bf16.xpose.msra.mxu0 %v2495
    %3738 = vmatprep.subr.bf16.mxu0 %v2504
    %3739 = vmatpush1.bf16.xpose.msra.mxu0 %v2503
    %3740 = vmatprep.subr.bf16.mxu0 0
    %3741 = vmatpush1.bf16.xpose.msra.mxu0 0
    %3742 = vmatprep.subr.bf16.mxu0 0
    %3743 = vmatpush1.bf16.xpose.msra.mxu0 0
    %3744 = vmatprep.subr.bf16.mxu0 0
    %3745 = vmatpush1.bf16.xpose.msra.mxu0 0
    %3746 = vmatprep.subr.bf16.mxu0 0
    %3747 = vmatpush1.bf16.xpose.msra.mxu0 0
    %3748 = vmatprep.subr.bf16.mxu0 0
    %3749 = vmatpush1.bf16.xpose.msra.mxu0 0
    %3750 = vmatprep.subr.bf16.mxu0 0
    %3751 = vmatpush1.bf16.xpose.msra.mxu0 0
    %3752 = vmatprep.subr.bf16.mxu0 0
    %3753 = vmatpush1.bf16.xpose.msra.mxu0 0
    %3754 = vmatprep.subr.bf16.mxu0 0
    %3755 = vmatpush1.bf16.xpose.msra.mxu0 0
    %3756 = vmatprep.subr.bf16.mxu0 0
    %3757 = vmatpush1.bf16.xpose.msra.mxu0 0
    %3758 = vmatprep.subr.bf16.mxu0 0
    %3759 = vmatpush1.bf16.xpose.msra.mxu0 0
    %3760 = vmatprep.subr.bf16.mxu0 0
    %3761 = vmatpush1.bf16.xpose.msra.mxu0 0
    %3762 = vmatprep.subr.bf16.mxu0 0
    %3763 = vmatpush1.bf16.xpose.msra.mxu0 0
    %3764 = vmatprep.subr.bf16.mxu0 0
    %3765 = vmatpush1.bf16.xpose.msra.mxu0 0
    %3766 = vmatprep.subr.bf16.mxu0 0
    %3767 = vmatpush1.bf16.xpose.msra.mxu0 0
    %3768 = vmatprep.mubr.bf16.mxu0 %v3607
    %3769 = vmatmul.mubr.bf16.gmra.mrb[0].mxu0 %v3605
    %v3770 = vpop.f32.mrb[0].mxu0
    %v3771 = vadd.f32 %v3731, %v3770
    %v3772 = vpop.f32.mrb[0].mxu0
    %v3773 = vpop.f32.mrb[0].mxu0
    %v3774 = vpop.f32.mrb[0].mxu0
    %3775 = vdwg.mxu0
    %vm3776 = vcmask 253952
    %3777 = vst.msk [vmem:[%s16] sm:$0x1] %vm3776, %v3771
    %v3778 = vld [vmem:[%s8] sm:$0xff]
    %v3779 = vld [vmem:[%s8 + $0x8] sm:$0xff]
    %v3780 = vld [vmem:[%s8 + $0x10] sm:$0xff]
    %v3781 = vld [vmem:[%s8 + $0x18] sm:$0xff]
    %v3782 = vld [vmem:[%s8 + $0x20] sm:$0xff]
    %v3783 = vld [vmem:[%s8 + $0x28] sm:$0xff]
    %v3784 = vld [vmem:[%s8 + $0x30] sm:$0xff]
    %v3785 = vld [vmem:[%s8 + $0x38] sm:$0xff]
    %v3786 = vld [vmem:[%s8 + $0x40] sm:$0xff]
    %v3787 = vld [vmem:[%s8 + $0x48] sm:$0xff]
    %v3788 = vld [vmem:[%s8 + $0x50] sm:$0xff]
    %v3789 = vld [vmem:[%s8 + $0x58] sm:$0xff]
    %v3790 = vld [vmem:[%s8 + $0x60] sm:$0xff]
    %v3791 = vld [vmem:[%s8 + $0x68] sm:$0xff]
    %v3792 = vld [vmem:[%s8 + $0x70] sm:$0xff]
    %v3793 = vld [vmem:[%s8 + $0x78] sm:$0xff]
    %v3794 = vld [vmem:[%s8 + $0x80] sm:$0xff]
    %v3795 = vld [vmem:[%s8 + $0x88] sm:$0xff]
    %v3796 = vld [vmem:[%s8 + $0x90] sm:$0xff]
    %v3797 = vld [vmem:[%s8 + $0x98] sm:$0xff]
    %v3798 = vld [vmem:[%s8 + $0xa0] sm:$0xff]
    %v3799 = vld [vmem:[%s8 + $0xa8] sm:$0xff]
    %v3800 = vld [vmem:[%s8 + $0xb0] sm:$0xff]
    %v3801 = vld [vmem:[%s8 + $0xb8] sm:$0xff]
    %v3802 = vld [vmem:[%s8 + $0xc0] sm:$0xff]
    %v3803 = vld [vmem:[%s8 + $0xc8] sm:$0xff]
    %v3804 = vld [vmem:[%s8 + $0xd0] sm:$0xff]
    %v3805 = vld [vmem:[%s8 + $0xd8] sm:$0xff]
    %v3806 = vld [vmem:[%s8 + $0xe0] sm:$0xff]
    %v3807 = vld [vmem:[%s8 + $0xe8] sm:$0xff]
    %v3808 = vld [vmem:[%s8 + $0xf0] sm:$0xff]
    %v3809 = vld [vmem:[%s8 + $0xf8] sm:$0xff]
    %v3810 = vld [vmem:[%s8 + $0x100] sm:$0xff]
    %v3811 = vld [vmem:[%s8 + $0x108] sm:$0xff]
    %v3812 = vld [vmem:[%s8 + $0x110] sm:$0xff]
    %v3813 = vld [vmem:[%s8 + $0x118] sm:$0xff]
    %v3814 = vld [vmem:[%s8 + $0x120] sm:$0xff]
    %v3815 = vld [vmem:[%s8 + $0x128] sm:$0xff]
    %v3816 = vld [vmem:[%s8 + $0x130] sm:$0xff]
    %v3817 = vld [vmem:[%s8 + $0x138] sm:$0xff]
    %v3818 = vld [vmem:[%s8 + $0x140] sm:$0xff]
    %v3819 = vld [vmem:[%s8 + $0x148] sm:$0xff]
    %v3820 = vld [vmem:[%s8 + $0x150] sm:$0xff]
    %v3821 = vld [vmem:[%s8 + $0x158] sm:$0xff]
    %v3822 = vld [vmem:[%s8 + $0x160] sm:$0xff]
    %v3823 = vld [vmem:[%s8 + $0x168] sm:$0xff]
    %v3824 = vld [vmem:[%s8 + $0x170] sm:$0xff]
    %v3825 = vld [vmem:[%s8 + $0x178] sm:$0xff]
    %v3826 = vld [vmem:[%s8 + $0x180] sm:$0xff]
    %v3827 = vld [vmem:[%s8 + $0x188] sm:$0xff]
    %v3828 = vld [vmem:[%s8 + $0x190] sm:$0xff]
    %v3829 = vld [vmem:[%s8 + $0x198] sm:$0xff]
    %v3830 = vld [vmem:[%s8 + $0x1a0] sm:$0xff]
    %v3831 = vld [vmem:[%s8 + $0x1a8] sm:$0xff]
    %v3832 = vld [vmem:[%s8 + $0x1b0] sm:$0xff]
    %v3833 = vld [vmem:[%s8 + $0x1b8] sm:$0xff]
    %v3834 = vld [vmem:[%s8 + $0x1c0] sm:$0xff]
    %v3835 = vld [vmem:[%s8 + $0x1c8] sm:$0xff]
    %v3836 = vld [vmem:[%s8 + $0x1d0] sm:$0xff]
    %v3837 = vld [vmem:[%s8 + $0x1d8] sm:$0xff]
    %v3838 = vld [vmem:[%s8 + $0x1e0] sm:$0xff]
    %v3839 = vld [vmem:[%s8 + $0x1e8] sm:$0xff]
    %v3840 = vld [vmem:[%s8 + $0x1f0] sm:$0xff]
    %v3841 = vld [vmem:[%s8 + $0x1f8] sm:$0xff]
    %v3842 = vpack.c.bf16 %v3782, %v3778
    %v3843 = vpack.c.bf16 %v3783, %v3779
    %v3844 = vpack.c.bf16 %v3784, %v3780
    %v3845 = vpack.c.bf16 %v3785, %v3781
    %v3846 = vpack.c.bf16 %v3790, %v3786
    %v3847 = vpack.c.bf16 %v3791, %v3787
    %v3848 = vpack.c.bf16 %v3792, %v3788
    %v3849 = vpack.c.bf16 %v3793, %v3789
    %v3850 = vpack.c.bf16 %v3798, %v3794
    %v3851 = vpack.c.bf16 %v3799, %v3795
    %v3852 = vpack.c.bf16 %v3800, %v3796
    %v3853 = vpack.c.bf16 %v3801, %v3797
    %v3854 = vpack.c.bf16 %v3806, %v3802
    %v3855 = vpack.c.bf16 %v3807, %v3803
    %v3856 = vpack.c.bf16 %v3808, %v3804
    %v3857 = vpack.c.bf16 %v3809, %v3805
    %v3858 = vpack.c.bf16 %v3814, %v3810
    %v3859 = vpack.c.bf16 %v3815, %v3811
    %v3860 = vpack.c.bf16 %v3816, %v3812
    %v3861 = vpack.c.bf16 %v3817, %v3813
    %v3862 = vpack.c.bf16 %v3822, %v3818
    %v3863 = vpack.c.bf16 %v3823, %v3819
    %v3864 = vpack.c.bf16 %v3824, %v3820
    %v3865 = vpack.c.bf16 %v3825, %v3821
    %v3866 = vpack.c.bf16 %v3830, %v3826
    %v3867 = vpack.c.bf16 %v3831, %v3827
    %v3868 = vpack.c.bf16 %v3832, %v3828
    %v3869 = vpack.c.bf16 %v3833, %v3829
    %v3870 = vpack.c.bf16 %v3838, %v3834
    %v3871 = vpack.c.bf16 %v3839, %v3835
    %v3872 = vpack.c.bf16 %v3840, %v3836
    %v3873 = vpack.c.bf16 %v3841, %v3837
    %v3874 = vld [vmem:[%s9] sm:$0xff]
    %v3875 = vld [vmem:[%s9 + $0x8] sm:$0xff]
    %v3876 = vld [vmem:[%s9 + $0x10] sm:$0xff]
    %v3877 = vld [vmem:[%s9 + $0x18] sm:$0xff]
    %v3878 = vld [vmem:[%s9 + $0x20] sm:$0xff]
    %v3879 = vld [vmem:[%s9 + $0x28] sm:$0xff]
    %v3880 = vld [vmem:[%s9 + $0x30] sm:$0xff]
    %v3881 = vld [vmem:[%s9 + $0x38] sm:$0xff]
    %v3882 = vld [vmem:[%s9 + $0x40] sm:$0xff]
    %v3883 = vld [vmem:[%s9 + $0x48] sm:$0xff]
    %v3884 = vld [vmem:[%s9 + $0x50] sm:$0xff]
    %v3885 = vld [vmem:[%s9 + $0x58] sm:$0xff]
    %v3886 = vld [vmem:[%s9 + $0x60] sm:$0xff]
    %v3887 = vld [vmem:[%s9 + $0x68] sm:$0xff]
    %v3888 = vld [vmem:[%s9 + $0x70] sm:$0xff]
    %v3889 = vld [vmem:[%s9 + $0x78] sm:$0xff]
    %v3890 = vld [vmem:[%s9 + $0x80] sm:$0xff]
    %v3891 = vld [vmem:[%s9 + $0x88] sm:$0xff]
    %v3892 = vld [vmem:[%s9 + $0x90] sm:$0xff]
    %v3893 = vld [vmem:[%s9 + $0x98] sm:$0xff]
    %v3894 = vld [vmem:[%s9 + $0xa0] sm:$0xff]
    %v3895 = vld [vmem:[%s9 + $0xa8] sm:$0xff]
    %v3896 = vld [vmem:[%s9 + $0xb0] sm:$0xff]
    %v3897 = vld [vmem:[%s9 + $0xb8] sm:$0xff]
    %v3898 = vld [vmem:[%s9 + $0xc0] sm:$0xff]
    %v3899 = vld [vmem:[%s9 + $0xc8] sm:$0xff]
    %v3900 = vld [vmem:[%s9 + $0xd0] sm:$0xff]
    %v3901 = vld [vmem:[%s9 + $0xd8] sm:$0xff]
    %v3902 = vld [vmem:[%s9 + $0xe0] sm:$0xff]
    %v3903 = vld [vmem:[%s9 + $0xe8] sm:$0xff]
    %v3904 = vld [vmem:[%s9 + $0xf0] sm:$0xff]
    %v3905 = vld [vmem:[%s9 + $0xf8] sm:$0xff]
    %v3906 = vld [vmem:[%s9 + $0x100] sm:$0xff]
    %v3907 = vld [vmem:[%s9 + $0x108] sm:$0xff]
    %v3908 = vld [vmem:[%s9 + $0x110] sm:$0xff]
    %v3909 = vld [vmem:[%s9 + $0x118] sm:$0xff]
    %v3910 = vld [vmem:[%s9 + $0x120] sm:$0xff]
    %v3911 = vld [vmem:[%s9 + $0x128] sm:$0xff]
    %v3912 = vld [vmem:[%s9 + $0x130] sm:$0xff]
    %v3913 = vld [vmem:[%s9 + $0x138] sm:$0xff]
    %v3914 = vld [vmem:[%s9 + $0x140] sm:$0xff]
    %v3915 = vld [vmem:[%s9 + $0x148] sm:$0xff]
    %v3916 = vld [vmem:[%s9 + $0x150] sm:$0xff]
    %v3917 = vld [vmem:[%s9 + $0x158] sm:$0xff]
    %v3918 = vld [vmem:[%s9 + $0x160] sm:$0xff]
    %v3919 = vld [vmem:[%s9 + $0x168] sm:$0xff]
    %v3920 = vld [vmem:[%s9 + $0x170] sm:$0xff]
    %v3921 = vld [vmem:[%s9 + $0x178] sm:$0xff]
    %v3922 = vld [vmem:[%s9 + $0x180] sm:$0xff]
    %v3923 = vld [vmem:[%s9 + $0x188] sm:$0xff]
    %v3924 = vld [vmem:[%s9 + $0x190] sm:$0xff]
    %v3925 = vld [vmem:[%s9 + $0x198] sm:$0xff]
    %v3926 = vld [vmem:[%s9 + $0x1a0] sm:$0xff]
    %v3927 = vld [vmem:[%s9 + $0x1a8] sm:$0xff]
    %v3928 = vld [vmem:[%s9 + $0x1b0] sm:$0xff]
    %v3929 = vld [vmem:[%s9 + $0x1b8] sm:$0xff]
    %v3930 = vld [vmem:[%s9 + $0x1c0] sm:$0xff]
    %v3931 = vld [vmem:[%s9 + $0x1c8] sm:$0xff]
    %v3932 = vld [vmem:[%s9 + $0x1d0] sm:$0xff]
    %v3933 = vld [vmem:[%s9 + $0x1d8] sm:$0xff]
    %v3934 = vld [vmem:[%s9 + $0x1e0] sm:$0xff]
    %v3935 = vld [vmem:[%s9 + $0x1e8] sm:$0xff]
    %v3936 = vld [vmem:[%s9 + $0x1f0] sm:$0xff]
    %v3937 = vld [vmem:[%s9 + $0x1f8] sm:$0xff]
    %v4002 = vunpack.c.l.b16 %v3874
    %v4003 = vunpack.c.h.b16 %v3874
    %v4004 = vunpack.c.l.b16 %v3875
    %v4005 = vunpack.c.h.b16 %v3875
    %v4006 = vunpack.c.l.b16 %v3876
    %v4007 = vunpack.c.h.b16 %v3876
    %v4008 = vunpack.c.l.b16 %v3877
    %v4009 = vunpack.c.h.b16 %v3877
    %v4010 = vunpack.c.l.b16 %v3878
    %v4011 = vunpack.c.h.b16 %v3878
    %v4012 = vunpack.c.l.b16 %v3879
    %v4013 = vunpack.c.h.b16 %v3879
    %v4014 = vunpack.c.l.b16 %v3880
    %v4015 = vunpack.c.h.b16 %v3880
    %v4016 = vunpack.c.l.b16 %v3881
    %v4017 = vunpack.c.h.b16 %v3881
    %v4018 = vunpack.c.l.b16 %v3882
    %v4019 = vunpack.c.h.b16 %v3882
    %v4020 = vunpack.c.l.b16 %v3883
    %v4021 = vunpack.c.h.b16 %v3883
    %v4022 = vunpack.c.l.b16 %v3884
    %v4023 = vunpack.c.h.b16 %v3884
    %v4024 = vunpack.c.l.b16 %v3885
    %v4025 = vunpack.c.h.b16 %v3885
    %v4026 = vunpack.c.l.b16 %v3886
    %v4027 = vunpack.c.h.b16 %v3886
    %v4028 = vunpack.c.l.b16 %v3887
    %v4029 = vunpack.c.h.b16 %v3887
    %v4030 = vunpack.c.l.b16 %v3888
    %v4031 = vunpack.c.h.b16 %v3888
    %v4032 = vunpack.c.l.b16 %v3889
    %v4033 = vunpack.c.h.b16 %v3889
    %v4034 = vunpack.c.l.b16 %v3890
    %v4035 = vunpack.c.h.b16 %v3890
    %v4036 = vunpack.c.l.b16 %v3891
    %v4037 = vunpack.c.h.b16 %v3891
    %v4038 = vunpack.c.l.b16 %v3892
    %v4039 = vunpack.c.h.b16 %v3892
    %v4040 = vunpack.c.l.b16 %v3893
    %v4041 = vunpack.c.h.b16 %v3893
    %v4042 = vunpack.c.l.b16 %v3894
    %v4043 = vunpack.c.h.b16 %v3894
    %v4044 = vunpack.c.l.b16 %v3895
    %v4045 = vunpack.c.h.b16 %v3895
    %v4046 = vunpack.c.l.b16 %v3896
    %v4047 = vunpack.c.h.b16 %v3896
    %v4048 = vunpack.c.l.b16 %v3897
    %v4049 = vunpack.c.h.b16 %v3897
    %v4050 = vunpack.c.l.b16 %v3898
    %v4051 = vunpack.c.h.b16 %v3898
    %v4052 = vunpack.c.l.b16 %v3899
    %v4053 = vunpack.c.h.b16 %v3899
    %v4054 = vunpack.c.l.b16 %v3900
    %v4055 = vunpack.c.h.b16 %v3900
    %v4056 = vunpack.c.l.b16 %v3901
    %v4057 = vunpack.c.h.b16 %v3901
    %v4058 = vunpack.c.l.b16 %v3902
    %v4059 = vunpack.c.h.b16 %v3902
    %v4060 = vunpack.c.l.b16 %v3903
    %v4061 = vunpack.c.h.b16 %v3903
    %v4062 = vunpack.c.l.b16 %v3904
    %v4063 = vunpack.c.h.b16 %v3904
    %v4064 = vunpack.c.l.b16 %v3905
    %v4065 = vunpack.c.h.b16 %v3905
    %v4066 = vunpack.c.l.b16 %v3906
    %v4067 = vunpack.c.h.b16 %v3906
    %v4068 = vunpack.c.l.b16 %v3907
    %v4069 = vunpack.c.h.b16 %v3907
    %v4070 = vunpack.c.l.b16 %v3908
    %v4071 = vunpack.c.h.b16 %v3908
    %v4072 = vunpack.c.l.b16 %v3909
    %v4073 = vunpack.c.h.b16 %v3909
    %v4074 = vunpack.c.l.b16 %v3910
    %v4075 = vunpack.c.h.b16 %v3910
    %v4076 = vunpack.c.l.b16 %v3911
    %v4077 = vunpack.c.h.b16 %v3911
    %v4078 = vunpack.c.l.b16 %v3912
    %v4079 = vunpack.c.h.b16 %v3912
    %v4080 = vunpack.c.l.b16 %v3913
    %v4081 = vunpack.c.h.b16 %v3913
    %v4082 = vunpack.c.l.b16 %v3914
    %v4083 = vunpack.c.h.b16 %v3914
    %v4084 = vunpack.c.l.b16 %v3915
    %v4085 = vunpack.c.h.b16 %v3915
    %v4086 = vunpack.c.l.b16 %v3916
    %v4087 = vunpack.c.h.b16 %v3916
    %v4088 = vunpack.c.l.b16 %v3917
    %v4089 = vunpack.c.h.b16 %v3917
    %v4090 = vunpack.c.l.b16 %v3918
    %v4091 = vunpack.c.h.b16 %v3918
    %v4092 = vunpack.c.l.b16 %v3919
    %v4093 = vunpack.c.h.b16 %v3919
    %v4094 = vunpack.c.l.b16 %v3920
    %v4095 = vunpack.c.h.b16 %v3920
    %v4096 = vunpack.c.l.b16 %v3921
    %v4097 = vunpack.c.h.b16 %v3921
    %v4098 = vunpack.c.l.b16 %v3922
    %v4099 = vunpack.c.h.b16 %v3922
    %v4100 = vunpack.c.l.b16 %v3923
    %v4101 = vunpack.c.h.b16 %v3923
    %v4102 = vunpack.c.l.b16 %v3924
    %v4103 = vunpack.c.h.b16 %v3924
    %v4104 = vunpack.c.l.b16 %v3925
    %v4105 = vunpack.c.h.b16 %v3925
    %v4106 = vunpack.c.l.b16 %v3926
    %v4107 = vunpack.c.h.b16 %v3926
    %v4108 = vunpack.c.l.b16 %v3927
    %v4109 = vunpack.c.h.b16 %v3927
    %v4110 = vunpack.c.l.b16 %v3928
    %v4111 = vunpack.c.h.b16 %v3928
    %v4112 = vunpack.c.l.b16 %v3929
    %v4113 = vunpack.c.h.b16 %v3929
    %v4114 = vunpack.c.l.b16 %v3930
    %v4115 = vunpack.c.h.b16 %v3930
    %v4116 = vunpack.c.l.b16 %v3931
    %v4117 = vunpack.c.h.b16 %v3931
    %v4118 = vunpack.c.l.b16 %v3932
    %v4119 = vunpack.c.h.b16 %v3932
    %v4120 = vunpack.c.l.b16 %v3933
    %v4121 = vunpack.c.h.b16 %v3933
    %v4122 = vunpack.c.l.b16 %v3934
    %v4123 = vunpack.c.h.b16 %v3934
    %v4124 = vunpack.c.l.b16 %v3935
    %v4125 = vunpack.c.h.b16 %v3935
    %v4126 = vunpack.c.l.b16 %v3936
    %v4127 = vunpack.c.h.b16 %v3936
    %v4128 = vunpack.c.l.b16 %v3937
    %v4129 = vunpack.c.h.b16 %v3937
    %v4130 = vpack.c.b16 %v4004, %v4002
    %v4131 = vpack.c.b16 %v4005, %v4003
    %v4132 = vpack.c.b16 %v4008, %v4006
    %v4133 = vpack.c.b16 %v4009, %v4007
    %v4134 = vpack.c.b16 %v4012, %v4010
    %v4135 = vpack.c.b16 %v4013, %v4011
    %v4136 = vpack.c.b16 %v4016, %v4014
    %v4137 = vpack.c.b16 %v4017, %v4015
    %v4138 = vpack.c.b16 %v4020, %v4018
    %v4139 = vpack.c.b16 %v4021, %v4019
    %v4140 = vpack.c.b16 %v4024, %v4022
    %v4141 = vpack.c.b16 %v4025, %v4023
    %v4142 = vpack.c.b16 %v4028, %v4026
    %v4143 = vpack.c.b16 %v4029, %v4027
    %v4144 = vpack.c.b16 %v4032, %v4030
    %v4145 = vpack.c.b16 %v4033, %v4031
    %v4146 = vpack.c.b16 %v4036, %v4034
    %v4147 = vpack.c.b16 %v4037, %v4035
    %v4148 = vpack.c.b16 %v4040, %v4038
    %v4149 = vpack.c.b16 %v4041, %v4039
    %v4150 = vpack.c.b16 %v4044, %v4042
    %v4151 = vpack.c.b16 %v4045, %v4043
    %v4152 = vpack.c.b16 %v4048, %v4046
    %v4153 = vpack.c.b16 %v4049, %v4047
    %v4154 = vpack.c.b16 %v4052, %v4050
    %v4155 = vpack.c.b16 %v4053, %v4051
    %v4156 = vpack.c.b16 %v4056, %v4054
    %v4157 = vpack.c.b16 %v4057, %v4055
    %v4158 = vpack.c.b16 %v4060, %v4058
    %v4159 = vpack.c.b16 %v4061, %v4059
    %v4160 = vpack.c.b16 %v4064, %v4062
    %v4161 = vpack.c.b16 %v4065, %v4063
    %v4162 = vpack.c.b16 %v4068, %v4066
    %v4163 = vpack.c.b16 %v4069, %v4067
    %v4164 = vpack.c.b16 %v4072, %v4070
    %v4165 = vpack.c.b16 %v4073, %v4071
    %v4166 = vpack.c.b16 %v4076, %v4074
    %v4167 = vpack.c.b16 %v4077, %v4075
    %v4168 = vpack.c.b16 %v4080, %v4078
    %v4169 = vpack.c.b16 %v4081, %v4079
    %v4170 = vpack.c.b16 %v4084, %v4082
    %v4171 = vpack.c.b16 %v4085, %v4083
    %v4172 = vpack.c.b16 %v4088, %v4086
    %v4173 = vpack.c.b16 %v4089, %v4087
    %v4174 = vpack.c.b16 %v4092, %v4090
    %v4175 = vpack.c.b16 %v4093, %v4091
    %v4176 = vpack.c.b16 %v4096, %v4094
    %v4177 = vpack.c.b16 %v4097, %v4095
    %v4178 = vpack.c.b16 %v4100, %v4098
    %v4179 = vpack.c.b16 %v4101, %v4099
    %v4180 = vpack.c.b16 %v4104, %v4102
    %v4181 = vpack.c.b16 %v4105, %v4103
    %v4182 = vpack.c.b16 %v4108, %v4106
    %v4183 = vpack.c.b16 %v4109, %v4107
    %v4184 = vpack.c.b16 %v4112, %v4110
    %v4185 = vpack.c.b16 %v4113, %v4111
    %v4186 = vpack.c.b16 %v4116, %v4114
    %v4187 = vpack.c.b16 %v4117, %v4115
    %v4188 = vpack.c.b16 %v4120, %v4118
    %v4189 = vpack.c.b16 %v4121, %v4119
    %v4190 = vpack.c.b16 %v4124, %v4122
    %v4191 = vpack.c.b16 %v4125, %v4123
    %v4192 = vpack.c.b16 %v4128, %v4126
    %v4193 = vpack.c.b16 %v4129, %v4127
    %4258 = vmatprep.subr.bf16.mxu0 %v4131
    %4259 = vmatpush1.bf16.msra.mxu0 %v4130
    %4260 = vmatprep.subr.bf16.mxu0 %v4133
    %4261 = vmatpush1.bf16.msra.mxu0 %v4132
    %4262 = vmatprep.subr.bf16.mxu0 %v4135
    %4263 = vmatpush1.bf16.msra.mxu0 %v4134
    %4264 = vmatprep.subr.bf16.mxu0 %v4137
    %4265 = vmatpush1.bf16.msra.mxu0 %v4136
    %4266 = vmatprep.subr.bf16.mxu0 %v4139
    %4267 = vmatpush1.bf16.msra.mxu0 %v4138
    %4268 = vmatprep.subr.bf16.mxu0 %v4141
    %4269 = vmatpush1.bf16.msra.mxu0 %v4140
    %4270 = vmatprep.subr.bf16.mxu0 %v4143
    %4271 = vmatpush1.bf16.msra.mxu0 %v4142
    %4272 = vmatprep.subr.bf16.mxu0 %v4145
    %4273 = vmatpush1.bf16.msra.mxu0 %v4144
    %4274 = vmatprep.subr.bf16.mxu0 %v4147
    %4275 = vmatpush1.bf16.msra.mxu0 %v4146
    %4276 = vmatprep.subr.bf16.mxu0 %v4149
    %4277 = vmatpush1.bf16.msra.mxu0 %v4148
    %4278 = vmatprep.subr.bf16.mxu0 %v4151
    %4279 = vmatpush1.bf16.msra.mxu0 %v4150
    %4280 = vmatprep.subr.bf16.mxu0 %v4153
    %4281 = vmatpush1.bf16.msra.mxu0 %v4152
    %4282 = vmatprep.subr.bf16.mxu0 %v4155
    %4283 = vmatpush1.bf16.msra.mxu0 %v4154
    %4284 = vmatprep.subr.bf16.mxu0 %v4157
    %4285 = vmatpush1.bf16.msra.mxu0 %v4156
    %4286 = vmatprep.subr.bf16.mxu0 %v4159
    %4287 = vmatpush1.bf16.msra.mxu0 %v4158
    %4288 = vmatprep.subr.bf16.mxu0 %v4161
    %4289 = vmatpush1.bf16.msra.mxu0 %v4160
    %4290 = vmatprep.mubr.bf16.mxu0 %v3843
    %4291 = vmatmul.mubr.bf16.gmra.mrb[0].mxu0 %v3842
    %v4292 = vpop.f32.mrb[0].mxu0
    %v4293 = vadd.f32 0.0, %v4292
    %v4294 = vpop.f32.mrb[0].mxu0
    %v4295 = vadd.f32 0.0, %v4294
    %v4296 = vpop.f32.mrb[0].mxu0
    %v4297 = vadd.f32 0.0, %v4296
    %v4298 = vpop.f32.mrb[0].mxu0
    %v4299 = vadd.f32 0.0, %v4298
    %4300 = vmatprep.mubr.bf16.mxu0 %v3847
    %4301 = vmatmul.mubr.bf16.gmra.mrb[0].mxu0 %v3846
    %v4302 = vpop.f32.mrb[0].mxu0
    %v4303 = vadd.f32 0.0, %v4302
    %v4304 = vpop.f32.mrb[0].mxu0
    %v4305 = vadd.f32 0.0, %v4304
    %v4306 = vpop.f32.mrb[0].mxu0
    %v4307 = vadd.f32 0.0, %v4306
    %v4308 = vpop.f32.mrb[0].mxu0
    %v4309 = vadd.f32 0.0, %v4308
    %4310 = vmatprep.mubr.bf16.mxu0 %v3851
    %4311 = vmatmul.mubr.bf16.gmra.mrb[0].mxu0 %v3850
    %v4312 = vpop.f32.mrb[0].mxu0
    %v4313 = vadd.f32 0.0, %v4312
    %v4314 = vpop.f32.mrb[0].mxu0
    %v4315 = vadd.f32 0.0, %v4314
    %v4316 = vpop.f32.mrb[0].mxu0
    %v4317 = vadd.f32 0.0, %v4316
    %v4318 = vpop.f32.mrb[0].mxu0
    %v4319 = vadd.f32 0.0, %v4318
    %4320 = vmatprep.mubr.bf16.mxu0 %v3855
    %4321 = vmatmul.mubr.bf16.gmra.mrb[0].mxu0 %v3854
    %v4322 = vpop.f32.mrb[0].mxu0
    %v4323 = vadd.f32 0.0, %v4322
    %v4324 = vpop.f32.mrb[0].mxu0
    %v4325 = vadd.f32 0.0, %v4324
    %v4326 = vpop.f32.mrb[0].mxu0
    %v4327 = vadd.f32 0.0, %v4326
    %v4328 = vpop.f32.mrb[0].mxu0
    %v4329 = vadd.f32 0.0, %v4328
    %4330 = vmatprep.mubr.bf16.mxu0 %v3859
    %4331 = vmatmul.mubr.bf16.gmra.mrb[0].mxu0 %v3858
    %v4332 = vpop.f32.mrb[0].mxu0
    %v4333 = vadd.f32 0.0, %v4332
    %v4334 = vpop.f32.mrb[0].mxu0
    %v4335 = vadd.f32 0.0, %v4334
    %v4336 = vpop.f32.mrb[0].mxu0
    %v4337 = vadd.f32 0.0, %v4336
    %v4338 = vpop.f32.mrb[0].mxu0
    %v4339 = vadd.f32 0.0, %v4338
    %4340 = vmatprep.mubr.bf16.mxu0 %v3863
    %4341 = vmatmul.mubr.bf16.gmra.mrb[0].mxu0 %v3862
    %v4342 = vpop.f32.mrb[0].mxu0
    %v4343 = vadd.f32 0.0, %v4342
    %v4344 = vpop.f32.mrb[0].mxu0
    %v4345 = vadd.f32 0.0, %v4344
    %v4346 = vpop.f32.mrb[0].mxu0
    %v4347 = vadd.f32 0.0, %v4346
    %v4348 = vpop.f32.mrb[0].mxu0
    %v4349 = vadd.f32 0.0, %v4348
    %4350 = vmatprep.mubr.bf16.mxu0 %v3867
    %4351 = vmatmul.mubr.bf16.gmra.mrb[0].mxu0 %v3866
    %v4352 = vpop.f32.mrb[0].mxu0
    %v4353 = vadd.f32 0.0, %v4352
    %v4354 = vpop.f32.mrb[0].mxu0
    %v4355 = vadd.f32 0.0, %v4354
    %v4356 = vpop.f32.mrb[0].mxu0
    %v4357 = vadd.f32 0.0, %v4356
    %v4358 = vpop.f32.mrb[0].mxu0
    %v4359 = vadd.f32 0.0, %v4358
    %4360 = vmatprep.mubr.bf16.mxu0 %v3871
    %4361 = vmatmul.mubr.bf16.gmra.mrb[0].mxu0 %v3870
    %v4362 = vpop.f32.mrb[0].mxu0
    %v4363 = vadd.f32 0.0, %v4362
    %v4364 = vpop.f32.mrb[0].mxu0
    %v4365 = vadd.f32 0.0, %v4364
    %v4366 = vpop.f32.mrb[0].mxu0
    %v4367 = vadd.f32 0.0, %v4366
    %v4368 = vpop.f32.mrb[0].mxu0
    %v4369 = vadd.f32 0.0, %v4368
    %4370 = vdwg.mxu0
    %4371 = vmatprep.subr.bf16.mxu0 %v4163
    %4372 = vmatpush1.bf16.msra.mxu0 %v4162
    %4373 = vmatprep.subr.bf16.mxu0 %v4165
    %4374 = vmatpush1.bf16.msra.mxu0 %v4164
    %4375 = vmatprep.subr.bf16.mxu0 %v4167
    %4376 = vmatpush1.bf16.msra.mxu0 %v4166
    %4377 = vmatprep.subr.bf16.mxu0 %v4169
    %4378 = vmatpush1.bf16.msra.mxu0 %v4168
    %4379 = vmatprep.subr.bf16.mxu0 %v4171
    %4380 = vmatpush1.bf16.msra.mxu0 %v4170
    %4381 = vmatprep.subr.bf16.mxu0 %v4173
    %4382 = vmatpush1.bf16.msra.mxu0 %v4172
    %4383 = vmatprep.subr.bf16.mxu0 %v4175
    %4384 = vmatpush1.bf16.msra.mxu0 %v4174
    %4385 = vmatprep.subr.bf16.mxu0 %v4177
    %4386 = vmatpush1.bf16.msra.mxu0 %v4176
    %4387 = vmatprep.subr.bf16.mxu0 %v4179
    %4388 = vmatpush1.bf16.msra.mxu0 %v4178
    %4389 = vmatprep.subr.bf16.mxu0 %v4181
    %4390 = vmatpush1.bf16.msra.mxu0 %v4180
    %4391 = vmatprep.subr.bf16.mxu0 %v4183
    %4392 = vmatpush1.bf16.msra.mxu0 %v4182
    %4393 = vmatprep.subr.bf16.mxu0 %v4185
    %4394 = vmatpush1.bf16.msra.mxu0 %v4184
    %4395 = vmatprep.subr.bf16.mxu0 %v4187
    %4396 = vmatpush1.bf16.msra.mxu0 %v4186
    %4397 = vmatprep.subr.bf16.mxu0 %v4189
    %4398 = vmatpush1.bf16.msra.mxu0 %v4188
    %4399 = vmatprep.subr.bf16.mxu0 %v4191
    %4400 = vmatpush1.bf16.msra.mxu0 %v4190
    %4401 = vmatprep.subr.bf16.mxu0 %v4193
    %4402 = vmatpush1.bf16.msra.mxu0 %v4192
    %4403 = vmatprep.mubr.bf16.mxu0 %v3845
    %4404 = vmatmul.mubr.bf16.gmra.mrb[0].mxu0 %v3844
    %v4405 = vpop.f32.mrb[0].mxu0
    %v4406 = vadd.f32 %v4293, %v4405
    %v4407 = vpop.f32.mrb[0].mxu0
    %v4408 = vadd.f32 %v4295, %v4407
    %v4409 = vpop.f32.mrb[0].mxu0
    %v4410 = vadd.f32 %v4297, %v4409
    %v4411 = vpop.f32.mrb[0].mxu0
    %v4412 = vadd.f32 %v4299, %v4411
    %4413 = vmatprep.mubr.bf16.mxu0 %v3849
    %4414 = vmatmul.mubr.bf16.gmra.mrb[0].mxu0 %v3848
    %v4415 = vpop.f32.mrb[0].mxu0
    %v4416 = vadd.f32 %v4303, %v4415
    %v4417 = vpop.f32.mrb[0].mxu0
    %v4418 = vadd.f32 %v4305, %v4417
    %v4419 = vpop.f32.mrb[0].mxu0
    %v4420 = vadd.f32 %v4307, %v4419
    %v4421 = vpop.f32.mrb[0].mxu0
    %v4422 = vadd.f32 %v4309, %v4421
    %4423 = vmatprep.mubr.bf16.mxu0 %v3853
    %4424 = vmatmul.mubr.bf16.gmra.mrb[0].mxu0 %v3852
    %v4425 = vpop.f32.mrb[0].mxu0
    %v4426 = vadd.f32 %v4313, %v4425
    %v4427 = vpop.f32.mrb[0].mxu0
    %v4428 = vadd.f32 %v4315, %v4427
    %v4429 = vpop.f32.mrb[0].mxu0
    %v4430 = vadd.f32 %v4317, %v4429
    %v4431 = vpop.f32.mrb[0].mxu0
    %v4432 = vadd.f32 %v4319, %v4431
    %4433 = vmatprep.mubr.bf16.mxu0 %v3857
    %4434 = vmatmul.mubr.bf16.gmra.mrb[0].mxu0 %v3856
    %v4435 = vpop.f32.mrb[0].mxu0
    %v4436 = vadd.f32 %v4323, %v4435
    %v4437 = vpop.f32.mrb[0].mxu0
    %v4438 = vadd.f32 %v4325, %v4437
    %v4439 = vpop.f32.mrb[0].mxu0
    %v4440 = vadd.f32 %v4327, %v4439
    %v4441 = vpop.f32.mrb[0].mxu0
    %v4442 = vadd.f32 %v4329, %v4441
    %4443 = vmatprep.mubr.bf16.mxu0 %v3861
    %4444 = vmatmul.mubr.bf16.gmra.mrb[0].mxu0 %v3860
    %v4445 = vpop.f32.mrb[0].mxu0
    %v4446 = vadd.f32 %v4333, %v4445
    %v4447 = vpop.f32.mrb[0].mxu0
    %v4448 = vadd.f32 %v4335, %v4447
    %v4449 = vpop.f32.mrb[0].mxu0
    %v4450 = vadd.f32 %v4337, %v4449
    %v4451 = vpop.f32.mrb[0].mxu0
    %v4452 = vadd.f32 %v4339, %v4451
    %4453 = vmatprep.mubr.bf16.mxu0 %v3865
    %4454 = vmatmul.mubr.bf16.gmra.mrb[0].mxu0 %v3864
    %v4455 = vpop.f32.mrb[0].mxu0
    %v4456 = vadd.f32 %v4343, %v4455
    %v4457 = vpop.f32.mrb[0].mxu0
    %v4458 = vadd.f32 %v4345, %v4457
    %v4459 = vpop.f32.mrb[0].mxu0
    %v4460 = vadd.f32 %v4347, %v4459
    %v4461 = vpop.f32.mrb[0].mxu0
    %v4462 = vadd.f32 %v4349, %v4461
    %4463 = vmatprep.mubr.bf16.mxu0 %v3869
    %4464 = vmatmul.mubr.bf16.gmra.mrb[0].mxu0 %v3868
    %v4465 = vpop.f32.mrb[0].mxu0
    %v4466 = vadd.f32 %v4353, %v4465
    %v4467 = vpop.f32.mrb[0].mxu0
    %v4468 = vadd.f32 %v4355, %v4467
    %v4469 = vpop.f32.mrb[0].mxu0
    %v4470 = vadd.f32 %v4357, %v4469
    %v4471 = vpop.f32.mrb[0].mxu0
    %v4472 = vadd.f32 %v4359, %v4471
    %4473 = vmatprep.mubr.bf16.mxu0 %v3873
    %4474 = vmatmul.mubr.bf16.gmra.mrb[0].mxu0 %v3872
    %v4475 = vpop.f32.mrb[0].mxu0
    %v4476 = vadd.f32 %v4363, %v4475
    %v4477 = vpop.f32.mrb[0].mxu0
    %v4478 = vadd.f32 %v4365, %v4477
    %v4479 = vpop.f32.mrb[0].mxu0
    %v4480 = vadd.f32 %v4367, %v4479
    %v4481 = vpop.f32.mrb[0].mxu0
    %v4482 = vadd.f32 %v4369, %v4481
    %4483 = vdwg.mxu0
    %v4484 = vmax.f32 %v4406, 0.0
    %v4485 = vmax.f32 %v4408, 0.0
    %v4486 = vmax.f32 %v4410, 0.0
    %v4487 = vmax.f32 %v4412, 0.0
    %v4488 = vmax.f32 %v4416, 0.0
    %v4489 = vmax.f32 %v4418, 0.0
    %v4490 = vmax.f32 %v4420, 0.0
    %v4491 = vmax.f32 %v4422, 0.0
    %v4492 = vmax.f32 %v4426, 0.0
    %v4493 = vmax.f32 %v4428, 0.0
    %v4494 = vmax.f32 %v4430, 0.0
    %v4495 = vmax.f32 %v4432, 0.0
    %v4496 = vmax.f32 %v4436, 0.0
    %v4497 = vmax.f32 %v4438, 0.0
    %v4498 = vmax.f32 %v4440, 0.0
    %v4499 = vmax.f32 %v4442, 0.0
    %v4500 = vmax.f32 %v4446, 0.0
    %v4501 = vmax.f32 %v4448, 0.0
    %v4502 = vmax.f32 %v4450, 0.0
    %v4503 = vmax.f32 %v4452, 0.0
    %v4504 = vmax.f32 %v4456, 0.0
    %v4505 = vmax.f32 %v4458, 0.0
    %v4506 = vmax.f32 %v4460, 0.0
    %v4507 = vmax.f32 %v4462, 0.0
    %v4508 = vmax.f32 %v4466, 0.0
    %v4509 = vmax.f32 %v4468, 0.0
    %v4510 = vmax.f32 %v4470, 0.0
    %v4511 = vmax.f32 %v4472, 0.0
    %v4512 = vmax.f32 %v4476, 0.0
    %v4513 = vmax.f32 %v4478, 0.0
    %v4514 = vmax.f32 %v4480, 0.0
    %v4515 = vmax.f32 %v4482, 0.0
    %v4516 = vpack.c.bf16 %v4486, %v4484
    %v4517 = vpack.c.bf16 %v4487, %v4485
    %v4518 = vpack.c.bf16 %v4490, %v4488
    %v4519 = vpack.c.bf16 %v4491, %v4489
    %v4520 = vpack.c.bf16 %v4494, %v4492
    %v4521 = vpack.c.bf16 %v4495, %v4493
    %v4522 = vpack.c.bf16 %v4498, %v4496
    %v4523 = vpack.c.bf16 %v4499, %v4497
    %v4524 = vpack.c.bf16 %v4502, %v4500
    %v4525 = vpack.c.bf16 %v4503, %v4501
    %v4526 = vpack.c.bf16 %v4506, %v4504
    %v4527 = vpack.c.bf16 %v4507, %v4505
    %v4528 = vpack.c.bf16 %v4510, %v4508
    %v4529 = vpack.c.bf16 %v4511, %v4509
    %v4530 = vpack.c.bf16 %v4514, %v4512
    %v4531 = vpack.c.bf16 %v4515, %v4513
    %v4532 = vld [vmem:[%s11] sm:$0x1]
    %4533 = vmatprep.subr.bf16.mxu0 %v4517
    %4534 = vmatpush1.bf16.msra.mxu0 %v4516
    %4535 = vmatprep.subr.bf16.mxu0 %v4519
    %4536 = vmatpush1.bf16.msra.mxu0 %v4518
    %4537 = vmatprep.subr.bf16.mxu0 %v4521
    %4538 = vmatpush1.bf16.msra.mxu0 %v4520
    %4539 = vmatprep.subr.bf16.mxu0 %v4523
    %4540 = vmatpush1.bf16.msra.mxu0 %v4522
    %4541 = vmatprep.subr.bf16.mxu0 %v4525
    %4542 = vmatpush1.bf16.msra.mxu0 %v4524
    %4543 = vmatprep.subr.bf16.mxu0 %v4527
    %4544 = vmatpush1.bf16.msra.mxu0 %v4526
    %4545 = vmatprep.subr.bf16.mxu0 %v4529
    %4546 = vmatpush1.bf16.msra.mxu0 %v4528
    %4547 = vmatprep.subr.bf16.mxu0 %v4531
    %4548 = vmatpush1.bf16.msra.mxu0 %v4530
    %4549 = vmatprep.subr.bf16.mxu0 0
    %4550 = vmatpush1.bf16.msra.mxu0 0
    %4551 = vmatprep.subr.bf16.mxu0 0
    %4552 = vmatpush1.bf16.msra.mxu0 0
    %4553 = vmatprep.subr.bf16.mxu0 0
    %4554 = vmatpush1.bf16.msra.mxu0 0
    %4555 = vmatprep.subr.bf16.mxu0 0
    %4556 = vmatpush1.bf16.msra.mxu0 0
    %4557 = vmatprep.subr.bf16.mxu0 0
    %4558 = vmatpush1.bf16.msra.mxu0 0
    %4559 = vmatprep.subr.bf16.mxu0 0
    %4560 = vmatpush1.bf16.msra.mxu0 0
    %4561 = vmatprep.subr.bf16.mxu0 0
    %4562 = vmatpush1.bf16.msra.mxu0 0
    %4563 = vmatprep.subr.bf16.mxu0 0
    %4564 = vmatpush1.bf16.msra.mxu0 0
    %4565 = vmatprep.mubr.bf16.mxu0 0
    %4566 = vmatmul.mubr.bf16.gmra.mrb[0].mxu0 %v4532
    %v4567 = vpop.f32.mrb[0].mxu0
    %v4568 = vadd.f32 0.0, %v4567
    %v4569 = vpop.f32.mrb[0].mxu0
    %v4570 = vadd.f32 0.0, %v4569
    %v4571 = vpop.f32.mrb[0].mxu0
    %v4572 = vpop.f32.mrb[0].mxu0
    %4573 = vdwg.mxu0
    %v4574 = vmul.f32 %v4568, 0.015625
    %v4575 = vmul.f32 %v4570, 0.015625
    %v4578 = vcombine.low %v4574, %v4575
    %v4580 = vunpack.c.l.s4 1983009808
    %v4581 = vunpack.c.0.s8 %v4580
    %v4582 = vlaneseq
    %v4583 = vshrl.u32 %v4582, 7
    %v4584 = vsub.s32 %v4581, %v4583
    %v4585 = vrot.slane %v4578, %v4584
    %4587 = vst [vmem:[#allocation6] sm:$0xf] %v4585
    %v4588 = vld [vmem:[%s10] sm:$0xf]
    %v4591 = vunpack.c.l.s4 1966171168
    %v4592 = vunpack.c.0.s8 %v4591
    %v4593 = vlaneseq
    %v4594 = vshrl.u32 %v4593, 7
    %v4595 = vsub.s32 %v4592, %v4594
    %v4596 = vrot.slane %v4588, %v4595
    %v4597 = vcombine.high %v4596, %v4596
    %v4599 = vunpack.c.l.s4 1966171168
    %v4600 = vunpack.c.0.s8 %v4599
    %v4601 = vlaneseq
    %v4602 = vshrl.u32 %v4601, 7
    %v4603 = vsub.s32 %v4600, %v4602
    %v4604 = vrot.slane %v4596, %v4603
    %v4606 = vunpack.c.l.s4 1966171168
    %v4607 = vunpack.c.0.s8 %v4606
    %v4608 = vlaneseq
    %v4609 = vshrl.u32 %v4608, 7
    %v4610 = vsub.s32 %v4607, %v4609
    %v4611 = vrot.slane %v4597, %v4610
    %v4612 = vcombine.high %v4604, %v4604
    %v4613 = vcombine.high %v4611, %v4611
    %4618 = vmatprep.subr.bf16.mxu0 %v3843
    %4619 = vmatpush1.bf16.xpose.msra.mxu0 %v3842
    %4620 = vmatprep.subr.bf16.mxu0 %v3847
    %4621 = vmatpush1.bf16.xpose.msra.mxu0 %v3846
    %4622 = vmatprep.subr.bf16.mxu0 %v3851
    %4623 = vmatpush1.bf16.xpose.msra.mxu0 %v3850
    %4624 = vmatprep.subr.bf16.mxu0 %v3855
    %4625 = vmatpush1.bf16.xpose.msra.mxu0 %v3854
    %4626 = vmatprep.subr.bf16.mxu0 %v3859
    %4627 = vmatpush1.bf16.xpose.msra.mxu0 %v3858
    %4628 = vmatprep.subr.bf16.mxu0 %v3863
    %4629 = vmatpush1.bf16.xpose.msra.mxu0 %v3862
    %4630 = vmatprep.subr.bf16.mxu0 %v3867
    %4631 = vmatpush1.bf16.xpose.msra.mxu0 %v3866
    %4632 = vmatprep.subr.bf16.mxu0 %v3871
    %4633 = vmatpush1.bf16.xpose.msra.mxu0 %v3870
    %4634 = vmatprep.subr.bf16.mxu0 0
    %4635 = vmatpush1.bf16.xpose.msra.mxu0 0
    %4636 = vmatprep.subr.bf16.mxu0 0
    %4637 = vmatpush1.bf16.xpose.msra.mxu0 0
    %4638 = vmatprep.subr.bf16.mxu0 0
    %4639 = vmatpush1.bf16.xpose.msra.mxu0 0
    %4640 = vmatprep.subr.bf16.mxu0 0
    %4641 = vmatpush1.bf16.xpose.msra.mxu0 0
    %4642 = vmatprep.subr.bf16.mxu0 0
    %4643 = vmatpush1.bf16.xpose.msra.mxu0 0
    %4644 = vmatprep.subr.bf16.mxu0 0
    %4645 = vmatpush1.bf16.xpose.msra.mxu0 0
    %4646 = vmatprep.subr.bf16.mxu0 0
    %4647 = vmatpush1.bf16.xpose.msra.mxu0 0
    %4648 = vmatprep.subr.bf16.mxu0 0
    %4649 = vmatpush1.bf16.xpose.msra.mxu0 0
    %4650 = vmatprep.mubr.bf16.mxu0 %v4611
    %4651 = vmatmul.mubr.bf16.gmra.mrb[0].mxu0 %v4604
    %v4652 = vpop.f32.mrb[0].mxu0
    %v4653 = vadd.f32 0.0, %v4652
    %v4654 = vpop.f32.mrb[0].mxu0
    %v4655 = vpop.f32.mrb[0].mxu0
    %v4656 = vpop.f32.mrb[0].mxu0
    %4657 = vdwg.mxu0
    %4658 = vmatprep.subr.bf16.mxu0 %v3845
    %4659 = vmatpush1.bf16.xpose.msra.mxu0 %v3844
    %4660 = vmatprep.subr.bf16.mxu0 %v3849
    %4661 = vmatpush1.bf16.xpose.msra.mxu0 %v3848
    %4662 = vmatprep.subr.bf16.mxu0 %v3853
    %4663 = vmatpush1.bf16.xpose.msra.mxu0 %v3852
    %4664 = vmatprep.subr.bf16.mxu0 %v3857
    %4665 = vmatpush1.bf16.xpose.msra.mxu0 %v3856
    %4666 = vmatprep.subr.bf16.mxu0 %v3861
    %4667 = vmatpush1.bf16.xpose.msra.mxu0 %v3860
    %4668 = vmatprep.subr.bf16.mxu0 %v3865
    %4669 = vmatpush1.bf16.xpose.msra.mxu0 %v3864
    %4670 = vmatprep.subr.bf16.mxu0 %v3869
    %4671 = vmatpush1.bf16.xpose.msra.mxu0 %v3868
    %4672 = vmatprep.subr.bf16.mxu0 %v3873
    %4673 = vmatpush1.bf16.xpose.msra.mxu0 %v3872
    %4674 = vmatprep.subr.bf16.mxu0 0
    %4675 = vmatpush1.bf16.xpose.msra.mxu0 0
    %4676 = vmatprep.subr.bf16.mxu0 0
    %4677 = vmatpush1.bf16.xpose.msra.mxu0 0
    %4678 = vmatprep.subr.bf16.mxu0 0
    %4679 = vmatpush1.bf16.xpose.msra.mxu0 0
    %4680 = vmatprep.subr.bf16.mxu0 0
    %4681 = vmatpush1.bf16.xpose.msra.mxu0 0
    %4682 = vmatprep.subr.bf16.mxu0 0
    %4683 = vmatpush1.bf16.xpose.msra.mxu0 0
    %4684 = vmatprep.subr.bf16.mxu0 0
    %4685 = vmatpush1.bf16.xpose.msra.mxu0 0
    %4686 = vmatprep.subr.bf16.mxu0 0
    %4687 = vmatpush1.bf16.xpose.msra.mxu0 0
    %4688 = vmatprep.subr.bf16.mxu0 0
    %4689 = vmatpush1.bf16.xpose.msra.mxu0 0
    %4690 = vmatprep.mubr.bf16.mxu0 %v4613
    %4691 = vmatmul.mubr.bf16.gmra.mrb[0].mxu0 %v4612
    %v4692 = vpop.f32.mrb[0].mxu0
    %v4693 = vadd.f32 %v4653, %v4692
    %v4694 = vpop.f32.mrb[0].mxu0
    %v4695 = vpop.f32.mrb[0].mxu0
    %v4696 = vpop.f32.mrb[0].mxu0
    %4697 = vdwg.mxu0
    %4698 = vst [vmem:[%s17] sm:$0x1] %v4693
    // Predicated region
    $region50: #{_forward_impl.1} parent=1 // pred_check
      _
    $region51: #{_forward_impl.1} parent=1 // pred_check_branch
      %4700 = sbr.rel (0) target = $region53
    $region52: #{_forward_impl.1} parent=1 // pred_region
      %s4702 = ssub.s32 64, 64
      %4703 = vsyncadd [#allocation3], %s4702
      %s4705 = sshll.u32 [#allocation2], 4
      %s4706 = int_to_ptr.vmem [resolvable:$true] %s4705
      %4708 = dma.vmem_to_hbm [thread:$0]  %s4706, 64, %s12, [#allocation3]
    $region53: #{_forward_impl.1} parent=1 // pred_fallthru
      _
    // Predicated region
    $region54: #{_forward_impl.1} parent=1 // pred_check
      _
    $region55: #{_forward_impl.1} parent=1 // pred_check_branch
      %4710 = sbr.rel (0) target = $region57
    $region56: #{_forward_impl.1} parent=1 // pred_region
      %s4712 = ssub.s32 64, 64
      %4713 = vsyncadd [#allocation5], %s4712
      %s4715 = sshll.u32 [#allocation4], 4
      %s4716 = int_to_ptr.vmem [resolvable:$true] %s4715
      %4718 = dma.vmem_to_hbm [thread:$0]  %s4716, 64, %s13, [#allocation5]
    $region57: #{_forward_impl.1} parent=1 // pred_fallthru
      _
    // Predicated region
    $region58: #{_forward_impl.1} parent=1 // pred_check
      _
    $region59: #{_forward_impl.1} parent=1 // pred_check_branch
      %4720 = sbr.rel (0) target = $region61
    $region60: #{_forward_impl.1} parent=1 // pred_region
      %s4722 = ssub.s32 64, 64
      %4723 = vsyncadd [#allocation5], %s4722
      %s4725 = sshll.u32 [#allocation6], 4
      %s4726 = int_to_ptr.vmem [resolvable:$true] %s4725
      %4728 = dma.vmem_to_hbm [thread:$0]  %s4726, 64, %s14, [#allocation5]
    $region61: #{_forward_impl.1} parent=1 // pred_fallthru
      _
    // Predicated region
    $region62: #{_forward_impl.1} parent=1 // pred_check
      _
    $region63: #{_forward_impl.1} parent=1 // pred_check_branch
      %4730 = sbr.rel (0) target = $region65
    $region64: #{_forward_impl.1} parent=1 // pred_region
      _
    $region65: #{_forward_impl.1} parent=1 // pred_fallthru
      _
    // Predicated region
    $region66: #{_forward_impl.1} parent=1 // pred_check
      _
    $region67: #{_forward_impl.1} parent=1 // pred_check_branch
      %4732 = sbr.rel (0) target = $region69
    $region68: #{_forward_impl.1} parent=1 // pred_region
      _
    $region69: #{_forward_impl.1} parent=1 // pred_fallthru
      _
    // Predicated region
    $region70: #{_forward_impl.1} parent=1 // pred_check
      _
    $region71: #{_forward_impl.1} parent=1 // pred_check_branch
      %4734 = sbr.rel (0) target = $region73
    $region72: #{_forward_impl.1} parent=1 // pred_region
      _
    $region73: #{_forward_impl.1} parent=1 // pred_fallthru
      _
    // Predicated region
    $region74: #{_forward_impl.1} parent=1 // pred_check
      _
    $region75: #{_forward_impl.1} parent=1 // pred_check_branch
      %4736 = sbr.rel (0) target = $region77
    $region76: #{_forward_impl.1} parent=1 // pred_region
      %4737 = dma.done [#allocation3], 64
    $region77: #{_forward_impl.1} parent=1 // pred_fallthru
      _
    // Predicated region
    $region78: #{_forward_impl.1} parent=1 // pred_check
      _
    $region79: #{_forward_impl.1} parent=1 // pred_check_branch
      %4739 = sbr.rel (0) target = $region81
    $region80: #{_forward_impl.1} parent=1 // pred_region
      %4740 = dma.done [#allocation5], 64
    $region81: #{_forward_impl.1} parent=1 // pred_fallthru
      _
    // Predicated region
    $region82: #{_forward_impl.1} parent=1 // pred_check
      _
    $region83: #{_forward_impl.1} parent=1 // pred_check_branch
      %4742 = sbr.rel (0) target = $region85
    $region84: #{_forward_impl.1} parent=1 // pred_region
      %4743 = dma.done [#allocation5], 64
    $region85: #{_forward_impl.1} parent=1 // pred_fallthru
      _
    // Predicated region
    $region86: #{_forward_impl.1} parent=1 // pred_check
      _
    $region87: #{_forward_impl.1} parent=1 // pred_check_branch
      %4745 = sbr.rel (0) target = $region89
    $region88: #{_forward_impl.1} parent=1 // pred_region
      _
    $region89: #{_forward_impl.1} parent=1 // pred_fallthru
      _
    // Predicated region
    $region90: #{_forward_impl.1} parent=1 // pred_check
      _
    $region91: #{_forward_impl.1} parent=1 // pred_check_branch
      %4747 = sbr.rel (0) target = $region93
    $region92: #{_forward_impl.1} parent=1 // pred_region
      _
    $region93: #{_forward_impl.1} parent=1 // pred_fallthru
      _
    // Predicated region
    $region94: #{_forward_impl.1} parent=1 // pred_check
      _
    $region95: #{_forward_impl.1} parent=1 // pred_check_branch
      %4749 = sbr.rel (0) target = $region97
    $region96: #{_forward_impl.1} parent=1 // pred_region
      _
    $region97: #{_forward_impl.1} parent=1 // pred_fallthru
      _
    %4750 = vsyncpa [#allocation3], 1
    %4751 = vsyncpa [#allocation5], 1

</llo_original>
